<compile_context>
chip_gen: v7x
topology: tpu7x:2x2x1
jax: 0.10.0
libtpu: 0.0.40
codegen_flags: <defaults>
</compile_context>

<pallas_src>
import jax
import jax.numpy as jnp
from jax import lax
from jax.experimental import pallas as pl
from jax.experimental.pallas import tpu as pltpu

EPS = 1e-5
LANE = 128


def _round_up(x, m):
    return ((x + m - 1) // m) * m


def _pick_tile_h(H, W, target_rows=512):
    """Largest divisor of H with tile_h*W <= target_rows (prefer >=2 tiles,
    prefer tile_h*W a multiple of 8)."""
    divs = [t for t in range(1, H + 1) if H % t == 0]
    cands = [t for t in divs if t < H and t * W <= target_rows] or [1]
    aligned = [t for t in cands if (t * W) % 8 == 0] or cands
    return max(aligned)


def _vmem_kw(est_bytes):
    # Default scoped VMEM is plenty for small shapes; only raise when needed.
    # TODO(synk): on v7x (64 MiB VMEM) switch to halo-blocked row tiles
    # (pl.Element row offsets) instead of per-image residency before raising
    # this further.
    if est_bytes <= 12 * 2**20:
        return {}
    return {"vmem_limit_bytes": int(min(96 * 2**20, 2 * est_bytes))}


def _make_conv_kernel(tile_h, W, H, cin_p, cout_p, fuse_prelude):
    """3x3 conv (9 accumulating MXU matmuls) + partial BN stats.

    If fuse_prelude: the previous layer's BatchNorm+ReLU is applied to the raw
    bf16 window right after the VMEM load (plus zero-masking of the padding
    border), so no separate BN/ReLU pass over HBM is needed.
    """
    rows = tile_h * W

    def kernel(*refs):
        if fuse_prelude:
            xp_ref, scale_ref, shift_ref, w_ref, yp_ref, stats_ref = refs
        else:
            xp_ref, w_ref, yp_ref, stats_ref = refs
            scale_ref = shift_ref = None

        h = pl.program_id(1)

        @pl.when(h == 0)
        def _init():
            # Border rows/cols of the padded output buffer must be zero so the
            # next layer's fused BN+ReLU prologue can mask them cheaply; stats
            # accumulate across row tiles in the resident block.
            yp_ref[...] = jnp.zeros_like(yp_ref)
            stats_ref[...] = jnp.zeros_like(stats_ref)

        row0 = h * tile_h
        win = xp_ref[pl.ds(row0, tile_h + 2)]          # (tile_h+2, W+2, cin_p)

        if fuse_prelude:
            a = win.astype(jnp.float32) * scale_ref[...].reshape(1, 1, cin_p)
            a = a + shift_ref[...].reshape(1, 1, cin_p)
            a = jnp.maximum(a, 0.0)
            # Padding border positions hold raw zeros in the padded buffer;
            # after the affine they would be max(shift, 0) -> mask back to 0.
            col = lax.broadcasted_iota(jnp.int32, (1, W + 2, 1), 1)
            row = lax.broadcasted_iota(jnp.int32, (tile_h + 2, 1, 1), 0) + row0
            valid = (col >= 1) & (col <= W) & (row >= 1) & (row <= H)
            a = jnp.where(valid, a, 0.0).astype(jnp.bfloat16)
        else:
            a = win

        # 3x3 conv as 9 accumulating MXU matmuls with K = cin_p (>=128 after
        # channel padding); avoids a 9x-replicated im2col buffer in VMEM.
        # No conv bias: it cancels exactly under training-mode BatchNorm.
        acc = jnp.zeros((rows, cout_p), jnp.float32)
        for t in range(9):
            dh, dw = divmod(t, 3)
            tap = a[dh:dh + tile_h, dw:dw + W, :].reshape(rows, cin_p)
            acc = acc + jnp.dot(tap, w_ref[t],
                                preferred_element_type=jnp.float32)

        # BN partial sums (f32, from the f32 accumulator), accumulated across
        # row tiles; written back to HBM once per batch element.
        s = jnp.sum(acc, axis=0, keepdims=True)
        ss = jnp.sum(acc * acc, axis=0, keepdims=True)
        stats_ref[...] += jnp.concatenate(
            [s, ss, jnp.zeros((6, cout_p), jnp.float32)], axis=0)

        # bf16 conv output written into the interior of the zero-padded buffer
        # (full-width aligned store; edge columns carry zeros).
        out = acc.reshape(tile_h, W, cout_p).astype(jnp.bfloat16)
        zcol = jnp.zeros((tile_h, 1, cout_p), jnp.bfloat16)
        yp_ref[pl.ds(row0 + 1, tile_h)] = jnp.concatenate(
            [zcol, out, zcol], axis=1)

    return kernel


def _make_bn_relu_kernel(tile_h, W, cout_p):
    """Final-layer epilogue: y = max(conv*scale + shift, 0), f32 out."""
    rows = tile_h * W

    def kernel(yp_ref, scale_ref, shift_ref, o_ref):
        row0 = pl.program_id(1) * tile_h
        win = yp_ref[pl.ds(row0 + 1, tile_h)]          # (tile_h, W+2, cout_p)
        v = win[:, 1:W + 1, :].astype(jnp.float32)
        y = v * scale_ref[...].reshape(1, 1, cout_p)
        y = jnp.maximum(y + shift_ref[...].reshape(1, 1, cout_p), 0.0)
        o_ref[...] = y.reshape(rows, cout_p)

    return kernel


def _conv_layer(xp, w9, scale, shift, *, H, W, tile_h):
    """One conv layer over the padded bf16 buffer; returns (padded conv out
    bf16, per-image BN partial stats)."""
    N, cin_p = xp.shape[0], xp.shape[-1]
    cout_p = w9.shape[-1]
    n_h = H // tile_h
    fuse = scale is not None
    kernel = _make_conv_kernel(tile_h, W, H, cin_p, cout_p, fuse)

    in_specs = [pl.BlockSpec((None, H + 2, W + 2, cin_p),
                             lambda n, h: (n, 0, 0, 0))]
    operands = [xp]
    if fuse:
        in_specs += [pl.BlockSpec((1, cin_p), lambda n, h: (0, 0)),
                     pl.BlockSpec((1, cin_p), lambda n, h: (0, 0))]
        operands += [scale, shift]
    in_specs.append(pl.BlockSpec((9, cin_p, cout_p), lambda n, h: (0, 0, 0)))
    operands.append(w9)

    est = 2 * ((H + 2) * (W + 2) * (cin_p + cout_p) * 2
               + 9 * cin_p * cout_p * 2)
    yp, stats = pl.pallas_call(
        kernel,
        grid=(N, n_h),
        in_specs=in_specs,
        out_specs=[
            pl.BlockSpec((None, H + 2, W + 2, cout_p),
                         lambda n, h: (n, 0, 0, 0)),
            pl.BlockSpec((None, 8, cout_p), lambda n, h: (n, 0, 0)),
        ],
        out_shape=[
            jax.ShapeDtypeStruct((N, H + 2, W + 2, cout_p), jnp.bfloat16),
            jax.ShapeDtypeStruct((N, 8, cout_p), jnp.float32),
        ],
        compiler_params=pltpu.CompilerParams(
            dimension_semantics=("parallel", "arbitrary"), **_vmem_kw(est)),
    )(*operands)
    return yp, stats


def _bn_relu_epilogue(yp, scale, shift, *, H, W, tile_h):
    N, cp = yp.shape[0], yp.shape[-1]
    n_h = H // tile_h
    rows = tile_h * W
    return pl.pallas_call(
        _make_bn_relu_kernel(tile_h, W, cp),
        grid=(N, n_h),
        in_specs=[
            pl.BlockSpec((None, H + 2, W + 2, cp), lambda n, h: (n, 0, 0, 0)),
            pl.BlockSpec((1, cp), lambda n, h: (0, 0)),
            pl.BlockSpec((1, cp), lambda n, h: (0, 0)),
        ],
        out_specs=pl.BlockSpec((None, None, rows, cp),
                               lambda n, h: (n, h, 0, 0)),
        out_shape=jax.ShapeDtypeStruct((N, n_h, rows, cp), jnp.float32),
        compiler_params=pltpu.CompilerParams(
            dimension_semantics=("parallel", "arbitrary")),
    )(yp, scale, shift)


def _fold_bn(stats, gamma_p, beta_p, count):
    """Reduce per-image partial (sum, sumsq) to a per-channel affine."""
    sums = jnp.sum(stats[:, 0, :], axis=0)
    sqs = jnp.sum(stats[:, 1, :], axis=0)
    mu = sums / count
    # TODO(synk): E[x^2]-E[x]^2 can cancel catastrophically at very large
    # N*H*W; switch to per-tile-centered partials if accuracy drifts at scale.
    var = jnp.maximum(sqs / count - mu * mu, 0.0)      # biased var (PyTorch BN)
    inv = lax.rsqrt(var + EPS)
    scale = gamma_p * inv
    shift = beta_p - mu * scale
    return (scale[None, :].astype(jnp.float32),
            shift[None, :].astype(jnp.float32))


def _pack_x(x_nchw, cin_p):
    N, C, H, W = x_nchw.shape
    x = jnp.transpose(x_nchw, (0, 2, 3, 1)).astype(jnp.bfloat16)
    return jnp.pad(x, ((0, 0), (1, 1), (1, 1), (0, cin_p - C)))


def _pack_w(w_oihw, cin_p, cout_p):
    cout, cin = w_oihw.shape[0], w_oihw.shape[1]
    w = jnp.transpose(w_oihw, (2, 3, 1, 0))            # (3,3,Cin,Cout)
    w = jnp.pad(w, ((0, 0), (0, 0), (0, cin_p - cin), (0, cout_p - cout)))
    return w.reshape(9, cin_p, cout_p).astype(jnp.bfloat16)


def _pad_vec(v, cp):
    return jnp.pad(v.astype(jnp.float32), (0, cp - v.shape[0]))


def init_params(key, in_channels, out_channels, mid_channels=None):
    """Deterministic synthetic parameters matching DoubleConv's shapes."""
    if not mid_channels:
        mid_channels = out_channels
    k1, k2, k3, k4 = jax.random.split(key, 4)

    def conv_init(kw, kb, cin, cout):
        fan_in = cin * 9
        w = jax.random.normal(kw, (cout, cin, 3, 3), jnp.float32) / jnp.sqrt(fan_in)
        b = jax.random.normal(kb, (cout,), jnp.float32) * 0.1
        return w, b

    w1, b1 = conv_init(k1, k2, in_channels, mid_channels)
    w2, b2 = conv_init(k3, k4, mid_channels, out_channels)
    return dict(
        w1=w1, b1=b1,
        g1=jnp.ones((mid_channels,), jnp.float32),
        bt1=jnp.zeros((mid_channels,), jnp.float32),
        w2=w2, b2=b2,
        g2=jnp.ones((out_channels,), jnp.float32),
        bt2=jnp.zeros((out_channels,), jnp.float32),
    )


@jax.jit
def double_conv(x_nchw, params):
    """DoubleConv forward: NCHW in, NCHW out (PyTorch convention).

    NCHW<->NHWC transposes + channel padding happen once at the module
    boundary; between the two convs the activation stays in a padded bf16
    NHWC buffer written and consumed by the Pallas kernels.
    Conv biases (params b1/b2) are intentionally unused: under training-mode
    BatchNorm they cancel exactly in the forward output.
    TODO(synk): BatchNorm running-mean/var buffer updates (training
    bookkeeping only) are not tracked.
    """
    N, _, H, W = x_nchw.shape
    cmid, cin = params["w1"].shape[0], params["w1"].shape[1]
    cout = params["w2"].shape[0]
    c1p, c2p, c3p = (_round_up(c, LANE) for c in (cin, cmid, cout))
    tile_h = _pick_tile_h(H, W)
    n_h = H // tile_h
    count = float(N * H * W)

    xp1 = _pack_x(x_nchw, c1p)
    w1p = _pack_w(params["w1"], c1p, c2p)
    w2p = _pack_w(params["w2"], c2p, c3p)

    # Layer 1: conv + stats (raw input, no prelude).
    yp1, st1 = _conv_layer(xp1, w1p, None, None, H=H, W=W, tile_h=tile_h)
    scale1, shift1 = _fold_bn(st1, _pad_vec(params["g1"], c2p),
                              _pad_vec(params["bt1"], c2p), count)

    # Layer 2: conv + stats, with layer-1 BN+ReLU fused into the window load.
    yp2, st2 = _conv_layer(yp1, w2p, scale1, shift1, H=H, W=W, tile_h=tile_h)
    scale2, shift2 = _fold_bn(st2, _pad_vec(params["g2"], c3p),
                              _pad_vec(params["bt2"], c3p), count)

    # Final BN+ReLU epilogue (no next conv to fuse it into).
    y = _bn_relu_epilogue(yp2, scale2, shift2, H=H, W=W, tile_h=tile_h)
    y = y.reshape(N, n_h, tile_h, W, c3p).reshape(N, H, W, c3p)[..., :cout]
    return jnp.transpose(y, (0, 3, 1, 2))


def double_conv_reference(x_nchw, params):
    """Pure-JAX reference mirroring the PyTorch module (training-mode BN).

    Conv inputs/weights are quantized to bf16 to mirror the kernel's bf16 MXU
    inputs (f32 accumulation). Biases are kept here; they cancel under BN.
    """
    def q(v):
        return v.astype(jnp.bfloat16).astype(jnp.float32)

    def conv(x, w, b):
        y = lax.conv_general_dilated(
            q(x), q(w), window_strides=(1, 1), padding=((1, 1), (1, 1)),
            dimension_numbers=("NCHW", "OIHW", "NCHW"))
        return y + b[None, :, None, None]

    def bn_relu(y, g, bt):
        mu = jnp.mean(y, axis=(0, 2, 3), keepdims=True)
        var = jnp.mean((y - mu) ** 2, axis=(0, 2, 3), keepdims=True)
        yn = (y - mu) * lax.rsqrt(var + EPS)
        yn = yn * g[None, :, None, None] + bt[None, :, None, None]
        return jnp.maximum(yn, 0.0)

    y = bn_relu(conv(x_nchw, params["w1"], params["b1"]),
                params["g1"], params["bt1"])
    y = bn_relu(conv(y, params["w2"], params["b2"]),
                params["g2"], params["bt2"])
    return y


if __name__ == "__main__":
    key = jax.random.PRNGKey(0)
    kx, kp = jax.random.split(key)

    N, Cin, H, W = 2, 4, 16, 16
    Cout = 8
    x = jax.random.normal(kx, (N, Cin, H, W), jnp.float32)
    params = init_params(kp, Cin, Cout)

    out = jax.block_until_ready(double_conv(x, params))
    assert out.shape == (N, Cout, H, W), out.shape

    ref = double_conv_reference(x, params)
    # bf16 MXU inputs + bf16 inter-layer activation requantization ->
    # tolerance ~3e-2 on the unit-variance (post-BN) outputs.
    if not jnp.allclose(out, ref, atol=3e-2, rtol=3e-2):
        raise AssertionError(
            f"mismatch: max abs diff {jnp.max(jnp.abs(out - ref))}")
    print("KERNEL_OK")
</pallas_src>

<mosaic_0001>
module attributes {stable_mosaic.version = 11 : i64} {
  func.func @kernel(%arg0: i32, %arg1: i32, %arg2: memref<1x18x18x128xbf16, #tpu.memory_space<vmem>>, %arg3: memref<9x128x128xbf16, #tpu.memory_space<vmem>>, %arg4: memref<1x18x18x128xbf16, #tpu.memory_space<vmem>>, %arg5: memref<1x8x128xf32, #tpu.memory_space<vmem>>) attributes {dimension_semantics = [#tpu.dimension_semantics<parallel>, #tpu.dimension_semantics<arbitrary>], iteration_bounds = array<i64: 2, 2>, scalar_prefetch = 0 : i64, scratch_operands = 0 : i64, tpu.core_type = #tpu.core_type<tc>, window_params = [{transform_indices = @transform_0, window_bounds = array<i64: 1, 18, 18, 128>}, {pipeline_mode = #tpu.pipeline_mode<synchronous>, transform_indices = @transform_1, window_bounds = array<i64: 9, 128, 128>}, {transform_indices = @transform_2, window_bounds = array<i64: 1, 18, 18, 128>}, {transform_indices = @transform_3, window_bounds = array<i64: 1, 8, 128>}]} {
    %c0_i32 = arith.constant 0 : i32
    %0 = arith.cmpi eq, %arg1, %c0_i32 : i32
    %1 = arith.extui %0 : i1 to i32
    %c0_i32_0 = arith.constant 0 : i32
    %2 = arith.cmpi ne, %1, %c0_i32_0 : i32
    scf.if %2 {
      %cst_44 = arith.constant 0.000000e+00 : bf16
      %84 = vector.broadcast %cst_44 : bf16 to vector<18x18x128xbf16>
      %c0_45 = arith.constant 0 : index
      %c0_46 = arith.constant 0 : index
      %c0_47 = arith.constant 0 : index
      %c0_48 = arith.constant 0 : index
      %85 = vector.load %arg4[%c0_45, %c0_46, %c0_47, %c0_48] : memref<1x18x18x128xbf16, #tpu.memory_space<vmem>>, vector<1x18x18x128xbf16>
      %86 = vector.shape_cast %85 : vector<1x18x18x128xbf16> to vector<18x18x128xbf16>
      %87 = vector.shape_cast %84 : vector<18x18x128xbf16> to vector<1x18x18x128xbf16>
      tpu.vector_store %arg4[%c0_45, %c0_46, %c0_47, %c0_48], %87 {strides = array<i32>} : memref<1x18x18x128xbf16, #tpu.memory_space<vmem>>, vector<1x18x18x128xbf16>,
      %cst_49 = arith.constant 0.000000e+00 : f32
      %88 = vector.broadcast %cst_49 : f32 to vector<8x128xf32>
      %c0_50 = arith.constant 0 : index
      %c0_51 = arith.constant 0 : index
      %c0_52 = arith.constant 0 : index
      %89 = vector.load %arg5[%c0_50, %c0_51, %c0_52] : memref<1x8x128xf32, #tpu.memory_space<vmem>>, vector<1x8x128xf32>
      %90 = vector.shape_cast %89 : vector<1x8x128xf32> to vector<8x128xf32>
      %91 = vector.shape_cast %88 : vector<8x128xf32> to vector<1x8x128xf32>
      tpu.vector_store %arg5[%c0_50, %c0_51, %c0_52], %91 {strides = array<i32>} : memref<1x8x128xf32, #tpu.memory_space<vmem>>, vector<1x8x128xf32>,
    } else {
    }
    %c8_i32 = arith.constant 8 : i32
    %3 = arith.muli %arg1, %c8_i32 : i32
    %c0 = arith.constant 0 : index
    %4 = arith.index_cast %3 : i32 to index
    %c0_1 = arith.constant 0 : index
    %c0_2 = arith.constant 0 : index
    %5 = vector.load %arg2[%c0, %4, %c0_1, %c0_2] : memref<1x18x18x128xbf16, #tpu.memory_space<vmem>>, vector<1x10x18x128xbf16>
    %6 = vector.shape_cast %5 : vector<1x10x18x128xbf16> to vector<10x18x128xbf16>
    %cst = arith.constant 0.000000e+00 : f32
    %7 = vector.broadcast %cst : f32 to vector<128x128xf32>
    %8 = vector.extract_strided_slice %6 {offsets = [0, 0, 0], sizes = [8, 16, 128], strides = [1, 1, 1]} : vector<10x18x128xbf16> to vector<8x16x128xbf16>
    %9 = vector.shape_cast %8 : vector<8x16x128xbf16> to vector<128x128xbf16>
    %c0_3 = arith.constant 0 : index
    %c0_4 = arith.constant 0 : index
    %c0_5 = arith.constant 0 : index
    %10 = vector.load %arg3[%c0_3, %c0_4, %c0_5] : memref<9x128x128xbf16, #tpu.memory_space<vmem>>, vector<1x128x128xbf16>
    %11 = vector.shape_cast %10 : vector<1x128x128xbf16> to vector<128x128xbf16>
    %cst_6 = arith.constant dense<0.000000e+00> : vector<128x128xf32>
    %12 = tpu.matmul %9, %11, %cst_6 {dimension_numbers = #tpu.dot_dimension_numbers<[1], [0], [0], [1], [0, 0, 1, 1], [], []>} : vector<128x128xbf16>, vector<128x128xbf16>, vector<128x128xf32> -> vector<128x128xf32>
    %13 = arith.addf %7, %12 : vector<128x128xf32>
    %14 = vector.extract_strided_slice %6 {offsets = [0, 1, 0], sizes = [8, 16, 128], strides = [1, 1, 1]} : vector<10x18x128xbf16> to vector<8x16x128xbf16>
    %15 = vector.shape_cast %14 : vector<8x16x128xbf16> to vector<128x128xbf16>
    %c1 = arith.constant 1 : index
    %c0_7 = arith.constant 0 : index
    %c0_8 = arith.constant 0 : index
    %16 = vector.load %arg3[%c1, %c0_7, %c0_8] : memref<9x128x128xbf16, #tpu.memory_space<vmem>>, vector<1x128x128xbf16>
    %17 = vector.shape_cast %16 : vector<1x128x128xbf16> to vector<128x128xbf16>
    %cst_9 = arith.constant dense<0.000000e+00> : vector<128x128xf32>
    %18 = tpu.matmul %15, %17, %cst_9 {dimension_numbers = #tpu.dot_dimension_numbers<[1], [0], [0], [1], [0, 0, 1, 1], [], []>} : vector<128x128xbf16>, vector<128x128xbf16>, vector<128x128xf32> -> vector<128x128xf32>
    %19 = arith.addf %13, %18 : vector<128x128xf32>
    %20 = vector.extract_strided_slice %6 {offsets = [0, 2, 0], sizes = [8, 16, 128], strides = [1, 1, 1]} : vector<10x18x128xbf16> to vector<8x16x128xbf16>
    %21 = vector.shape_cast %20 : vector<8x16x128xbf16> to vector<128x128xbf16>
    %c2 = arith.constant 2 : index
    %c0_10 = arith.constant 0 : index
    %c0_11 = arith.constant 0 : index
    %22 = vector.load %arg3[%c2, %c0_10, %c0_11] : memref<9x128x128xbf16, #tpu.memory_space<vmem>>, vector<1x128x128xbf16>
    %23 = vector.shape_cast %22 : vector<1x128x128xbf16> to vector<128x128xbf16>
    %cst_12 = arith.constant dense<0.000000e+00> : vector<128x128xf32>
    %24 = tpu.matmul %21, %23, %cst_12 {dimension_numbers = #tpu.dot_dimension_numbers<[1], [0], [0], [1], [0, 0, 1, 1], [], []>} : vector<128x128xbf16>, vector<128x128xbf16>, vector<128x128xf32> -> vector<128x128xf32>
    %25 = arith.addf %19, %24 : vector<128x128xf32>
    %26 = vector.extract_strided_slice %6 {offsets = [1, 0, 0], sizes = [8, 16, 128], strides = [1, 1, 1]} : vector<10x18x128xbf16> to vector<8x16x128xbf16>
    %27 = vector.shape_cast %26 : vector<8x16x128xbf16> to vector<128x128xbf16>
    %c3 = arith.constant 3 : index
    %c0_13 = arith.constant 0 : index
    %c0_14 = arith.constant 0 : index
    %28 = vector.load %arg3[%c3, %c0_13, %c0_14] : memref<9x128x128xbf16, #tpu.memory_space<vmem>>, vector<1x128x128xbf16>
    %29 = vector.shape_cast %28 : vector<1x128x128xbf16> to vector<128x128xbf16>
    %cst_15 = arith.constant dense<0.000000e+00> : vector<128x128xf32>
    %30 = tpu.matmul %27, %29, %cst_15 {dimension_numbers = #tpu.dot_dimension_numbers<[1], [0], [0], [1], [0, 0, 1, 1], [], []>} : vector<128x128xbf16>, vector<128x128xbf16>, vector<128x128xf32> -> vector<128x128xf32>
    %31 = arith.addf %25, %30 : vector<128x128xf32>
    %32 = vector.extract_strided_slice %6 {offsets = [1, 1, 0], sizes = [8, 16, 128], strides = [1, 1, 1]} : vector<10x18x128xbf16> to vector<8x16x128xbf16>
    %33 = vector.shape_cast %32 : vector<8x16x128xbf16> to vector<128x128xbf16>
    %c4 = arith.constant 4 : index
    %c0_16 = arith.constant 0 : index
    %c0_17 = arith.constant 0 : index
    %34 = vector.load %arg3[%c4, %c0_16, %c0_17] : memref<9x128x128xbf16, #tpu.memory_space<vmem>>, vector<1x128x128xbf16>
    %35 = vector.shape_cast %34 : vector<1x128x128xbf16> to vector<128x128xbf16>
    %cst_18 = arith.constant dense<0.000000e+00> : vector<128x128xf32>
    %36 = tpu.matmul %33, %35, %cst_18 {dimension_numbers = #tpu.dot_dimension_numbers<[1], [0], [0], [1], [0, 0, 1, 1], [], []>} : vector<128x128xbf16>, vector<128x128xbf16>, vector<128x128xf32> -> vector<128x128xf32>
    %37 = arith.addf %31, %36 : vector<128x128xf32>
    %38 = vector.extract_strided_slice %6 {offsets = [1, 2, 0], sizes = [8, 16, 128], strides = [1, 1, 1]} : vector<10x18x128xbf16> to vector<8x16x128xbf16>
    %39 = vector.shape_cast %38 : vector<8x16x128xbf16> to vector<128x128xbf16>
    %c5 = arith.constant 5 : index
    %c0_19 = arith.constant 0 : index
    %c0_20 = arith.constant 0 : index
    %40 = vector.load %arg3[%c5, %c0_19, %c0_20] : memref<9x128x128xbf16, #tpu.memory_space<vmem>>, vector<1x128x128xbf16>
    %41 = vector.shape_cast %40 : vector<1x128x128xbf16> to vector<128x128xbf16>
    %cst_21 = arith.constant dense<0.000000e+00> : vector<128x128xf32>
    %42 = tpu.matmul %39, %41, %cst_21 {dimension_numbers = #tpu.dot_dimension_numbers<[1], [0], [0], [1], [0, 0, 1, 1], [], []>} : vector<128x128xbf16>, vector<128x128xbf16>, vector<128x128xf32> -> vector<128x128xf32>
    %43 = arith.addf %37, %42 : vector<128x128xf32>
    %44 = vector.extract_strided_slice %6 {offsets = [2, 0, 0], sizes = [8, 16, 128], strides = [1, 1, 1]} : vector<10x18x128xbf16> to vector<8x16x128xbf16>
    %45 = vector.shape_cast %44 : vector<8x16x128xbf16> to vector<128x128xbf16>
    %c6 = arith.constant 6 : index
    %c0_22 = arith.constant 0 : index
    %c0_23 = arith.constant 0 : index
    %46 = vector.load %arg3[%c6, %c0_22, %c0_23] : memref<9x128x128xbf16, #tpu.memory_space<vmem>>, vector<1x128x128xbf16>
    %47 = vector.shape_cast %46 : vector<1x128x128xbf16> to vector<128x128xbf16>
    %cst_24 = arith.constant dense<0.000000e+00> : vector<128x128xf32>
    %48 = tpu.matmul %45, %47, %cst_24 {dimension_numbers = #tpu.dot_dimension_numbers<[1], [0], [0], [1], [0, 0, 1, 1], [], []>} : vector<128x128xbf16>, vector<128x128xbf16>, vector<128x128xf32> -> vector<128x128xf32>
    %49 = arith.addf %43, %48 : vector<128x128xf32>
    %50 = vector.extract_strided_slice %6 {offsets = [2, 1, 0], sizes = [8, 16, 128], strides = [1, 1, 1]} : vector<10x18x128xbf16> to vector<8x16x128xbf16>
    %51 = vector.shape_cast %50 : vector<8x16x128xbf16> to vector<128x128xbf16>
    %c7 = arith.constant 7 : index
    %c0_25 = arith.constant 0 : index
    %c0_26 = arith.constant 0 : index
    %52 = vector.load %arg3[%c7, %c0_25, %c0_26] : memref<9x128x128xbf16, #tpu.memory_space<vmem>>, vector<1x128x128xbf16>
    %53 = vector.shape_cast %52 : vector<1x128x128xbf16> to vector<128x128xbf16>
    %cst_27 = arith.constant dense<0.000000e+00> : vector<128x128xf32>
    %54 = tpu.matmul %51, %53, %cst_27 {dimension_numbers = #tpu.dot_dimension_numbers<[1], [0], [0], [1], [0, 0, 1, 1], [], []>} : vector<128x128xbf16>, vector<128x128xbf16>, vector<128x128xf32> -> vector<128x128xf32>
    %55 = arith.addf %49, %54 : vector<128x128xf32>
    %56 = vector.extract_strided_slice %6 {offsets = [2, 2, 0], sizes = [8, 16, 128], strides = [1, 1, 1]} : vector<10x18x128xbf16> to vector<8x16x128xbf16>
    %57 = vector.shape_cast %56 : vector<8x16x128xbf16> to vector<128x128xbf16>
    %c8 = arith.constant 8 : index
    %c0_28 = arith.constant 0 : index
    %c0_29 = arith.constant 0 : index
    %58 = vector.load %arg3[%c8, %c0_28, %c0_29] : memref<9x128x128xbf16, #tpu.memory_space<vmem>>, vector<1x128x128xbf16>
    %59 = vector.shape_cast %58 : vector<1x128x128xbf16> to vector<128x128xbf16>
    %cst_30 = arith.constant dense<0.000000e+00> : vector<128x128xf32>
    %60 = tpu.matmul %57, %59, %cst_30 {dimension_numbers = #tpu.dot_dimension_numbers<[1], [0], [0], [1], [0, 0, 1, 1], [], []>} : vector<128x128xbf16>, vector<128x128xbf16>, vector<128x128xf32> -> vector<128x128xf32>
    %61 = arith.addf %55, %60 : vector<128x128xf32>
    %cst_31 = arith.constant dense<0.000000e+00> : vector<128xf32>
    %62 = vector.multi_reduction <add>, %61, %cst_31 [0] : vector<128x128xf32> to vector<128xf32>
    %63 = vector.shape_cast %62 : vector<128xf32> to vector<1x128xf32>
    %64 = arith.mulf %61, %61 : vector<128x128xf32>
    %cst_32 = arith.constant dense<0.000000e+00> : vector<128xf32>
    %65 = vector.multi_reduction <add>, %64, %cst_32 [0] : vector<128x128xf32> to vector<128xf32>
    %66 = vector.shape_cast %65 : vector<128xf32> to vector<1x128xf32>
    %c0_33 = arith.constant 0 : index
    %c0_34 = arith.constant 0 : index
    %c0_35 = arith.constant 0 : index
    %67 = vector.load %arg5[%c0_33, %c0_34, %c0_35] : memref<1x8x128xf32, #tpu.memory_space<vmem>>, vector<1x8x128xf32>
    %68 = vector.shape_cast %67 : vector<1x8x128xf32> to vector<8x128xf32>
    %cst_36 = arith.constant 0.000000e+00 : f32
    %69 = vector.broadcast %cst_36 : f32 to vector<6x128xf32>
    %70 = tpu.concatenate %63, %66, %69 in 0 : vector<1x128xf32>, vector<1x128xf32>, vector<6x128xf32> -> vector<8x128xf32>
    %71 = arith.addf %68, %70 : vector<8x128xf32>
    %c0_37 = arith.constant 0 : index
    %c0_38 = arith.constant 0 : index
    %c0_39 = arith.constant 0 : index
    %72 = vector.load %arg5[%c0_37, %c0_38, %c0_39] : memref<1x8x128xf32, #tpu.memory_space<vmem>>, vector<1x8x128xf32>
    %73 = vector.shape_cast %72 : vector<1x8x128xf32> to vector<8x128xf32>
    %74 = vector.shape_cast %71 : vector<8x128xf32> to vector<1x8x128xf32>
    tpu.vector_store %arg5[%c0_37, %c0_38, %c0_39], %74 {strides = array<i32>} : memref<1x8x128xf32, #tpu.memory_space<vmem>>, vector<1x8x128xf32>,
    %75 = vector.shape_cast %61 : vector<128x128xf32> to vector<8x16x128xf32>
    %76 = arith.truncf %75 : vector<8x16x128xf32> to vector<8x16x128xbf16>
    %cst_40 = arith.constant 0.000000e+00 : bf16
    %77 = vector.broadcast %cst_40 : bf16 to vector<8x1x128xbf16>
    %78 = tpu.concatenate %77, %76, %77 in 1 : vector<8x1x128xbf16>, vector<8x16x128xbf16>, vector<8x1x128xbf16> -> vector<8x18x128xbf16>
    %c1_i32 = arith.constant 1 : i32
    %79 = arith.addi %3, %c1_i32 : i32
    %c0_41 = arith.constant 0 : index
    %80 = arith.index_cast %79 : i32 to index
    %c0_42 = arith.constant 0 : index
    %c0_43 = arith.constant 0 : index
    %81 = vector.load %arg4[%c0_41, %80, %c0_42, %c0_43] : memref<1x18x18x128xbf16, #tpu.memory_space<vmem>>, vector<1x8x18x128xbf16>
    %82 = vector.shape_cast %81 : vector<1x8x18x128xbf16> to vector<8x18x128xbf16>
    %83 = vector.shape_cast %78 : vector<8x18x128xbf16> to vector<1x8x18x128xbf16>
    tpu.vector_store %arg4[%c0_41, %80, %c0_42, %c0_43], %83 {strides = array<i32>} : memref<1x18x18x128xbf16, #tpu.memory_space<vmem>>, vector<1x8x18x128xbf16>,
    return
  }
  func.func @transform_0(%arg0: i32, %arg1: i32) -> (i32, i32, i32, i32) {
    %c0_i32 = arith.constant 0 : i32
    %c0_i32_0 = arith.constant 0 : i32
    %c0_i32_1 = arith.constant 0 : i32
    %c0_i32_2 = arith.constant 0 : i32
    return %arg0, %c0_i32, %c0_i32_0, %c0_i32_1 : i32, i32, i32, i32
  }
  func.func @transform_1(%arg0: i32, %arg1: i32) -> (i32, i32, i32) {
    %c0_i32 = arith.constant 0 : i32
    %c0_i32_0 = arith.constant 0 : i32
    %c0_i32_1 = arith.constant 0 : i32
    %c0_i32_2 = arith.constant 0 : i32
    return %c0_i32, %c0_i32_0, %c0_i32_1 : i32, i32, i32
  }
  func.func @transform_2(%arg0: i32, %arg1: i32) -> (i32, i32, i32, i32) {
    %c0_i32 = arith.constant 0 : i32
    %c0_i32_0 = arith.constant 0 : i32
    %c0_i32_1 = arith.constant 0 : i32
    %c0_i32_2 = arith.constant 0 : i32
    return %arg0, %c0_i32, %c0_i32_0, %c0_i32_1 : i32, i32, i32, i32
  }
  func.func @transform_3(%arg0: i32, %arg1: i32) -> (i32, i32, i32) {
    %c0_i32 = arith.constant 0 : i32
    %c0_i32_0 = arith.constant 0 : i32
    %c0_i32_1 = arith.constant 0 : i32
    return %arg0, %c0_i32, %c0_i32_0 : i32, i32, i32
  }
}

module attributes {stable_mosaic.version = 11 : i64} {
  func.func @kernel(%arg0: i32, %arg1: i32, %arg2: memref<1x18x18x128xbf16, #tpu.memory_space<vmem>>, %arg3: memref<1x128xf32, #tpu.memory_space<vmem>>, %arg4: memref<1x128xf32, #tpu.memory_space<vmem>>, %arg5: memref<1x1x128x128xf32, #tpu.memory_space<vmem>>) attributes {dimension_semantics = [#tpu.dimension_semantics<parallel>, #tpu.dimension_semantics<arbitrary>], iteration_bounds = array<i64: 2, 2>, scalar_prefetch = 0 : i64, scratch_operands = 0 : i64, tpu.core_type = #tpu.core_type<tc>, window_params = [{transform_indices = @transform_0, window_bounds = array<i64: 1, 18, 18, 128>}, {pipeline_mode = #tpu.pipeline_mode<synchronous>, transform_indices = @transform_1, window_bounds = array<i64: 1, 128>}, {pipeline_mode = #tpu.pipeline_mode<synchronous>, transform_indices = @transform_2, window_bounds = array<i64: 1, 128>}, {transform_indices = @transform_3, window_bounds = array<i64: 1, 1, 128, 128>}]} {
    %c8_i32 = arith.constant 8 : i32
    %0 = arith.muli %arg1, %c8_i32 : i32
    %c1_i32 = arith.constant 1 : i32
    %1 = arith.addi %0, %c1_i32 : i32
    %c0 = arith.constant 0 : index
    %2 = arith.index_cast %1 : i32 to index
    %c0_0 = arith.constant 0 : index
    %c0_1 = arith.constant 0 : index
    %3 = vector.load %arg2[%c0, %2, %c0_0, %c0_1] : memref<1x18x18x128xbf16, #tpu.memory_space<vmem>>, vector<1x8x18x128xbf16>
    %4 = vector.shape_cast %3 : vector<1x8x18x128xbf16> to vector<8x18x128xbf16>
    %5 = vector.extract_strided_slice %4 {offsets = [0, 1, 0], sizes = [8, 16, 128], strides = [1, 1, 1]} : vector<8x18x128xbf16> to vector<8x16x128xbf16>
    %6 = arith.extf %5 : vector<8x16x128xbf16> to vector<8x16x128xf32>
    %c0_2 = arith.constant 0 : index
    %c0_3 = arith.constant 0 : index
    %7 = vector.load %arg3[%c0_2, %c0_3] : memref<1x128xf32, #tpu.memory_space<vmem>>, vector<1x128xf32>
    %8 = vector.shape_cast %7 : vector<1x128xf32> to vector<1x1x128xf32>
    %9 = vector.broadcast %8 : vector<1x1x128xf32> to vector<8x16x128xf32>
    %10 = arith.mulf %6, %9 : vector<8x16x128xf32>
    %c0_4 = arith.constant 0 : index
    %c0_5 = arith.constant 0 : index
    %11 = vector.load %arg4[%c0_4, %c0_5] : memref<1x128xf32, #tpu.memory_space<vmem>>, vector<1x128xf32>
    %12 = vector.shape_cast %11 : vector<1x128xf32> to vector<1x1x128xf32>
    %13 = vector.broadcast %12 : vector<1x1x128xf32> to vector<8x16x128xf32>
    %14 = arith.addf %10, %13 : vector<8x16x128xf32>
    %cst = arith.constant 0.000000e+00 : f32
    %15 = vector.broadcast %cst : f32 to vector<8x16x128xf32>
    %16 = arith.maximumf %14, %15 : vector<8x16x128xf32>
    %17 = vector.shape_cast %16 : vector<8x16x128xf32> to vector<128x128xf32>
    %c0_6 = arith.constant 0 : index
    %c0_7 = arith.constant 0 : index
    %c0_8 = arith.constant 0 : index
    %c0_9 = arith.constant 0 : index
    %18 = vector.load %arg5[%c0_6, %c0_7, %c0_8, %c0_9] : memref<1x1x128x128xf32, #tpu.memory_space<vmem>>, vector<1x1x128x128xf32>
    %19 = vector.shape_cast %18 : vector<1x1x128x128xf32> to vector<128x128xf32>
    %20 = vector.shape_cast %17 : vector<128x128xf32> to vector<1x1x128x128xf32>
    tpu.vector_store %arg5[%c0_6, %c0_7, %c0_8, %c0_9], %20 {strides = array<i32>} : memref<1x1x128x128xf32, #tpu.memory_space<vmem>>, vector<1x1x128x128xf32>,
    return
  }
  func.func @transform_0(%arg0: i32, %arg1: i32) -> (i32, i32, i32, i32) {
    %c0_i32 = arith.constant 0 : i32
    %c0_i32_0 = arith.constant 0 : i32
    %c0_i32_1 = arith.constant 0 : i32
    %c0_i32_2 = arith.constant 0 : i32
    return %arg0, %c0_i32, %c0_i32_0, %c0_i32_1 : i32, i32, i32, i32
  }
  func.func @transform_1(%arg0: i32, %arg1: i32) -> (i32, i32) {
    %c0_i32 = arith.constant 0 : i32
    %c0_i32_0 = arith.constant 0 : i32
    %c0_i32_1 = arith.constant 0 : i32
    return %c0_i32, %c0_i32_0 : i32, i32
  }
  func.func @transform_2(%arg0: i32, %arg1: i32) -> (i32, i32) {
    %c0_i32 = arith.constant 0 : i32
    %c0_i32_0 = arith.constant 0 : i32
    %c0_i32_1 = arith.constant 0 : i32
    return %c0_i32, %c0_i32_0 : i32, i32
  }
  func.func @transform_3(%arg0: i32, %arg1: i32) -> (i32, i32, i32, i32) {
    %c0_i32 = arith.constant 0 : i32
    %c0_i32_0 = arith.constant 0 : i32
    %c0_i32_1 = arith.constant 0 : i32
    return %arg0, %arg1, %c0_i32, %c0_i32_0 : i32, i32, i32, i32
  }
}

module attributes {stable_mosaic.version = 11 : i64} {
  func.func @kernel(%arg0: i32, %arg1: i32, %arg2: memref<1x18x18x128xbf16, #tpu.memory_space<vmem>>, %arg3: memref<1x128xf32, #tpu.memory_space<vmem>>, %arg4: memref<1x128xf32, #tpu.memory_space<vmem>>, %arg5: memref<9x128x128xbf16, #tpu.memory_space<vmem>>, %arg6: memref<1x18x18x128xbf16, #tpu.memory_space<vmem>>, %arg7: memref<1x8x128xf32, #tpu.memory_space<vmem>>) attributes {dimension_semantics = [#tpu.dimension_semantics<parallel>, #tpu.dimension_semantics<arbitrary>], iteration_bounds = array<i64: 2, 2>, scalar_prefetch = 0 : i64, scratch_operands = 0 : i64, tpu.core_type = #tpu.core_type<tc>, window_params = [{transform_indices = @transform_0, window_bounds = array<i64: 1, 18, 18, 128>}, {pipeline_mode = #tpu.pipeline_mode<synchronous>, transform_indices = @transform_1, window_bounds = array<i64: 1, 128>}, {pipeline_mode = #tpu.pipeline_mode<synchronous>, transform_indices = @transform_2, window_bounds = array<i64: 1, 128>}, {pipeline_mode = #tpu.pipeline_mode<synchronous>, transform_indices = @transform_3, window_bounds = array<i64: 9, 128, 128>}, {transform_indices = @transform_4, window_bounds = array<i64: 1, 18, 18, 128>}, {transform_indices = @transform_5, window_bounds = array<i64: 1, 8, 128>}]} {
    %c0_i32 = arith.constant 0 : i32
    %0 = arith.cmpi eq, %arg1, %c0_i32 : i32
    %1 = arith.extui %0 : i1 to i32
    %c0_i32_0 = arith.constant 0 : i32
    %2 = arith.cmpi ne, %1, %c0_i32_0 : i32
    scf.if %2 {
      %cst_53 = arith.constant 0.000000e+00 : bf16
      %118 = vector.broadcast %cst_53 : bf16 to vector<18x18x128xbf16>
      %c0_54 = arith.constant 0 : index
      %c0_55 = arith.constant 0 : index
      %c0_56 = arith.constant 0 : index
      %c0_57 = arith.constant 0 : index
      %119 = vector.load %arg6[%c0_54, %c0_55, %c0_56, %c0_57] : memref<1x18x18x128xbf16, #tpu.memory_space<vmem>>, vector<1x18x18x128xbf16>
      %120 = vector.shape_cast %119 : vector<1x18x18x128xbf16> to vector<18x18x128xbf16>
      %121 = vector.shape_cast %118 : vector<18x18x128xbf16> to vector<1x18x18x128xbf16>
      tpu.vector_store %arg6[%c0_54, %c0_55, %c0_56, %c0_57], %121 {strides = array<i32>} : memref<1x18x18x128xbf16, #tpu.memory_space<vmem>>, vector<1x18x18x128xbf16>,
      %cst_58 = arith.constant 0.000000e+00 : f32
      %122 = vector.broadcast %cst_58 : f32 to vector<8x128xf32>
      %c0_59 = arith.constant 0 : index
      %c0_60 = arith.constant 0 : index
      %c0_61 = arith.constant 0 : index
      %123 = vector.load %arg7[%c0_59, %c0_60, %c0_61] : memref<1x8x128xf32, #tpu.memory_space<vmem>>, vector<1x8x128xf32>
      %124 = vector.shape_cast %123 : vector<1x8x128xf32> to vector<8x128xf32>
      %125 = vector.shape_cast %122 : vector<8x128xf32> to vector<1x8x128xf32>
      tpu.vector_store %arg7[%c0_59, %c0_60, %c0_61], %125 {strides = array<i32>} : memref<1x8x128xf32, #tpu.memory_space<vmem>>, vector<1x8x128xf32>,
    } else {
    }
    %c8_i32 = arith.constant 8 : i32
    %3 = arith.muli %arg1, %c8_i32 : i32
    %c0 = arith.constant 0 : index
    %4 = arith.index_cast %3 : i32 to index
    %c0_1 = arith.constant 0 : index
    %c0_2 = arith.constant 0 : index
    %5 = vector.load %arg2[%c0, %4, %c0_1, %c0_2] : memref<1x18x18x128xbf16, #tpu.memory_space<vmem>>, vector<1x10x18x128xbf16>
    %6 = vector.shape_cast %5 : vector<1x10x18x128xbf16> to vector<10x18x128xbf16>
    %7 = arith.extf %6 : vector<10x18x128xbf16> to vector<10x18x128xf32>
    %c0_3 = arith.constant 0 : index
    %c0_4 = arith.constant 0 : index
    %8 = vector.load %arg3[%c0_3, %c0_4] : memref<1x128xf32, #tpu.memory_space<vmem>>, vector<1x128xf32>
    %9 = vector.shape_cast %8 : vector<1x128xf32> to vector<1x1x128xf32>
    %10 = vector.broadcast %9 : vector<1x1x128xf32> to vector<10x18x128xf32>
    %11 = arith.mulf %7, %10 : vector<10x18x128xf32>
    %c0_5 = arith.constant 0 : index
    %c0_6 = arith.constant 0 : index
    %12 = vector.load %arg4[%c0_5, %c0_6] : memref<1x128xf32, #tpu.memory_space<vmem>>, vector<1x128xf32>
    %13 = vector.shape_cast %12 : vector<1x128xf32> to vector<1x1x128xf32>
    %14 = vector.broadcast %13 : vector<1x1x128xf32> to vector<10x18x128xf32>
    %15 = arith.addf %11, %14 : vector<10x18x128xf32>
    %cst = arith.constant 0.000000e+00 : f32
    %16 = vector.broadcast %cst : f32 to vector<10x18x128xf32>
    %17 = arith.maximumf %15, %16 : vector<10x18x128xf32>
    %18 = tpu.iota {dimensions = array<i32: 1>} : vector<1x18x1xi32>
    %19 = tpu.iota {dimensions = array<i32: 0>} : vector<10x1x1xi32>
    %20 = vector.broadcast %3 : i32 to vector<10x1x1xi32>
    %21 = arith.addi %19, %20 : vector<10x1x1xi32>
    %c1_i32 = arith.constant 1 : i32
    %22 = vector.broadcast %c1_i32 : i32 to vector<1x18x1xi32>
    %23 = arith.cmpi sge, %18, %22 : vector<1x18x1xi32>
    %c16_i32 = arith.constant 16 : i32
    %24 = vector.broadcast %c16_i32 : i32 to vector<1x18x1xi32>
    %25 = arith.cmpi sle, %18, %24 : vector<1x18x1xi32>
    %26 = arith.andi %23, %25 : vector<1x18x1xi1>
    %c1_i32_7 = arith.constant 1 : i32
    %27 = vector.broadcast %c1_i32_7 : i32 to vector<10x1x1xi32>
    %28 = arith.cmpi sge, %21, %27 : vector<10x1x1xi32>
    %29 = vector.broadcast %26 : vector<1x18x1xi1> to vector<10x18x1xi1>
    %30 = vector.broadcast %28 : vector<10x1x1xi1> to vector<10x18x1xi1>
    %31 = arith.andi %29, %30 : vector<10x18x1xi1>
    %c16_i32_8 = arith.constant 16 : i32
    %32 = vector.broadcast %c16_i32_8 : i32 to vector<10x1x1xi32>
    %33 = arith.cmpi sle, %21, %32 : vector<10x1x1xi32>
    %34 = vector.broadcast %33 : vector<10x1x1xi1> to vector<10x18x1xi1>
    %35 = arith.andi %31, %34 : vector<10x18x1xi1>
    %cst_9 = arith.constant 0.000000e+00 : f32
    %36 = vector.shape_cast %35 : vector<10x18x1xi1> to vector<10x18x1xi1>
    %37 = vector.broadcast %36 : vector<10x18x1xi1> to vector<10x18x128xi1>
    %38 = vector.broadcast %cst_9 : f32 to vector<10x18x128xf32>
    %39 = arith.select %37, %17, %38 : vector<10x18x128xi1>, vector<10x18x128xf32>
    %40 = arith.truncf %39 : vector<10x18x128xf32> to vector<10x18x128xbf16>
    %cst_10 = arith.constant 0.000000e+00 : f32
    %41 = vector.broadcast %cst_10 : f32 to vector<128x128xf32>
    %42 = vector.extract_strided_slice %40 {offsets = [0, 0, 0], sizes = [8, 16, 128], strides = [1, 1, 1]} : vector<10x18x128xbf16> to vector<8x16x128xbf16>
    %43 = vector.shape_cast %42 : vector<8x16x128xbf16> to vector<128x128xbf16>
    %c0_11 = arith.constant 0 : index
    %c0_12 = arith.constant 0 : index
    %c0_13 = arith.constant 0 : index
    %44 = vector.load %arg5[%c0_11, %c0_12, %c0_13] : memref<9x128x128xbf16, #tpu.memory_space<vmem>>, vector<1x128x128xbf16>
    %45 = vector.shape_cast %44 : vector<1x128x128xbf16> to vector<128x128xbf16>
    %cst_14 = arith.constant dense<0.000000e+00> : vector<128x128xf32>
    %46 = tpu.matmul %43, %45, %cst_14 {dimension_numbers = #tpu.dot_dimension_numbers<[1], [0], [0], [1], [0, 0, 1, 1], [], []>} : vector<128x128xbf16>, vector<128x128xbf16>, vector<128x128xf32> -> vector<128x128xf32>
    %47 = arith.addf %41, %46 : vector<128x128xf32>
    %48 = vector.extract_strided_slice %40 {offsets = [0, 1, 0], sizes = [8, 16, 128], strides = [1, 1, 1]} : vector<10x18x128xbf16> to vector<8x16x128xbf16>
    %49 = vector.shape_cast %48 : vector<8x16x128xbf16> to vector<128x128xbf16>
    %c1 = arith.constant 1 : index
    %c0_15 = arith.constant 0 : index
    %c0_16 = arith.constant 0 : index
    %50 = vector.load %arg5[%c1, %c0_15, %c0_16] : memref<9x128x128xbf16, #tpu.memory_space<vmem>>, vector<1x128x128xbf16>
    %51 = vector.shape_cast %50 : vector<1x128x128xbf16> to vector<128x128xbf16>
    %cst_17 = arith.constant dense<0.000000e+00> : vector<128x128xf32>
    %52 = tpu.matmul %49, %51, %cst_17 {dimension_numbers = #tpu.dot_dimension_numbers<[1], [0], [0], [1], [0, 0, 1, 1], [], []>} : vector<128x128xbf16>, vector<128x128xbf16>, vector<128x128xf32> -> vector<128x128xf32>
    %53 = arith.addf %47, %52 : vector<128x128xf32>
    %54 = vector.extract_strided_slice %40 {offsets = [0, 2, 0], sizes = [8, 16, 128], strides = [1, 1, 1]} : vector<10x18x128xbf16> to vector<8x16x128xbf16>
    %55 = vector.shape_cast %54 : vector<8x16x128xbf16> to vector<128x128xbf16>
    %c2 = arith.constant 2 : index
    %c0_18 = arith.constant 0 : index
    %c0_19 = arith.constant 0 : index
    %56 = vector.load %arg5[%c2, %c0_18, %c0_19] : memref<9x128x128xbf16, #tpu.memory_space<vmem>>, vector<1x128x128xbf16>
    %57 = vector.shape_cast %56 : vector<1x128x128xbf16> to vector<128x128xbf16>
    %cst_20 = arith.constant dense<0.000000e+00> : vector<128x128xf32>
    %58 = tpu.matmul %55, %57, %cst_20 {dimension_numbers = #tpu.dot_dimension_numbers<[1], [0], [0], [1], [0, 0, 1, 1], [], []>} : vector<128x128xbf16>, vector<128x128xbf16>, vector<128x128xf32> -> vector<128x128xf32>
    %59 = arith.addf %53, %58 : vector<128x128xf32>
    %60 = vector.extract_strided_slice %40 {offsets = [1, 0, 0], sizes = [8, 16, 128], strides = [1, 1, 1]} : vector<10x18x128xbf16> to vector<8x16x128xbf16>
    %61 = vector.shape_cast %60 : vector<8x16x128xbf16> to vector<128x128xbf16>
    %c3 = arith.constant 3 : index
    %c0_21 = arith.constant 0 : index
    %c0_22 = arith.constant 0 : index
    %62 = vector.load %arg5[%c3, %c0_21, %c0_22] : memref<9x128x128xbf16, #tpu.memory_space<vmem>>, vector<1x128x128xbf16>
    %63 = vector.shape_cast %62 : vector<1x128x128xbf16> to vector<128x128xbf16>
    %cst_23 = arith.constant dense<0.000000e+00> : vector<128x128xf32>
    %64 = tpu.matmul %61, %63, %cst_23 {dimension_numbers = #tpu.dot_dimension_numbers<[1], [0], [0], [1], [0, 0, 1, 1], [], []>} : vector<128x128xbf16>, vector<128x128xbf16>, vector<128x128xf32> -> vector<128x128xf32>
    %65 = arith.addf %59, %64 : vector<128x128xf32>
    %66 = vector.extract_strided_slice %40 {offsets = [1, 1, 0], sizes = [8, 16, 128], strides = [1, 1, 1]} : vector<10x18x128xbf16> to vector<8x16x128xbf16>
    %67 = vector.shape_cast %66 : vector<8x16x128xbf16> to vector<128x128xbf16>
    %c4 = arith.constant 4 : index
    %c0_24 = arith.constant 0 : index
    %c0_25 = arith.constant 0 : index
    %68 = vector.load %arg5[%c4, %c0_24, %c0_25] : memref<9x128x128xbf16, #tpu.memory_space<vmem>>, vector<1x128x128xbf16>
    %69 = vector.shape_cast %68 : vector<1x128x128xbf16> to vector<128x128xbf16>
    %cst_26 = arith.constant dense<0.000000e+00> : vector<128x128xf32>
    %70 = tpu.matmul %67, %69, %cst_26 {dimension_numbers = #tpu.dot_dimension_numbers<[1], [0], [0], [1], [0, 0, 1, 1], [], []>} : vector<128x128xbf16>, vector<128x128xbf16>, vector<128x128xf32> -> vector<128x128xf32>
    %71 = arith.addf %65, %70 : vector<128x128xf32>
    %72 = vector.extract_strided_slice %40 {offsets = [1, 2, 0], sizes = [8, 16, 128], strides = [1, 1, 1]} : vector<10x18x128xbf16> to vector<8x16x128xbf16>
    %73 = vector.shape_cast %72 : vector<8x16x128xbf16> to vector<128x128xbf16>
    %c5 = arith.constant 5 : index
    %c0_27 = arith.constant 0 : index
    %c0_28 = arith.constant 0 : index
    %74 = vector.load %arg5[%c5, %c0_27, %c0_28] : memref<9x128x128xbf16, #tpu.memory_space<vmem>>, vector<1x128x128xbf16>
    %75 = vector.shape_cast %74 : vector<1x128x128xbf16> to vector<128x128xbf16>
    %cst_29 = arith.constant dense<0.000000e+00> : vector<128x128xf32>
    %76 = tpu.matmul %73, %75, %cst_29 {dimension_numbers = #tpu.dot_dimension_numbers<[1], [0], [0], [1], [0, 0, 1, 1], [], []>} : vector<128x128xbf16>, vector<128x128xbf16>, vector<128x128xf32> -> vector<128x128xf32>
    %77 = arith.addf %71, %76 : vector<128x128xf32>
    %78 = vector.extract_strided_slice %40 {offsets = [2, 0, 0], sizes = [8, 16, 128], strides = [1, 1, 1]} : vector<10x18x128xbf16> to vector<8x16x128xbf16>
    %79 = vector.shape_cast %78 : vector<8x16x128xbf16> to vector<128x128xbf16>
    %c6 = arith.constant 6 : index
    %c0_30 = arith.constant 0 : index
    %c0_31 = arith.constant 0 : index
    %80 = vector.load %arg5[%c6, %c0_30, %c0_31] : memref<9x128x128xbf16, #tpu.memory_space<vmem>>, vector<1x128x128xbf16>
    %81 = vector.shape_cast %80 : vector<1x128x128xbf16> to vector<128x128xbf16>
    %cst_32 = arith.constant dense<0.000000e+00> : vector<128x128xf32>
    %82 = tpu.matmul %79, %81, %cst_32 {dimension_numbers = #tpu.dot_dimension_numbers<[1], [0], [0], [1], [0, 0, 1, 1], [], []>} : vector<128x128xbf16>, vector<128x128xbf16>, vector<128x128xf32> -> vector<128x128xf32>
    %83 = arith.addf %77, %82 : vector<128x128xf32>
    %84 = vector.extract_strided_slice %40 {offsets = [2, 1, 0], sizes = [8, 16, 128], strides = [1, 1, 1]} : vector<10x18x128xbf16> to vector<8x16x128xbf16>
    %85 = vector.shape_cast %84 : vector<8x16x128xbf16> to vector<128x128xbf16>
    %c7 = arith.constant 7 : index
    %c0_33 = arith.constant 0 : index
    %c0_34 = arith.constant 0 : index
    %86 = vector.load %arg5[%c7, %c0_33, %c0_34] : memref<9x128x128xbf16, #tpu.memory_space<vmem>>, vector<1x128x128xbf16>
    %87 = vector.shape_cast %86 : vector<1x128x128xbf16> to vector<128x128xbf16>
    %cst_35 = arith.constant dense<0.000000e+00> : vector<128x128xf32>
    %88 = tpu.matmul %85, %87, %cst_35 {dimension_numbers = #tpu.dot_dimension_numbers<[1], [0], [0], [1], [0, 0, 1, 1], [], []>} : vector<128x128xbf16>, vector<128x128xbf16>, vector<128x128xf32> -> vector<128x128xf32>
    %89 = arith.addf %83, %88 : vector<128x128xf32>
    %90 = vector.extract_strided_slice %40 {offsets = [2, 2, 0], sizes = [8, 16, 128], strides = [1, 1, 1]} : vector<10x18x128xbf16> to vector<8x16x128xbf16>
    %91 = vector.shape_cast %90 : vector<8x16x128xbf16> to vector<128x128xbf16>
    %c8 = arith.constant 8 : index
    %c0_36 = arith.constant 0 : index
    %c0_37 = arith.constant 0 : index
    %92 = vector.load %arg5[%c8, %c0_36, %c0_37] : memref<9x128x128xbf16, #tpu.memory_space<vmem>>, vector<1x128x128xbf16>
    %93 = vector.shape_cast %92 : vector<1x128x128xbf16> to vector<128x128xbf16>
    %cst_38 = arith.constant dense<0.000000e+00> : vector<128x128xf32>
    %94 = tpu.matmul %91, %93, %cst_38 {dimension_numbers = #tpu.dot_dimension_numbers<[1], [0], [0], [1], [0, 0, 1, 1], [], []>} : vector<128x128xbf16>, vector<128x128xbf16>, vector<128x128xf32> -> vector<128x128xf32>
    %95 = arith.addf %89, %94 : vector<128x128xf32>
    %cst_39 = arith.constant dense<0.000000e+00> : vector<128xf32>
    %96 = vector.multi_reduction <add>, %95, %cst_39 [0] : vector<128x128xf32> to vector<128xf32>
    %97 = vector.shape_cast %96 : vector<128xf32> to vector<1x128xf32>
    %98 = arith.mulf %95, %95 : vector<128x128xf32>
    %cst_40 = arith.constant dense<0.000000e+00> : vector<128xf32>
    %99 = vector.multi_reduction <add>, %98, %cst_40 [0] : vector<128x128xf32> to vector<128xf32>
    %100 = vector.shape_cast %99 : vector<128xf32> to vector<1x128xf32>
    %c0_41 = arith.constant 0 : index
    %c0_42 = arith.constant 0 : index
    %c0_43 = arith.constant 0 : index
    %101 = vector.load %arg7[%c0_41, %c0_42, %c0_43] : memref<1x8x128xf32, #tpu.memory_space<vmem>>, vector<1x8x128xf32>
    %102 = vector.shape_cast %101 : vector<1x8x128xf32> to vector<8x128xf32>
    %cst_44 = arith.constant 0.000000e+00 : f32
    %103 = vector.broadcast %cst_44 : f32 to vector<6x128xf32>
    %104 = tpu.concatenate %97, %100, %103 in 0 : vector<1x128xf32>, vector<1x128xf32>, vector<6x128xf32> -> vector<8x128xf32>
    %105 = arith.addf %102, %104 : vector<8x128xf32>
    %c0_45 = arith.constant 0 : index
    %c0_46 = arith.constant 0 : index
    %c0_47 = arith.constant 0 : index
    %106 = vector.load %arg7[%c0_45, %c0_46, %c0_47] : memref<1x8x128xf32, #tpu.memory_space<vmem>>, vector<1x8x128xf32>
    %107 = vector.shape_cast %106 : vector<1x8x128xf32> to vector<8x128xf32>
    %108 = vector.shape_cast %105 : vector<8x128xf32> to vector<1x8x128xf32>
    tpu.vector_store %arg7[%c0_45, %c0_46, %c0_47], %108 {strides = array<i32>} : memref<1x8x128xf32, #tpu.memory_space<vmem>>, vector<1x8x128xf32>,
    %109 = vector.shape_cast %95 : vector<128x128xf32> to vector<8x16x128xf32>
    %110 = arith.truncf %109 : vector<8x16x128xf32> to vector<8x16x128xbf16>
    %cst_48 = arith.constant 0.000000e+00 : bf16
    %111 = vector.broadcast %cst_48 : bf16 to vector<8x1x128xbf16>
    %112 = tpu.concatenate %111, %110, %111 in 1 : vector<8x1x128xbf16>, vector<8x16x128xbf16>, vector<8x1x128xbf16> -> vector<8x18x128xbf16>
    %c1_i32_49 = arith.constant 1 : i32
    %113 = arith.addi %3, %c1_i32_49 : i32
    %c0_50 = arith.constant 0 : index
    %114 = arith.index_cast %113 : i32 to index
    %c0_51 = arith.constant 0 : index
    %c0_52 = arith.constant 0 : index
    %115 = vector.load %arg6[%c0_50, %114, %c0_51, %c0_52] : memref<1x18x18x128xbf16, #tpu.memory_space<vmem>>, vector<1x8x18x128xbf16>
    %116 = vector.shape_cast %115 : vector<1x8x18x128xbf16> to vector<8x18x128xbf16>
    %117 = vector.shape_cast %112 : vector<8x18x128xbf16> to vector<1x8x18x128xbf16>
    tpu.vector_store %arg6[%c0_50, %114, %c0_51, %c0_52], %117 {strides = array<i32>} : memref<1x18x18x128xbf16, #tpu.memory_space<vmem>>, vector<1x8x18x128xbf16>,
    return
  }
  func.func @transform_0(%arg0: i32, %arg1: i32) -> (i32, i32, i32, i32) {
    %c0_i32 = arith.constant 0 : i32
    %c0_i32_0 = arith.constant 0 : i32
    %c0_i32_1 = arith.constant 0 : i32
    %c0_i32_2 = arith.constant 0 : i32
    return %arg0, %c0_i32, %c0_i32_0, %c0_i32_1 : i32, i32, i32, i32
  }
  func.func @transform_1(%arg0: i32, %arg1: i32) -> (i32, i32) {
    %c0_i32 = arith.constant 0 : i32
    %c0_i32_0 = arith.constant 0 : i32
    %c0_i32_1 = arith.constant 0 : i32
    return %c0_i32, %c0_i32_0 : i32, i32
  }
  func.func @transform_2(%arg0: i32, %arg1: i32) -> (i32, i32) {
    %c0_i32 = arith.constant 0 : i32
    %c0_i32_0 = arith.constant 0 : i32
    %c0_i32_1 = arith.constant 0 : i32
    return %c0_i32, %c0_i32_0 : i32, i32
  }
  func.func @transform_3(%arg0: i32, %arg1: i32) -> (i32, i32, i32) {
    %c0_i32 = arith.constant 0 : i32
    %c0_i32_0 = arith.constant 0 : i32
    %c0_i32_1 = arith.constant 0 : i32
    %c0_i32_2 = arith.constant 0 : i32
    return %c0_i32, %c0_i32_0, %c0_i32_1 : i32, i32, i32
  }
  func.func @transform_4(%arg0: i32, %arg1: i32) -> (i32, i32, i32, i32) {
    %c0_i32 = arith.constant 0 : i32
    %c0_i32_0 = arith.constant 0 : i32
    %c0_i32_1 = arith.constant 0 : i32
    %c0_i32_2 = arith.constant 0 : i32
    return %arg0, %c0_i32, %c0_i32_0, %c0_i32_1 : i32, i32, i32, i32
  }
  func.func @transform_5(%arg0: i32, %arg1: i32) -> (i32, i32, i32) {
    %c0_i32 = arith.constant 0 : i32
    %c0_i32_0 = arith.constant 0 : i32
    %c0_i32_1 = arith.constant 0 : i32
    return %arg0, %c0_i32, %c0_i32_0 : i32, i32, i32
  }
}

</mosaic_0001>

<llo_original>
// kernel: double_conv.5
$region0: #{double_conv.5}
  #allocation0 [shape = 'u32[]', space=smem, size = 0x4, offset = 0x4, fixed_abs, tag = 'smem constant byte address 0x4 - core index']
  #allocation1 [shape = 'u32[144,128]{1,0:T(1,128)}', space=vmem, size = 0x12000, scoped, tag = 'internal scratch']
  %s0 = inlined_call_operand.vmem [shape: bf16[2,18,18,128], index: 0, kind: input, shape index: {}]
  %s1 = inlined_call_operand.vmem [shape: f32[1,128], index: 1, kind: input, shape index: {}]
  %s2 = inlined_call_operand.vmem [shape: f32[1,128], index: 2, kind: input, shape index: {}]
  %s3 = inlined_call_operand.vmem [shape: f32[2,2,128,128], index: 3, kind: output, shape index: {}]
  %s4 = sld [smem:[#allocation0]]
  $region45: #{double_conv.5} parent=0
    _
  %s6 = ssub.s32 1, %s4
  %s7 = scalar_select 0, %s6, %s4
  loop: start=0, step=1, limit=6
  $region2: #{double_conv.5} parent=0 // loop_pre_header
    _
  $region3: #{double_conv.5} parent=0 // loop_header
    %s9 = sphi 0, %s13
    %p10 = scmp.ge.s32.totalorder %s9, 6
    %s16 = sphi 0, %s28
    %s17 = sphi 0, %s24
    %s18 = sphi 0, %s16
    %s19 = sphi 0, %s17
    %s20 = sphi 0, %s18
    %s21 = sphi 0, %s19
    %s31 = sphi 0, %s33
    %s34 = sphi 0, %s31
    %s35 = sphi 0, %s34
    %s51 = sphi 0, %s35
    %s55 = sphi 0, %s55
    %s57 = sphi 0, %s55
    %s58 = sphi 0, %s57
    %s72 = sphi 0, %s58
    %s76 = sphi 0, %s76
    %s78 = sphi 0, %s76
    %s79 = sphi 0, %s78
    %s93 = sphi 0, %s79
    %s101 = sphi 0, %s103
    %s104 = sphi 0, %s101
    %s105 = sphi 0, %s104
    %s121 = sphi 0, %s105
  $region4: #{double_conv.5} parent=0 // loop_header_branch
    %12 = sbr.rel (%p10) target = $region8
  $region5: #{double_conv.5} parent=0 // loop_body
    %s14 = ssub.s32 %s9, 1
    %s15 = ssub.s32 %s9, 2
    %s22 = sadd.s32 1, %s17
    %p23 = scmp.ge.s32.totalorder %s22, 2
    %s24 = scalar_select %p23, 0, %s22
    %s25 = sadd.s32 1, %s16
    %s26 = scalar_select %p23, %s25, %s16
    %p27 = scmp.ge.s32.totalorder %s26, 2
    %s28 = scalar_select %p27, 0, %s26
    %s29 = ssub.s32 %s16, %s28
    %p30 = scmp.eq.s32.totalorder %s29, 0
    %s32 = sadd.s32 %s31, 1
    %s33 = scalar_select %p30, %s31, %s32
    %p36 = pneg %p30
    %p37 = scmp.eq.s32.totalorder %s9, 3
    %p38 = por %p36, %p37
    %p39 = scmp.ne.s32.totalorder %s31, %s34
    %p40 = scmp.eq.s32.totalorder %s9, 0
    %p41 = por %p39, %p40
    %p42 = scmp.ne.s32.totalorder %s31, %s34
    %p43 = scmp.eq.s32.totalorder %s14, 3
    %p44 = por %p42, %p43
    %p45 = scmp.ne.s32.totalorder %s34, %s35
    %p46 = scmp.eq.s32.totalorder %s14, 0
    %p47 = por %p45, %p46
    %p48 = scmp.ne.s32.totalorder %s34, %s35
    %p49 = scmp.eq.s32.totalorder %s15, 3
    %p50 = por %p48, %p49
    %p52 = scmp.ne.s32.totalorder %s35, %s51
    %p53 = scmp.eq.s32.totalorder %s15, 0
    %p54 = por %p52, %p53
    %s56 = sadd.s32 %s55, 1
    %p59 = scmp.eq.s32.totalorder %s9, 3
    %p60 = scmp.ne.s32.totalorder %s55, %s57
    %p61 = scmp.eq.s32.totalorder %s9, 0
    %p62 = por %p60, %p61
    %p63 = scmp.ne.s32.totalorder %s55, %s57
    %p64 = scmp.eq.s32.totalorder %s14, 3
    %p65 = por %p63, %p64
    %p66 = scmp.ne.s32.totalorder %s57, %s58
    %p67 = scmp.eq.s32.totalorder %s14, 0
    %p68 = por %p66, %p67
    %p69 = scmp.ne.s32.totalorder %s57, %s58
    %p70 = scmp.eq.s32.totalorder %s15, 3
    %p71 = por %p69, %p70
    %p73 = scmp.ne.s32.totalorder %s58, %s72
    %p74 = scmp.eq.s32.totalorder %s15, 0
    %p75 = por %p73, %p74
    %s77 = sadd.s32 %s76, 1
    %p80 = scmp.eq.s32.totalorder %s9, 3
    %p81 = scmp.ne.s32.totalorder %s76, %s78
    %p82 = scmp.eq.s32.totalorder %s9, 0
    %p83 = por %p81, %p82
    %p84 = scmp.ne.s32.totalorder %s76, %s78
    %p85 = scmp.eq.s32.totalorder %s14, 3
    %p86 = por %p84, %p85
    %p87 = scmp.ne.s32.totalorder %s78, %s79
    %p88 = scmp.eq.s32.totalorder %s14, 0
    %p89 = por %p87, %p88
    %p90 = scmp.ne.s32.totalorder %s78, %s79
    %p91 = scmp.eq.s32.totalorder %s15, 3
    %p92 = por %p90, %p91
    %p94 = scmp.ne.s32.totalorder %s79, %s93
    %p95 = scmp.eq.s32.totalorder %s15, 0
    %p96 = por %p94, %p95
    %s97 = ssub.s32 %s16, %s28
    %s98 = ssub.s32 %s17, %s24
    %s99 = sor.u32 %s97, %s98
    %p100 = scmp.eq.s32.totalorder %s99, 0
    %s102 = sadd.s32 %s101, 1
    %s103 = scalar_select %p100, %s101, %s102
    %p106 = pneg %p100
    %p107 = scmp.eq.s32.totalorder %s9, 3
    %p108 = por %p106, %p107
    %p109 = scmp.ne.s32.totalorder %s101, %s104
    %p110 = scmp.eq.s32.totalorder %s9, 0
    %p111 = por %p109, %p110
    %p112 = scmp.ne.s32.totalorder %s101, %s104
    %p113 = scmp.eq.s32.totalorder %s14, 3
    %p114 = por %p112, %p113
    %p115 = scmp.ne.s32.totalorder %s104, %s105
    %p116 = scmp.eq.s32.totalorder %s14, 0
    %p117 = por %p115, %p116
    %p118 = scmp.ne.s32.totalorder %s104, %s105
    %p119 = scmp.eq.s32.totalorder %s15, 3
    %p120 = por %p118, %p119
    %p122 = scmp.ne.s32.totalorder %s105, %s121
    %p123 = scmp.eq.s32.totalorder %s15, 0
    %p124 = por %p122, %p123
    %p125 = scmp.le.s32.totalorder 1, %s9
    %p126 = scmp.lt.s32.totalorder %s9, 5
    %p127 = pnand %p125, %p126
    %p128 = pneg %p127
    // Predicated region
    $region9: #{double_conv.5} parent=5 // pred_check
      _
    $region10: #{double_conv.5} parent=5 // pred_check_branch
      %130 = sbr.rel (%p127) target = $region12
    $region11: #{double_conv.5} parent=5 // pred_region
      %s131 = ssub.s32 %s9, 1
      // Predicated region
      $region13: #{double_conv.5} parent=11 // pred_check
        %p132 = pneg %p68
      $region14: #{double_conv.5} parent=11 // pred_check_branch
        %134 = sbr.rel (%p132) target = $region16
      $region15: #{double_conv.5} parent=11 // pred_region
        _
      $region16: #{double_conv.5} parent=11 // pred_fallthru
        _
      // Predicated region
      $region17: #{double_conv.5} parent=11 // pred_check
        %p135 = pneg %p89
      $region18: #{double_conv.5} parent=11 // pred_check_branch
        %137 = sbr.rel (%p135) target = $region20
      $region19: #{double_conv.5} parent=11 // pred_region
        _
      $region20: #{double_conv.5} parent=11 // pred_fallthru
        _
    $region12: #{double_conv.5} parent=5 // pred_fallthru
      _
    %p138 = scmp.lt.s32.totalorder %s9, 4
    // Predicated region
    $region21: #{double_conv.5} parent=5 // pred_check
      %p139 = pneg %p138
    $region22: #{double_conv.5} parent=5 // pred_check_branch
      %141 = sbr.rel (%p139) target = $region24
    $region23: #{double_conv.5} parent=5 // pred_region
      // Predicated region
      $region25: #{double_conv.5} parent=23 // pred_check
        %p142 = pneg %p41
      $region26: #{double_conv.5} parent=23 // pred_check_branch
        %144 = sbr.rel (%p142) target = $region28
      $region27: #{double_conv.5} parent=23 // pred_region
        %p145 = scmp.lt.s32.totalorder %s16, 1
        %s146 = scalar_select %p145, %s16, 1
        %s147 = smul.addr %s146, 54
        %s148 = smul.addr %s147, 4
        %s149 = scalar_lea.vmem %s0, %s148
      $region28: #{double_conv.5} parent=23 // pred_fallthru
        _
    $region24: #{double_conv.5} parent=5 // pred_fallthru
      _
    %p150 = scmp.le.s32.totalorder 1, %s9
    %p151 = scmp.lt.s32.totalorder %s9, 5
    %p152 = pnand %p150, %p151
    %p153 = pneg %p152
    // Predicated region
    $region29: #{double_conv.5} parent=5 // pred_check
      _
    $region30: #{double_conv.5} parent=5 // pred_check_branch
      %155 = sbr.rel (%p152) target = $region32
    $region31: #{double_conv.5} parent=5 // pred_region
      %s156 = ssub.s32 %s9, 1
      %p157 = scmp.lt.s32.totalorder %s18, 1
      %s158 = scalar_select %p157, %s18, 1
      %s159 = smul.addr %s158, 54
      %s160 = smul.addr %s159, 4
      %s161 = scalar_lea.vmem %s0, %s160
      %p162 = pneg %p47
      %p163 = pneg %p44
      %p164 = pneg %p68
      %p165 = pneg %p65
      %p166 = pneg %p89
      %p167 = pneg %p86
      %p168 = pneg %p117
      %p169 = pneg %p114
      %p170 = scmp.lt.s32.totalorder %s18, 1
      %s171 = scalar_select %p170, %s18, 1
      %p172 = scmp.lt.s32.totalorder %s19, 1
      %s173 = scalar_select %p172, %s19, 1
      %s174 = smul.addr %s173, 16
      %s175 = smul.addr %s171, 32
      %s176 = sadd.s32 %s174, %s175
      %s177 = smul.addr %s176, 8
      %s178 = scalar_lea.vmem %s3, %s177
      %p179 = scmp.lt.s32.totalorder %s18, 1
      %s180 = scalar_select %p179, %s18, 1
      %s181 = smul.addr %s180, 54
      %s182 = smul.addr %s181, 4
      %s183 = scalar_lea.vmem %s0, %s182
      %p184 = scmp.lt.s32.totalorder %s18, 1
      %s185 = scalar_select %p184, %s18, 1
      %p186 = scmp.lt.s32.totalorder %s19, 1
      %s187 = scalar_select %p186, %s19, 1
      %s188 = smul.addr %s187, 16
      %s189 = smul.addr %s185, 32
      %s190 = sadd.s32 %s188, %s189
      %s191 = smul.addr %s190, 8
      %s192 = scalar_lea.vmem %s3, %s191
      %s193 = smul.u32 %s19, 8
      %s194 = sadd.s32 %s193, 1
      %s195 = smul.u32 %s194, 3
      %s196 = smul.addr %s195, 4
      %s197 = scalar_lea.vmem %s183, %s196
      %v198 = vld [vmem:[%s197] sm:$0xf]
      %v199 = vld [vmem:[%s197 + $0x4] sm:$0xf]
      %v200 = vld [vmem:[%s197 + $0x8] sm:$0x1]
      %v201 = vld [vmem:[%s197 + $0xc] sm:$0xf]
      %v202 = vld [vmem:[%s197 + $0x10] sm:$0xf]
      %v203 = vld [vmem:[%s197 + $0x14] sm:$0x1]
      %v204 = vld [vmem:[%s197 + $0x18] sm:$0xf]
      %v205 = vld [vmem:[%s197 + $0x1c] sm:$0xf]
      %v206 = vld [vmem:[%s197 + $0x20] sm:$0x1]
      %v207 = vld [vmem:[%s197 + $0x24] sm:$0xf]
      %v208 = vld [vmem:[%s197 + $0x28] sm:$0xf]
      %v209 = vld [vmem:[%s197 + $0x2c] sm:$0x1]
      %v210 = vld [vmem:[%s197 + $0x30] sm:$0xf]
      %v211 = vld [vmem:[%s197 + $0x34] sm:$0xf]
      %v212 = vld [vmem:[%s197 + $0x38] sm:$0x1]
      %v213 = vld [vmem:[%s197 + $0x3c] sm:$0xf]
      %v214 = vld [vmem:[%s197 + $0x40] sm:$0xf]
      %v215 = vld [vmem:[%s197 + $0x44] sm:$0x1]
      %v216 = vld [vmem:[%s197 + $0x48] sm:$0xf]
      %v217 = vld [vmem:[%s197 + $0x4c] sm:$0xf]
      %v218 = vld [vmem:[%s197 + $0x50] sm:$0x1]
      %v219 = vld [vmem:[%s197 + $0x54] sm:$0xf]
      %v220 = vld [vmem:[%s197 + $0x58] sm:$0xf]
      %v221 = vld [vmem:[%s197 + $0x5c] sm:$0x1]
      %v222 = vunpack.c.l.bf16 %v198
      %v223 = vunpack.c.l.bf16 %v199
      %v224 = vunpack.c.l.bf16 %v200
      %v225 = vunpack.c.l.bf16 %v201
      %v226 = vunpack.c.l.bf16 %v202
      %v227 = vunpack.c.l.bf16 %v203
      %v228 = vunpack.c.l.bf16 %v204
      %v229 = vunpack.c.l.bf16 %v205
      %v230 = vunpack.c.l.bf16 %v206
      %v231 = vunpack.c.l.bf16 %v207
      %v232 = vunpack.c.l.bf16 %v208
      %v233 = vunpack.c.l.bf16 %v209
      %v234 = vunpack.c.l.bf16 %v210
      %v235 = vunpack.c.l.bf16 %v211
      %v236 = vunpack.c.l.bf16 %v212
      %v237 = vunpack.c.l.bf16 %v213
      %v238 = vunpack.c.l.bf16 %v214
      %v239 = vunpack.c.l.bf16 %v215
      %v240 = vunpack.c.l.bf16 %v216
      %v241 = vunpack.c.l.bf16 %v217
      %v242 = vunpack.c.l.bf16 %v218
      %v243 = vunpack.c.l.bf16 %v219
      %v244 = vunpack.c.l.bf16 %v220
      %v245 = vunpack.c.l.bf16 %v221
      %v246 = vld [vmem:[%s1] sm:$0x1]
      %v248 = vlaneseq
      %v249 = vshrl.u32 %v248, 7
      %v250 = vsub.s32 0, %v249
      %v251 = vrot.slane %v246, %v250
      %v253 = vmul.f32 %v222, %v251
      %v254 = vmul.f32 %v223, %v251
      %v255 = vmul.f32 %v224, %v251
      %v256 = vmul.f32 %v225, %v251
      %v257 = vmul.f32 %v226, %v251
      %v258 = vmul.f32 %v227, %v251
      %v259 = vmul.f32 %v228, %v251
      %v260 = vmul.f32 %v229, %v251
      %v261 = vmul.f32 %v230, %v251
      %v262 = vmul.f32 %v231, %v251
      %v263 = vmul.f32 %v232, %v251
      %v264 = vmul.f32 %v233, %v251
      %v265 = vmul.f32 %v234, %v251
      %v266 = vmul.f32 %v235, %v251
      %v267 = vmul.f32 %v236, %v251
      %v268 = vmul.f32 %v237, %v251
      %v269 = vmul.f32 %v238, %v251
      %v270 = vmul.f32 %v239, %v251
      %v271 = vmul.f32 %v240, %v251
      %v272 = vmul.f32 %v241, %v251
      %v273 = vmul.f32 %v242, %v251
      %v274 = vmul.f32 %v243, %v251
      %v275 = vmul.f32 %v244, %v251
      %v276 = vmul.f32 %v245, %v251
      %v277 = vld [vmem:[%s2] sm:$0x1]
      %v279 = vlaneseq
      %v280 = vshrl.u32 %v279, 7
      %v281 = vsub.s32 0, %v280
      %v282 = vrot.slane %v277, %v281
      %v284 = vadd.f32 %v253, %v282
      %v285 = vadd.f32 %v254, %v282
      %v286 = vadd.f32 %v255, %v282
      %v287 = vadd.f32 %v256, %v282
      %v288 = vadd.f32 %v257, %v282
      %v289 = vadd.f32 %v258, %v282
      %v290 = vadd.f32 %v259, %v282
      %v291 = vadd.f32 %v260, %v282
      %v292 = vadd.f32 %v261, %v282
      %v293 = vadd.f32 %v262, %v282
      %v294 = vadd.f32 %v263, %v282
      %v295 = vadd.f32 %v264, %v282
      %v296 = vadd.f32 %v265, %v282
      %v297 = vadd.f32 %v266, %v282
      %v298 = vadd.f32 %v267, %v282
      %v299 = vadd.f32 %v268, %v282
      %v300 = vadd.f32 %v269, %v282
      %v301 = vadd.f32 %v270, %v282
      %v302 = vadd.f32 %v271, %v282
      %v303 = vadd.f32 %v272, %v282
      %v304 = vadd.f32 %v273, %v282
      %v305 = vadd.f32 %v274, %v282
      %v306 = vadd.f32 %v275, %v282
      %v307 = vadd.f32 %v276, %v282
      %v308 = vmax.f32 %v284, 0.0
      %v309 = vmax.f32 %v285, 0.0
      %v310 = vmax.f32 %v286, 0.0
      %v311 = vmax.f32 %v287, 0.0
      %v312 = vmax.f32 %v288, 0.0
      %v313 = vmax.f32 %v289, 0.0
      %v314 = vmax.f32 %v290, 0.0
      %v315 = vmax.f32 %v291, 0.0
      %v316 = vmax.f32 %v292, 0.0
      %v317 = vmax.f32 %v293, 0.0
      %v318 = vmax.f32 %v294, 0.0
      %v319 = vmax.f32 %v295, 0.0
      %v320 = vmax.f32 %v296, 0.0
      %v321 = vmax.f32 %v297, 0.0
      %v322 = vmax.f32 %v298, 0.0
      %v323 = vmax.f32 %v299, 0.0
      %v324 = vmax.f32 %v300, 0.0
      %v325 = vmax.f32 %v301, 0.0
      %v326 = vmax.f32 %v302, 0.0
      %v327 = vmax.f32 %v303, 0.0
      %v328 = vmax.f32 %v304, 0.0
      %v329 = vmax.f32 %v305, 0.0
      %v330 = vmax.f32 %v306, 0.0
      %v331 = vmax.f32 %v307, 0.0
      %vm356 = vcmask 1046528
      %v357 = vrot.slane %v308, 1
      %v358 = vrot.slane %v309, 1
      %v359 = vsel %vm356, %v357, %v358
      %v360 = vrot.slane %v310, 1
      %v361 = vsel %vm356, %v358, %v360
      %v362 = vrot.slane %v311, 1
      %v363 = vrot.slane %v312, 1
      %v364 = vsel %vm356, %v362, %v363
      %v365 = vrot.slane %v313, 1
      %v366 = vsel %vm356, %v363, %v365
      %v367 = vrot.slane %v314, 1
      %v368 = vrot.slane %v315, 1
      %v369 = vsel %vm356, %v367, %v368
      %v370 = vrot.slane %v316, 1
      %v371 = vsel %vm356, %v368, %v370
      %v372 = vrot.slane %v317, 1
      %v373 = vrot.slane %v318, 1
      %v374 = vsel %vm356, %v372, %v373
      %v375 = vrot.slane %v319, 1
      %v376 = vsel %vm356, %v373, %v375
      %v377 = vrot.slane %v320, 1
      %v378 = vrot.slane %v321, 1
      %v379 = vsel %vm356, %v377, %v378
      %v380 = vrot.slane %v322, 1
      %v381 = vsel %vm356, %v378, %v380
      %v382 = vrot.slane %v323, 1
      %v383 = vrot.slane %v324, 1
      %v384 = vsel %vm356, %v382, %v383
      %v385 = vrot.slane %v325, 1
      %v386 = vsel %vm356, %v383, %v385
      %v387 = vrot.slane %v326, 1
      %v388 = vrot.slane %v327, 1
      %v389 = vsel %vm356, %v387, %v388
      %v390 = vrot.slane %v328, 1
      %v391 = vsel %vm356, %v388, %v390
      %v392 = vrot.slane %v329, 1
      %v393 = vrot.slane %v330, 1
      %v394 = vsel %vm356, %v392, %v393
      %v395 = vrot.slane %v331, 1
      %v396 = vsel %vm356, %v393, %v395
      %413 = vst [vmem:[%s192] sm:$0xff] %v359
      %414 = vst [vmem:[%s192 + $0x8] sm:$0xff] %v361
      %415 = vst [vmem:[%s192 + $0x10] sm:$0xff] %v364
      %416 = vst [vmem:[%s192 + $0x18] sm:$0xff] %v366
      %417 = vst [vmem:[%s192 + $0x20] sm:$0xff] %v369
      %418 = vst [vmem:[%s192 + $0x28] sm:$0xff] %v371
      %419 = vst [vmem:[%s192 + $0x30] sm:$0xff] %v374
      %420 = vst [vmem:[%s192 + $0x38] sm:$0xff] %v376
      %421 = vst [vmem:[%s192 + $0x40] sm:$0xff] %v379
      %422 = vst [vmem:[%s192 + $0x48] sm:$0xff] %v381
      %423 = vst [vmem:[%s192 + $0x50] sm:$0xff] %v384
      %424 = vst [vmem:[%s192 + $0x58] sm:$0xff] %v386
      %425 = vst [vmem:[%s192 + $0x60] sm:$0xff] %v389
      %426 = vst [vmem:[%s192 + $0x68] sm:$0xff] %v391
      %427 = vst [vmem:[%s192 + $0x70] sm:$0xff] %v394
      %428 = vst [vmem:[%s192 + $0x78] sm:$0xff] %v396
      %p429 = scmp.lt.s32.totalorder %s18, 1
      %s430 = scalar_select %p429, %s18, 1
      %p431 = scmp.lt.s32.totalorder %s19, 1
      %s432 = scalar_select %p431, %s19, 1
      %s433 = smul.addr %s432, 16
      %s434 = smul.addr %s430, 32
      %s435 = sadd.s32 %s433, %s434
      %s436 = smul.addr %s435, 8
      %s437 = scalar_lea.vmem %s3, %s436
      // Predicated region
      $region33: #{double_conv.5} parent=31 // pred_check
        %p438 = pneg %p114
      $region34: #{double_conv.5} parent=31 // pred_check_branch
        %440 = sbr.rel (%p438) target = $region36
      $region35: #{double_conv.5} parent=31 // pred_region
        _
      $region36: #{double_conv.5} parent=31 // pred_fallthru
        _
    $region32: #{double_conv.5} parent=5 // pred_fallthru
      _
    %p441 = scmp.le.s32.totalorder 2, %s9
    // Predicated region
    $region37: #{double_conv.5} parent=5 // pred_check
      %p442 = pneg %p441
    $region38: #{double_conv.5} parent=5 // pred_check_branch
      %444 = sbr.rel (%p442) target = $region40
    $region39: #{double_conv.5} parent=5 // pred_region
      %s445 = ssub.s32 %s9, 2
      // Predicated region
      $region41: #{double_conv.5} parent=39 // pred_check
        %p446 = pneg %p120
      $region42: #{double_conv.5} parent=39 // pred_check_branch
        %448 = sbr.rel (%p446) target = $region44
      $region43: #{double_conv.5} parent=39 // pred_region
        %p449 = scmp.lt.s32.totalorder %s20, 1
        %s450 = scalar_select %p449, %s20, 1
        %p451 = scmp.lt.s32.totalorder %s21, 1
        %s452 = scalar_select %p451, %s21, 1
        %s453 = smul.addr %s452, 16
        %s454 = smul.addr %s450, 32
        %s455 = sadd.s32 %s453, %s454
        %s456 = smul.addr %s455, 8
        %s457 = scalar_lea.vmem %s3, %s456
      $region44: #{double_conv.5} parent=39 // pred_fallthru
        _
    $region40: #{double_conv.5} parent=5 // pred_fallthru
      _
  $region6: #{double_conv.5} parent=0 // loop_footer
    %s13 = sadd.s32 1, %s9
  $region7: #{double_conv.5} parent=0 // loop_footer_branch
    %8 = sbr.rel target = $region3
  $region8: #{double_conv.5} parent=0 // loop_exit
    _

// kernel: double_conv.4
$region0: #{double_conv.4}
  #allocation0 [shape = 'u32[]', space=smem, size = 0x4, offset = 0x4, fixed_abs, tag = 'smem constant byte address 0x4 - core index']
  #allocation1 [shape = 'u32[144,128]{1,0:T(1,128)}', space=vmem, size = 0x12000, scoped, tag = 'internal scratch']
  %s0 = inlined_call_operand.vmem [shape: bf16[2,18,18,128], index: 0, kind: input, shape index: {}]
  %s1 = inlined_call_operand.vmem [shape: f32[1,128], index: 1, kind: input, shape index: {}]
  %s2 = inlined_call_operand.vmem [shape: f32[1,128], index: 2, kind: input, shape index: {}]
  %s3 = inlined_call_operand.vmem [shape: bf16[9,128,128], index: 3, kind: input, shape index: {}]
  %s4 = inlined_call_operand.vmem [shape: bf16[2,18,18,128], index: 4, kind: output, shape index: {0}]
  %s5 = inlined_call_operand.vmem [shape: f32[2,8,128], index: 5, kind: output, shape index: {1}]
  %6 = xla_tuple %s4, %s5
  %s7 = sld [smem:[#allocation0]]
  $region61: #{double_conv.4} parent=0
    _
  %s9 = ssub.s32 1, %s7
  %s10 = scalar_select 0, %s9, %s7
  loop: start=0, step=1, limit=6
  $region2: #{double_conv.4} parent=0 // loop_pre_header
    _
  $region3: #{double_conv.4} parent=0 // loop_header
    %s12 = sphi 0, %s16
    %p13 = scmp.ge.s32.totalorder %s12, 6
    %s19 = sphi 0, %s31
    %s20 = sphi 0, %s27
    %s21 = sphi 0, %s19
    %s22 = sphi 0, %s20
    %s23 = sphi 0, %s21
    %s24 = sphi 0, %s22
    %s34 = sphi 0, %s36
    %s37 = sphi 0, %s34
    %s38 = sphi 0, %s37
    %s54 = sphi 0, %s38
    %s58 = sphi 0, %s58
    %s60 = sphi 0, %s58
    %s61 = sphi 0, %s60
    %s75 = sphi 0, %s61
    %s79 = sphi 0, %s79
    %s81 = sphi 0, %s79
    %s82 = sphi 0, %s81
    %s96 = sphi 0, %s82
    %s100 = sphi 0, %s100
    %s102 = sphi 0, %s100
    %s103 = sphi 0, %s102
    %s117 = sphi 0, %s103
    %s123 = sphi 0, %s125
    %s126 = sphi 0, %s123
    %s127 = sphi 0, %s126
    %s143 = sphi 0, %s127
    %s149 = sphi 0, %s151
    %s152 = sphi 0, %s149
    %s153 = sphi 0, %s152
    %s169 = sphi 0, %s153
  $region4: #{double_conv.4} parent=0 // loop_header_branch
    %15 = sbr.rel (%p13) target = $region8
  $region5: #{double_conv.4} parent=0 // loop_body
    %s17 = ssub.s32 %s12, 1
    %s18 = ssub.s32 %s12, 2
    %s25 = sadd.s32 1, %s20
    %p26 = scmp.ge.s32.totalorder %s25, 2
    %s27 = scalar_select %p26, 0, %s25
    %s28 = sadd.s32 1, %s19
    %s29 = scalar_select %p26, %s28, %s19
    %p30 = scmp.ge.s32.totalorder %s29, 2
    %s31 = scalar_select %p30, 0, %s29
    %s32 = ssub.s32 %s19, %s31
    %p33 = scmp.eq.s32.totalorder %s32, 0
    %s35 = sadd.s32 %s34, 1
    %s36 = scalar_select %p33, %s34, %s35
    %p39 = pneg %p33
    %p40 = scmp.eq.s32.totalorder %s12, 3
    %p41 = por %p39, %p40
    %p42 = scmp.ne.s32.totalorder %s34, %s37
    %p43 = scmp.eq.s32.totalorder %s12, 0
    %p44 = por %p42, %p43
    %p45 = scmp.ne.s32.totalorder %s34, %s37
    %p46 = scmp.eq.s32.totalorder %s17, 3
    %p47 = por %p45, %p46
    %p48 = scmp.ne.s32.totalorder %s37, %s38
    %p49 = scmp.eq.s32.totalorder %s17, 0
    %p50 = por %p48, %p49
    %p51 = scmp.ne.s32.totalorder %s37, %s38
    %p52 = scmp.eq.s32.totalorder %s18, 3
    %p53 = por %p51, %p52
    %p55 = scmp.ne.s32.totalorder %s38, %s54
    %p56 = scmp.eq.s32.totalorder %s18, 0
    %p57 = por %p55, %p56
    %s59 = sadd.s32 %s58, 1
    %p62 = scmp.eq.s32.totalorder %s12, 3
    %p63 = scmp.ne.s32.totalorder %s58, %s60
    %p64 = scmp.eq.s32.totalorder %s12, 0
    %p65 = por %p63, %p64
    %p66 = scmp.ne.s32.totalorder %s58, %s60
    %p67 = scmp.eq.s32.totalorder %s17, 3
    %p68 = por %p66, %p67
    %p69 = scmp.ne.s32.totalorder %s60, %s61
    %p70 = scmp.eq.s32.totalorder %s17, 0
    %p71 = por %p69, %p70
    %p72 = scmp.ne.s32.totalorder %s60, %s61
    %p73 = scmp.eq.s32.totalorder %s18, 3
    %p74 = por %p72, %p73
    %p76 = scmp.ne.s32.totalorder %s61, %s75
    %p77 = scmp.eq.s32.totalorder %s18, 0
    %p78 = por %p76, %p77
    %s80 = sadd.s32 %s79, 1
    %p83 = scmp.eq.s32.totalorder %s12, 3
    %p84 = scmp.ne.s32.totalorder %s79, %s81
    %p85 = scmp.eq.s32.totalorder %s12, 0
    %p86 = por %p84, %p85
    %p87 = scmp.ne.s32.totalorder %s79, %s81
    %p88 = scmp.eq.s32.totalorder %s17, 3
    %p89 = por %p87, %p88
    %p90 = scmp.ne.s32.totalorder %s81, %s82
    %p91 = scmp.eq.s32.totalorder %s17, 0
    %p92 = por %p90, %p91
    %p93 = scmp.ne.s32.totalorder %s81, %s82
    %p94 = scmp.eq.s32.totalorder %s18, 3
    %p95 = por %p93, %p94
    %p97 = scmp.ne.s32.totalorder %s82, %s96
    %p98 = scmp.eq.s32.totalorder %s18, 0
    %p99 = por %p97, %p98
    %s101 = sadd.s32 %s100, 1
    %p104 = scmp.eq.s32.totalorder %s12, 3
    %p105 = scmp.ne.s32.totalorder %s100, %s102
    %p106 = scmp.eq.s32.totalorder %s12, 0
    %p107 = por %p105, %p106
    %p108 = scmp.ne.s32.totalorder %s100, %s102
    %p109 = scmp.eq.s32.totalorder %s17, 3
    %p110 = por %p108, %p109
    %p111 = scmp.ne.s32.totalorder %s102, %s103
    %p112 = scmp.eq.s32.totalorder %s17, 0
    %p113 = por %p111, %p112
    %p114 = scmp.ne.s32.totalorder %s102, %s103
    %p115 = scmp.eq.s32.totalorder %s18, 3
    %p116 = por %p114, %p115
    %p118 = scmp.ne.s32.totalorder %s103, %s117
    %p119 = scmp.eq.s32.totalorder %s18, 0
    %p120 = por %p118, %p119
    %s121 = ssub.s32 %s19, %s31
    %p122 = scmp.eq.s32.totalorder %s121, 0
    %s124 = sadd.s32 %s123, 1
    %s125 = scalar_select %p122, %s123, %s124
    %p128 = pneg %p122
    %p129 = scmp.eq.s32.totalorder %s12, 3
    %p130 = por %p128, %p129
    %p131 = scmp.ne.s32.totalorder %s123, %s126
    %p132 = scmp.eq.s32.totalorder %s12, 0
    %p133 = por %p131, %p132
    %p134 = scmp.ne.s32.totalorder %s123, %s126
    %p135 = scmp.eq.s32.totalorder %s17, 3
    %p136 = por %p134, %p135
    %p137 = scmp.ne.s32.totalorder %s126, %s127
    %p138 = scmp.eq.s32.totalorder %s17, 0
    %p139 = por %p137, %p138
    %p140 = scmp.ne.s32.totalorder %s126, %s127
    %p141 = scmp.eq.s32.totalorder %s18, 3
    %p142 = por %p140, %p141
    %p144 = scmp.ne.s32.totalorder %s127, %s143
    %p145 = scmp.eq.s32.totalorder %s18, 0
    %p146 = por %p144, %p145
    %s147 = ssub.s32 %s19, %s31
    %p148 = scmp.eq.s32.totalorder %s147, 0
    %s150 = sadd.s32 %s149, 1
    %s151 = scalar_select %p148, %s149, %s150
    %p154 = pneg %p148
    %p155 = scmp.eq.s32.totalorder %s12, 3
    %p156 = por %p154, %p155
    %p157 = scmp.ne.s32.totalorder %s149, %s152
    %p158 = scmp.eq.s32.totalorder %s12, 0
    %p159 = por %p157, %p158
    %p160 = scmp.ne.s32.totalorder %s149, %s152
    %p161 = scmp.eq.s32.totalorder %s17, 3
    %p162 = por %p160, %p161
    %p163 = scmp.ne.s32.totalorder %s152, %s153
    %p164 = scmp.eq.s32.totalorder %s17, 0
    %p165 = por %p163, %p164
    %p166 = scmp.ne.s32.totalorder %s152, %s153
    %p167 = scmp.eq.s32.totalorder %s18, 3
    %p168 = por %p166, %p167
    %p170 = scmp.ne.s32.totalorder %s153, %s169
    %p171 = scmp.eq.s32.totalorder %s18, 0
    %p172 = por %p170, %p171
    %p173 = scmp.le.s32.totalorder 1, %s12
    %p174 = scmp.lt.s32.totalorder %s12, 5
    %p175 = pnand %p173, %p174
    %p176 = pneg %p175
    // Predicated region
    $region9: #{double_conv.4} parent=5 // pred_check
      _
    $region10: #{double_conv.4} parent=5 // pred_check_branch
      %178 = sbr.rel (%p175) target = $region12
    $region11: #{double_conv.4} parent=5 // pred_region
      %s179 = ssub.s32 %s12, 1
      // Predicated region
      $region13: #{double_conv.4} parent=11 // pred_check
        %p180 = pneg %p71
      $region14: #{double_conv.4} parent=11 // pred_check_branch
        %182 = sbr.rel (%p180) target = $region16
      $region15: #{double_conv.4} parent=11 // pred_region
        _
      $region16: #{double_conv.4} parent=11 // pred_fallthru
        _
      // Predicated region
      $region17: #{double_conv.4} parent=11 // pred_check
        %p183 = pneg %p92
      $region18: #{double_conv.4} parent=11 // pred_check_branch
        %185 = sbr.rel (%p183) target = $region20
      $region19: #{double_conv.4} parent=11 // pred_region
        _
      $region20: #{double_conv.4} parent=11 // pred_fallthru
        _
      // Predicated region
      $region21: #{double_conv.4} parent=11 // pred_check
        %p186 = pneg %p113
      $region22: #{double_conv.4} parent=11 // pred_check_branch
        %188 = sbr.rel (%p186) target = $region24
      $region23: #{double_conv.4} parent=11 // pred_region
        _
      $region24: #{double_conv.4} parent=11 // pred_fallthru
        _
    $region12: #{double_conv.4} parent=5 // pred_fallthru
      _
    %p189 = scmp.lt.s32.totalorder %s12, 4
    // Predicated region
    $region25: #{double_conv.4} parent=5 // pred_check
      %p190 = pneg %p189
    $region26: #{double_conv.4} parent=5 // pred_check_branch
      %192 = sbr.rel (%p190) target = $region28
    $region27: #{double_conv.4} parent=5 // pred_region
      // Predicated region
      $region29: #{double_conv.4} parent=27 // pred_check
        %p193 = pneg %p44
      $region30: #{double_conv.4} parent=27 // pred_check_branch
        %195 = sbr.rel (%p193) target = $region32
      $region31: #{double_conv.4} parent=27 // pred_region
        %p196 = scmp.lt.s32.totalorder %s19, 1
        %s197 = scalar_select %p196, %s19, 1
        %s198 = smul.addr %s197, 54
        %s199 = smul.addr %s198, 4
        %s200 = scalar_lea.vmem %s0, %s199
      $region32: #{double_conv.4} parent=27 // pred_fallthru
        _
    $region28: #{double_conv.4} parent=5 // pred_fallthru
      _
    %p201 = scmp.le.s32.totalorder 1, %s12
    %p202 = scmp.lt.s32.totalorder %s12, 5
    %p203 = pnand %p201, %p202
    %p204 = pneg %p203
    // Predicated region
    $region33: #{double_conv.4} parent=5 // pred_check
      _
    $region34: #{double_conv.4} parent=5 // pred_check_branch
      %206 = sbr.rel (%p203) target = $region36
    $region35: #{double_conv.4} parent=5 // pred_region
      %s207 = ssub.s32 %s12, 1
      %p208 = scmp.lt.s32.totalorder %s21, 1
      %s209 = scalar_select %p208, %s21, 1
      %s210 = smul.addr %s209, 54
      %s211 = smul.addr %s210, 4
      %s212 = scalar_lea.vmem %s0, %s211
      %p213 = pneg %p50
      %p214 = pneg %p47
      %p215 = pneg %p71
      %p216 = pneg %p68
      %p217 = pneg %p92
      %p218 = pneg %p89
      %p219 = pneg %p113
      %p220 = pneg %p110
      %p221 = pneg %p139
      %p222 = pneg %p136
      %p223 = scmp.lt.s32.totalorder %s21, 1
      %s224 = scalar_select %p223, %s21, 1
      %s225 = smul.addr %s224, 54
      %s226 = smul.addr %s225, 4
      %s227 = scalar_lea.vmem %s4, %s226
      %p228 = pneg %p165
      %p229 = pneg %p162
      %p230 = scmp.lt.s32.totalorder %s21, 1
      %s231 = scalar_select %p230, %s21, 1
      %s232 = smul.addr %s231, 8
      %s233 = scalar_lea.vmem %s5, %s232
      %p234 = scmp.lt.s32.totalorder %s21, 1
      %s235 = scalar_select %p234, %s21, 1
      %s236 = smul.addr %s235, 54
      %s237 = smul.addr %s236, 4
      %s238 = scalar_lea.vmem %s0, %s237
      %p239 = scmp.lt.s32.totalorder %s21, 1
      %s240 = scalar_select %p239, %s21, 1
      %s241 = smul.addr %s240, 54
      %s242 = smul.addr %s241, 4
      %s243 = scalar_lea.vmem %s4, %s242
      %p244 = scmp.lt.s32.totalorder %s21, 1
      %s245 = scalar_select %p244, %s21, 1
      %s246 = smul.addr %s245, 8
      %s247 = scalar_lea.vmem %s5, %s246
      %p249 = scmp.eq.s32.totalorder %s22, 0
      // Predicated region
      $region37: #{double_conv.4} parent=35 // pred_check
        %p250 = pneg %p249
      $region38: #{double_conv.4} parent=35 // pred_check_branch
        %252 = sbr.rel (%p250) target = $region40
      $region39: #{double_conv.4} parent=35 // pred_region
        %253 = vst [vmem:[%s243] sm:$0xf] 0
        %254 = vst [vmem:[%s243 + $0x4] sm:$0xf] 0
        %255 = vst [vmem:[%s243 + $0x8] sm:$0x1] 0
        %256 = vst [vmem:[%s243 + $0xc] sm:$0xf] 0
        %257 = vst [vmem:[%s243 + $0x10] sm:$0xf] 0
        %258 = vst [vmem:[%s243 + $0x14] sm:$0x1] 0
        %259 = vst [vmem:[%s243 + $0x18] sm:$0xf] 0
        %260 = vst [vmem:[%s243 + $0x1c] sm:$0xf] 0
        %261 = vst [vmem:[%s243 + $0x20] sm:$0x1] 0
        %262 = vst [vmem:[%s243 + $0x24] sm:$0xf] 0
        %263 = vst [vmem:[%s243 + $0x28] sm:$0xf] 0
        %264 = vst [vmem:[%s243 + $0x2c] sm:$0x1] 0
        %265 = vst [vmem:[%s243 + $0x30] sm:$0xf] 0
        %266 = vst [vmem:[%s243 + $0x34] sm:$0xf] 0
        %267 = vst [vmem:[%s243 + $0x38] sm:$0x1] 0
        %268 = vst [vmem:[%s243 + $0x3c] sm:$0xf] 0
        %269 = vst [vmem:[%s243 + $0x40] sm:$0xf] 0
        %270 = vst [vmem:[%s243 + $0x44] sm:$0x1] 0
        %271 = vst [vmem:[%s243 + $0x48] sm:$0xf] 0
        %272 = vst [vmem:[%s243 + $0x4c] sm:$0xf] 0
        %273 = vst [vmem:[%s243 + $0x50] sm:$0x1] 0
        %274 = vst [vmem:[%s243 + $0x54] sm:$0xf] 0
        %275 = vst [vmem:[%s243 + $0x58] sm:$0xf] 0
        %276 = vst [vmem:[%s243 + $0x5c] sm:$0x1] 0
        %277 = vst [vmem:[%s243 + $0x60] sm:$0xf] 0
        %278 = vst [vmem:[%s243 + $0x64] sm:$0xf] 0
        %279 = vst [vmem:[%s243 + $0x68] sm:$0x1] 0
        %280 = vst [vmem:[%s243 + $0x6c] sm:$0xf] 0
        %281 = vst [vmem:[%s243 + $0x70] sm:$0xf] 0
        %282 = vst [vmem:[%s243 + $0x74] sm:$0x1] 0
        %283 = vst [vmem:[%s243 + $0x78] sm:$0xf] 0
        %284 = vst [vmem:[%s243 + $0x7c] sm:$0xf] 0
        %285 = vst [vmem:[%s243 + $0x80] sm:$0x1] 0
        %286 = vst [vmem:[%s243 + $0x84] sm:$0xf] 0
        %287 = vst [vmem:[%s243 + $0x88] sm:$0xf] 0
        %288 = vst [vmem:[%s243 + $0x8c] sm:$0x1] 0
        %289 = vst [vmem:[%s243 + $0x90] sm:$0xf] 0
        %290 = vst [vmem:[%s243 + $0x94] sm:$0xf] 0
        %291 = vst [vmem:[%s243 + $0x98] sm:$0x1] 0
        %292 = vst [vmem:[%s243 + $0x9c] sm:$0xf] 0
        %293 = vst [vmem:[%s243 + $0xa0] sm:$0xf] 0
        %294 = vst [vmem:[%s243 + $0xa4] sm:$0x1] 0
        %295 = vst [vmem:[%s243 + $0xa8] sm:$0xf] 0
        %296 = vst [vmem:[%s243 + $0xac] sm:$0xf] 0
        %297 = vst [vmem:[%s243 + $0xb0] sm:$0x1] 0
        %298 = vst [vmem:[%s243 + $0xb4] sm:$0xf] 0
        %299 = vst [vmem:[%s243 + $0xb8] sm:$0xf] 0
        %300 = vst [vmem:[%s243 + $0xbc] sm:$0x1] 0
        %301 = vst [vmem:[%s243 + $0xc0] sm:$0xf] 0
        %302 = vst [vmem:[%s243 + $0xc4] sm:$0xf] 0
        %303 = vst [vmem:[%s243 + $0xc8] sm:$0x1] 0
        %304 = vst [vmem:[%s243 + $0xcc] sm:$0xf] 0
        %305 = vst [vmem:[%s243 + $0xd0] sm:$0xf] 0
        %306 = vst [vmem:[%s243 + $0xd4] sm:$0x1] 0
        %307 = vst [vmem:[%s247] sm:$0xff] 0.0
      $region40: #{double_conv.4} parent=35 // pred_fallthru
        _
      %s308 = smul.u32 %s22, 8
      %s309 = smul.u32 %s308, 3
      %s310 = smul.addr %s309, 4
      %s311 = scalar_lea.vmem %s238, %s310
      %v312 = vld [vmem:[%s311] sm:$0xf]
      %v313 = vld [vmem:[%s311 + $0x4] sm:$0xf]
      %v314 = vld [vmem:[%s311 + $0x8] sm:$0x1]
      %v315 = vld [vmem:[%s311 + $0xc] sm:$0xf]
      %v316 = vld [vmem:[%s311 + $0x10] sm:$0xf]
      %v317 = vld [vmem:[%s311 + $0x14] sm:$0x1]
      %v318 = vld [vmem:[%s311 + $0x18] sm:$0xf]
      %v319 = vld [vmem:[%s311 + $0x1c] sm:$0xf]
      %v320 = vld [vmem:[%s311 + $0x20] sm:$0x1]
      %v321 = vld [vmem:[%s311 + $0x24] sm:$0xf]
      %v322 = vld [vmem:[%s311 + $0x28] sm:$0xf]
      %v323 = vld [vmem:[%s311 + $0x2c] sm:$0x1]
      %v324 = vld [vmem:[%s311 + $0x30] sm:$0xf]
      %v325 = vld [vmem:[%s311 + $0x34] sm:$0xf]
      %v326 = vld [vmem:[%s311 + $0x38] sm:$0x1]
      %v327 = vld [vmem:[%s311 + $0x3c] sm:$0xf]
      %v328 = vld [vmem:[%s311 + $0x40] sm:$0xf]
      %v329 = vld [vmem:[%s311 + $0x44] sm:$0x1]
      %v330 = vld [vmem:[%s311 + $0x48] sm:$0xf]
      %v331 = vld [vmem:[%s311 + $0x4c] sm:$0xf]
      %v332 = vld [vmem:[%s311 + $0x50] sm:$0x1]
      %v333 = vld [vmem:[%s311 + $0x54] sm:$0xf]
      %v334 = vld [vmem:[%s311 + $0x58] sm:$0xf]
      %v335 = vld [vmem:[%s311 + $0x5c] sm:$0x1]
      %v336 = vld [vmem:[%s311 + $0x60] sm:$0xf]
      %v337 = vld [vmem:[%s311 + $0x64] sm:$0xf]
      %v338 = vld [vmem:[%s311 + $0x68] sm:$0x1]
      %v339 = vld [vmem:[%s311 + $0x6c] sm:$0xf]
      %v340 = vld [vmem:[%s311 + $0x70] sm:$0xf]
      %v341 = vld [vmem:[%s311 + $0x74] sm:$0x1]
      %v342 = vunpack.c.l.bf16 %v312
      %v343 = vunpack.c.l.bf16 %v313
      %v344 = vunpack.c.l.bf16 %v314
      %v345 = vunpack.c.l.bf16 %v315
      %v346 = vunpack.c.l.bf16 %v316
      %v347 = vunpack.c.l.bf16 %v317
      %v348 = vunpack.c.l.bf16 %v318
      %v349 = vunpack.c.l.bf16 %v319
      %v350 = vunpack.c.l.bf16 %v320
      %v351 = vunpack.c.l.bf16 %v321
      %v352 = vunpack.c.l.bf16 %v322
      %v353 = vunpack.c.l.bf16 %v323
      %v354 = vunpack.c.l.bf16 %v324
      %v355 = vunpack.c.l.bf16 %v325
      %v356 = vunpack.c.l.bf16 %v326
      %v357 = vunpack.c.l.bf16 %v327
      %v358 = vunpack.c.l.bf16 %v328
      %v359 = vunpack.c.l.bf16 %v329
      %v360 = vunpack.c.l.bf16 %v330
      %v361 = vunpack.c.l.bf16 %v331
      %v362 = vunpack.c.l.bf16 %v332
      %v363 = vunpack.c.l.bf16 %v333
      %v364 = vunpack.c.l.bf16 %v334
      %v365 = vunpack.c.l.bf16 %v335
      %v366 = vunpack.c.l.bf16 %v336
      %v367 = vunpack.c.l.bf16 %v337
      %v368 = vunpack.c.l.bf16 %v338
      %v369 = vunpack.c.l.bf16 %v339
      %v370 = vunpack.c.l.bf16 %v340
      %v371 = vunpack.c.l.bf16 %v341
      %v372 = vld [vmem:[%s1] sm:$0x1]
      %v374 = vlaneseq
      %v375 = vshrl.u32 %v374, 7
      %v376 = vsub.s32 0, %v375
      %v377 = vrot.slane %v372, %v376
      %v379 = vmul.f32 %v342, %v377
      %v380 = vmul.f32 %v343, %v377
      %v381 = vmul.f32 %v344, %v377
      %v382 = vmul.f32 %v345, %v377
      %v383 = vmul.f32 %v346, %v377
      %v384 = vmul.f32 %v347, %v377
      %v385 = vmul.f32 %v348, %v377
      %v386 = vmul.f32 %v349, %v377
      %v387 = vmul.f32 %v350, %v377
      %v388 = vmul.f32 %v351, %v377
      %v389 = vmul.f32 %v352, %v377
      %v390 = vmul.f32 %v353, %v377
      %v391 = vmul.f32 %v354, %v377
      %v392 = vmul.f32 %v355, %v377
      %v393 = vmul.f32 %v356, %v377
      %v394 = vmul.f32 %v357, %v377
      %v395 = vmul.f32 %v358, %v377
      %v396 = vmul.f32 %v359, %v377
      %v397 = vmul.f32 %v360, %v377
      %v398 = vmul.f32 %v361, %v377
      %v399 = vmul.f32 %v362, %v377
      %v400 = vmul.f32 %v363, %v377
      %v401 = vmul.f32 %v364, %v377
      %v402 = vmul.f32 %v365, %v377
      %v403 = vmul.f32 %v366, %v377
      %v404 = vmul.f32 %v367, %v377
      %v405 = vmul.f32 %v368, %v377
      %v406 = vmul.f32 %v369, %v377
      %v407 = vmul.f32 %v370, %v377
      %v408 = vmul.f32 %v371, %v377
      %v409 = vld [vmem:[%s2] sm:$0x1]
      %v411 = vlaneseq
      %v412 = vshrl.u32 %v411, 7
      %v413 = vsub.s32 0, %v412
      %v414 = vrot.slane %v409, %v413
      %v416 = vadd.f32 %v379, %v414
      %v417 = vadd.f32 %v380, %v414
      %v418 = vadd.f32 %v381, %v414
      %v419 = vadd.f32 %v382, %v414
      %v420 = vadd.f32 %v383, %v414
      %v421 = vadd.f32 %v384, %v414
      %v422 = vadd.f32 %v385, %v414
      %v423 = vadd.f32 %v386, %v414
      %v424 = vadd.f32 %v387, %v414
      %v425 = vadd.f32 %v388, %v414
      %v426 = vadd.f32 %v389, %v414
      %v427 = vadd.f32 %v390, %v414
      %v428 = vadd.f32 %v391, %v414
      %v429 = vadd.f32 %v392, %v414
      %v430 = vadd.f32 %v393, %v414
      %v431 = vadd.f32 %v394, %v414
      %v432 = vadd.f32 %v395, %v414
      %v433 = vadd.f32 %v396, %v414
      %v434 = vadd.f32 %v397, %v414
      %v435 = vadd.f32 %v398, %v414
      %v436 = vadd.f32 %v399, %v414
      %v437 = vadd.f32 %v400, %v414
      %v438 = vadd.f32 %v401, %v414
      %v439 = vadd.f32 %v402, %v414
      %v440 = vadd.f32 %v403, %v414
      %v441 = vadd.f32 %v404, %v414
      %v442 = vadd.f32 %v405, %v414
      %v443 = vadd.f32 %v406, %v414
      %v444 = vadd.f32 %v407, %v414
      %v445 = vadd.f32 %v408, %v414
      %v446 = vmax.f32 %v416, 0.0
      %v447 = vmax.f32 %v417, 0.0
      %v448 = vmax.f32 %v418, 0.0
      %v449 = vmax.f32 %v419, 0.0
      %v450 = vmax.f32 %v420, 0.0
      %v451 = vmax.f32 %v421, 0.0
      %v452 = vmax.f32 %v422, 0.0
      %v453 = vmax.f32 %v423, 0.0
      %v454 = vmax.f32 %v424, 0.0
      %v455 = vmax.f32 %v425, 0.0
      %v456 = vmax.f32 %v426, 0.0
      %v457 = vmax.f32 %v427, 0.0
      %v458 = vmax.f32 %v428, 0.0
      %v459 = vmax.f32 %v429, 0.0
      %v460 = vmax.f32 %v430, 0.0
      %v461 = vmax.f32 %v431, 0.0
      %v462 = vmax.f32 %v432, 0.0
      %v463 = vmax.f32 %v433, 0.0
      %v464 = vmax.f32 %v434, 0.0
      %v465 = vmax.f32 %v435, 0.0
      %v466 = vmax.f32 %v436, 0.0
      %v467 = vmax.f32 %v437, 0.0
      %v468 = vmax.f32 %v438, 0.0
      %v469 = vmax.f32 %v439, 0.0
      %v470 = vmax.f32 %v440, 0.0
      %v471 = vmax.f32 %v441, 0.0
      %v472 = vmax.f32 %v442, 0.0
      %v473 = vmax.f32 %v443, 0.0
      %v474 = vmax.f32 %v444, 0.0
      %v475 = vmax.f32 %v445, 0.0
      %v476 = vlaneseq
      %v477 = vshrl.u32 %v476, 7
      %v478 = vadd.s32 %v477, 8
      %v479 = vadd.s32 %v477, 16
      %v480 = vstv %s308
      %v481 = vadd.s32 %v480, 1
      %v482 = vadd.s32 %v480, 2
      %v483 = vadd.s32 %v480, 3
      %v484 = vadd.s32 %v480, 4
      %v485 = vadd.s32 %v480, 5
      %v486 = vadd.s32 %v480, 6
      %v487 = vadd.s32 %v480, 7
      %v488 = vadd.s32 %v480, 8
      %v489 = vadd.s32 %v480, 9
      %vm490 = vcmp.ge.s32.totalorder %v477, 1
      %vm491 = vcmp.ge.s32.totalorder %v478, 1
      %vm492 = vcmp.ge.s32.totalorder %v479, 1
      %vm493 = vcmp.le.s32.totalorder %v477, 16
      %vm494 = vcmp.le.s32.totalorder %v478, 16
      %vm495 = vcmp.le.s32.totalorder %v479, 16
      %vm496 = vmand %vm490, %vm493
      %vm497 = vmand %vm491, %vm494
      %vm498 = vmand %vm492, %vm495
      %vm499 = vcmp.ge.s32.totalorder %v480, 1
      %vm500 = vcmp.ge.s32.totalorder %v481, 1
      %vm501 = vcmp.ge.s32.totalorder %v482, 1
      %vm502 = vcmp.ge.s32.totalorder %v483, 1
      %vm503 = vcmp.ge.s32.totalorder %v484, 1
      %vm504 = vcmp.ge.s32.totalorder %v485, 1
      %vm505 = vcmp.ge.s32.totalorder %v486, 1
      %vm506 = vcmp.ge.s32.totalorder %v487, 1
      %vm507 = vcmp.ge.s32.totalorder %v488, 1
      %vm508 = vcmp.ge.s32.totalorder %v489, 1
      %v509 = vsel %vm496, 1, 0
      %v510 = vsel %vm497, 1, 0
      %v511 = vsel %vm498, 1, 0
      %vm512 = vcmp.eq.s32.totalorder %v509, 1
      %vm513 = vcmp.eq.s32.totalorder %v510, 1
      %vm514 = vcmp.eq.s32.totalorder %v511, 1
      %v515 = vsel %vm499, 1, 0
      %v516 = vsel %vm500, 1, 0
      %v517 = vsel %vm501, 1, 0
      %v518 = vsel %vm502, 1, 0
      %v519 = vsel %vm503, 1, 0
      %v520 = vsel %vm504, 1, 0
      %v521 = vsel %vm505, 1, 0
      %v522 = vsel %vm506, 1, 0
      %v523 = vsel %vm507, 1, 0
      %v524 = vsel %vm508, 1, 0
      %vm525 = vcmp.eq.s32.totalorder %v515, 1
      %vm526 = vcmp.eq.s32.totalorder %v516, 1
      %vm527 = vcmp.eq.s32.totalorder %v517, 1
      %vm528 = vcmp.eq.s32.totalorder %v518, 1
      %vm529 = vcmp.eq.s32.totalorder %v519, 1
      %vm530 = vcmp.eq.s32.totalorder %v520, 1
      %vm531 = vcmp.eq.s32.totalorder %v521, 1
      %vm532 = vcmp.eq.s32.totalorder %v522, 1
      %vm533 = vcmp.eq.s32.totalorder %v523, 1
      %vm534 = vcmp.eq.s32.totalorder %v524, 1
      %vm535 = vmand %vm512, %vm525
      %vm536 = vmand %vm513, %vm525
      %vm537 = vmand %vm514, %vm525
      %vm538 = vmand %vm512, %vm526
      %vm539 = vmand %vm513, %vm526
      %vm540 = vmand %vm514, %vm526
      %vm541 = vmand %vm512, %vm527
      %vm542 = vmand %vm513, %vm527
      %vm543 = vmand %vm514, %vm527
      %vm544 = vmand %vm512, %vm528
      %vm545 = vmand %vm513, %vm528
      %vm546 = vmand %vm514, %vm528
      %vm547 = vmand %vm512, %vm529
      %vm548 = vmand %vm513, %vm529
      %vm549 = vmand %vm514, %vm529
      %vm550 = vmand %vm512, %vm530
      %vm551 = vmand %vm513, %vm530
      %vm552 = vmand %vm514, %vm530
      %vm553 = vmand %vm512, %vm531
      %vm554 = vmand %vm513, %vm531
      %vm555 = vmand %vm514, %vm531
      %vm556 = vmand %vm512, %vm532
      %vm557 = vmand %vm513, %vm532
      %vm558 = vmand %vm514, %vm532
      %vm559 = vmand %vm512, %vm533
      %vm560 = vmand %vm513, %vm533
      %vm561 = vmand %vm514, %vm533
      %vm562 = vmand %vm512, %vm534
      %vm563 = vmand %vm513, %vm534
      %vm564 = vmand %vm514, %vm534
      %vm565 = vcmp.le.s32.totalorder %v480, 16
      %vm566 = vcmp.le.s32.totalorder %v481, 16
      %vm567 = vcmp.le.s32.totalorder %v482, 16
      %vm568 = vcmp.le.s32.totalorder %v483, 16
      %vm569 = vcmp.le.s32.totalorder %v484, 16
      %vm570 = vcmp.le.s32.totalorder %v485, 16
      %vm571 = vcmp.le.s32.totalorder %v486, 16
      %vm572 = vcmp.le.s32.totalorder %v487, 16
      %vm573 = vcmp.le.s32.totalorder %v488, 16
      %vm574 = vcmp.le.s32.totalorder %v489, 16
      %v575 = vsel %vm565, 1, 0
      %v576 = vsel %vm566, 1, 0
      %v577 = vsel %vm567, 1, 0
      %v578 = vsel %vm568, 1, 0
      %v579 = vsel %vm569, 1, 0
      %v580 = vsel %vm570, 1, 0
      %v581 = vsel %vm571, 1, 0
      %v582 = vsel %vm572, 1, 0
      %v583 = vsel %vm573, 1, 0
      %v584 = vsel %vm574, 1, 0
      %vm585 = vcmp.eq.s32.totalorder %v575, 1
      %vm586 = vcmp.eq.s32.totalorder %v576, 1
      %vm587 = vcmp.eq.s32.totalorder %v577, 1
      %vm588 = vcmp.eq.s32.totalorder %v578, 1
      %vm589 = vcmp.eq.s32.totalorder %v579, 1
      %vm590 = vcmp.eq.s32.totalorder %v580, 1
      %vm591 = vcmp.eq.s32.totalorder %v581, 1
      %vm592 = vcmp.eq.s32.totalorder %v582, 1
      %vm593 = vcmp.eq.s32.totalorder %v583, 1
      %vm594 = vcmp.eq.s32.totalorder %v584, 1
      %vm595 = vmand %vm535, %vm585
      %vm596 = vmand %vm536, %vm585
      %vm597 = vmand %vm537, %vm585
      %vm598 = vmand %vm538, %vm586
      %vm599 = vmand %vm539, %vm586
      %vm600 = vmand %vm540, %vm586
      %vm601 = vmand %vm541, %vm587
      %vm602 = vmand %vm542, %vm587
      %vm603 = vmand %vm543, %vm587
      %vm604 = vmand %vm544, %vm588
      %vm605 = vmand %vm545, %vm588
      %vm606 = vmand %vm546, %vm588
      %vm607 = vmand %vm547, %vm589
      %vm608 = vmand %vm548, %vm589
      %vm609 = vmand %vm549, %vm589
      %vm610 = vmand %vm550, %vm590
      %vm611 = vmand %vm551, %vm590
      %vm612 = vmand %vm552, %vm590
      %vm613 = vmand %vm553, %vm591
      %vm614 = vmand %vm554, %vm591
      %vm615 = vmand %vm555, %vm591
      %vm616 = vmand %vm556, %vm592
      %vm617 = vmand %vm557, %vm592
      %vm618 = vmand %vm558, %vm592
      %vm619 = vmand %vm559, %vm593
      %vm620 = vmand %vm560, %vm593
      %vm621 = vmand %vm561, %vm593
      %vm622 = vmand %vm562, %vm594
      %vm623 = vmand %vm563, %vm594
      %vm624 = vmand %vm564, %vm594
      %v625 = vsel %vm595, 1, 0
      %v626 = vsel %vm596, 1, 0
      %v627 = vsel %vm597, 1, 0
      %v628 = vsel %vm598, 1, 0
      %v629 = vsel %vm599, 1, 0
      %v630 = vsel %vm600, 1, 0
      %v631 = vsel %vm601, 1, 0
      %v632 = vsel %vm602, 1, 0
      %v633 = vsel %vm603, 1, 0
      %v634 = vsel %vm604, 1, 0
      %v635 = vsel %vm605, 1, 0
      %v636 = vsel %vm606, 1, 0
      %v637 = vsel %vm607, 1, 0
      %v638 = vsel %vm608, 1, 0
      %v639 = vsel %vm609, 1, 0
      %v640 = vsel %vm610, 1, 0
      %v641 = vsel %vm611, 1, 0
      %v642 = vsel %vm612, 1, 0
      %v643 = vsel %vm613, 1, 0
      %v644 = vsel %vm614, 1, 0
      %v645 = vsel %vm615, 1, 0
      %v646 = vsel %vm616, 1, 0
      %v647 = vsel %vm617, 1, 0
      %v648 = vsel %vm618, 1, 0
      %v649 = vsel %vm619, 1, 0
      %v650 = vsel %vm620, 1, 0
      %v651 = vsel %vm621, 1, 0
      %v652 = vsel %vm622, 1, 0
      %v653 = vsel %vm623, 1, 0
      %v654 = vsel %vm624, 1, 0
      %vm655 = vcmp.eq.s32.totalorder %v625, 1
      %vm656 = vcmp.eq.s32.totalorder %v626, 1
      %vm657 = vcmp.eq.s32.totalorder %v627, 1
      %vm658 = vcmp.eq.s32.totalorder %v628, 1
      %vm659 = vcmp.eq.s32.totalorder %v629, 1
      %vm660 = vcmp.eq.s32.totalorder %v630, 1
      %vm661 = vcmp.eq.s32.totalorder %v631, 1
      %vm662 = vcmp.eq.s32.totalorder %v632, 1
      %vm663 = vcmp.eq.s32.totalorder %v633, 1
      %vm664 = vcmp.eq.s32.totalorder %v634, 1
      %vm665 = vcmp.eq.s32.totalorder %v635, 1
      %vm666 = vcmp.eq.s32.totalorder %v636, 1
      %vm667 = vcmp.eq.s32.totalorder %v637, 1
      %vm668 = vcmp.eq.s32.totalorder %v638, 1
      %vm669 = vcmp.eq.s32.totalorder %v639, 1
      %vm670 = vcmp.eq.s32.totalorder %v640, 1
      %vm671 = vcmp.eq.s32.totalorder %v641, 1
      %vm672 = vcmp.eq.s32.totalorder %v642, 1
      %vm673 = vcmp.eq.s32.totalorder %v643, 1
      %vm674 = vcmp.eq.s32.totalorder %v644, 1
      %vm675 = vcmp.eq.s32.totalorder %v645, 1
      %vm676 = vcmp.eq.s32.totalorder %v646, 1
      %vm677 = vcmp.eq.s32.totalorder %v647, 1
      %vm678 = vcmp.eq.s32.totalorder %v648, 1
      %vm679 = vcmp.eq.s32.totalorder %v649, 1
      %vm680 = vcmp.eq.s32.totalorder %v650, 1
      %vm681 = vcmp.eq.s32.totalorder %v651, 1
      %vm682 = vcmp.eq.s32.totalorder %v652, 1
      %vm683 = vcmp.eq.s32.totalorder %v653, 1
      %vm684 = vcmp.eq.s32.totalorder %v654, 1
      %v685 = vsel %vm655, %v446, 0.0
      %v686 = vsel %vm656, %v447, 0.0
      %v687 = vsel %vm657, %v448, 0.0
      %v688 = vsel %vm658, %v449, 0.0
      %v689 = vsel %vm659, %v450, 0.0
      %v690 = vsel %vm660, %v451, 0.0
      %v691 = vsel %vm661, %v452, 0.0
      %v692 = vsel %vm662, %v453, 0.0
      %v693 = vsel %vm663, %v454, 0.0
      %v694 = vsel %vm664, %v455, 0.0
      %v695 = vsel %vm665, %v456, 0.0
      %v696 = vsel %vm666, %v457, 0.0
      %v697 = vsel %vm667, %v458, 0.0
      %v698 = vsel %vm668, %v459, 0.0
      %v699 = vsel %vm669, %v460, 0.0
      %v700 = vsel %vm670, %v461, 0.0
      %v701 = vsel %vm671, %v462, 0.0
      %v702 = vsel %vm672, %v463, 0.0
      %v703 = vsel %vm673, %v464, 0.0
      %v704 = vsel %vm674, %v465, 0.0
      %v705 = vsel %vm675, %v466, 0.0
      %v706 = vsel %vm676, %v467, 0.0
      %v707 = vsel %vm677, %v468, 0.0
      %v708 = vsel %vm678, %v469, 0.0
      %v709 = vsel %vm679, %v470, 0.0
      %v710 = vsel %vm680, %v471, 0.0
      %v711 = vsel %vm681, %v472, 0.0
      %v712 = vsel %vm682, %v473, 0.0
      %v713 = vsel %vm683, %v474, 0.0
      %v714 = vsel %vm684, %v475, 0.0
      %v715 = vpack.c.bf16 %v686, %v685
      %v716 = vpack.c.bf16 %v687, %v687
      %v717 = vpack.c.bf16 %v689, %v688
      %v718 = vpack.c.bf16 %v690, %v690
      %v719 = vpack.c.bf16 %v692, %v691
      %v720 = vpack.c.bf16 %v693, %v693
      %v721 = vpack.c.bf16 %v695, %v694
      %v722 = vpack.c.bf16 %v696, %v696
      %v723 = vpack.c.bf16 %v698, %v697
      %v724 = vpack.c.bf16 %v699, %v699
      %v725 = vpack.c.bf16 %v701, %v700
      %v726 = vpack.c.bf16 %v702, %v702
      %v727 = vpack.c.bf16 %v704, %v703
      %v728 = vpack.c.bf16 %v705, %v705
      %v729 = vpack.c.bf16 %v707, %v706
      %v730 = vpack.c.bf16 %v708, %v708
      %v731 = vpack.c.bf16 %v710, %v709
      %v732 = vpack.c.bf16 %v711, %v711
      %v733 = vpack.c.bf16 %v713, %v712
      %v734 = vpack.c.bf16 %v714, %v714
      %v735 = vld [vmem:[%s3] sm:$0xf]
      %v736 = vld [vmem:[%s3 + $0x4] sm:$0xf]
      %v737 = vld [vmem:[%s3 + $0x8] sm:$0xf]
      %v738 = vld [vmem:[%s3 + $0xc] sm:$0xf]
      %v739 = vld [vmem:[%s3 + $0x10] sm:$0xf]
      %v740 = vld [vmem:[%s3 + $0x14] sm:$0xf]
      %v741 = vld [vmem:[%s3 + $0x18] sm:$0xf]
      %v742 = vld [vmem:[%s3 + $0x1c] sm:$0xf]
      %v743 = vld [vmem:[%s3 + $0x20] sm:$0xf]
      %v744 = vld [vmem:[%s3 + $0x24] sm:$0xf]
      %v745 = vld [vmem:[%s3 + $0x28] sm:$0xf]
      %v746 = vld [vmem:[%s3 + $0x2c] sm:$0xf]
      %v747 = vld [vmem:[%s3 + $0x30] sm:$0xf]
      %v748 = vld [vmem:[%s3 + $0x34] sm:$0xf]
      %v749 = vld [vmem:[%s3 + $0x38] sm:$0xf]
      %v750 = vld [vmem:[%s3 + $0x3c] sm:$0xf]
      %vm751 = vsmask.f32 7424
      %v753 = vshrl.u32 %v715, 16
      %v755 = vshll.u32 %v715, 16
      %v757 = vrot.slane %v755, 1
      %v758 = vor.u32 %v753, %v757
      %v760 = vshll.u32 %v716, 16
      %v762 = vrot.slane %v760, 1
      %v763 = vsel %vm751, %v758, %v762
      %v765 = vshrl.u32 %v717, 16
      %v767 = vshll.u32 %v717, 16
      %v769 = vrot.slane %v767, 1
      %v770 = vor.u32 %v765, %v769
      %v772 = vshll.u32 %v718, 16
      %v774 = vrot.slane %v772, 1
      %v775 = vsel %vm751, %v770, %v774
      %v777 = vshrl.u32 %v719, 16
      %v779 = vshll.u32 %v719, 16
      %v781 = vrot.slane %v779, 1
      %v782 = vor.u32 %v777, %v781
      %v784 = vshll.u32 %v720, 16
      %v786 = vrot.slane %v784, 1
      %v787 = vsel %vm751, %v782, %v786
      %v789 = vshrl.u32 %v721, 16
      %v791 = vshll.u32 %v721, 16
      %v793 = vrot.slane %v791, 1
      %v794 = vor.u32 %v789, %v793
      %v796 = vshll.u32 %v722, 16
      %v798 = vrot.slane %v796, 1
      %v799 = vsel %vm751, %v794, %v798
      %v801 = vshrl.u32 %v723, 16
      %v803 = vshll.u32 %v723, 16
      %v805 = vrot.slane %v803, 1
      %v806 = vor.u32 %v801, %v805
      %v808 = vshll.u32 %v724, 16
      %v810 = vrot.slane %v808, 1
      %v811 = vsel %vm751, %v806, %v810
      %v813 = vshrl.u32 %v725, 16
      %v815 = vshll.u32 %v725, 16
      %v817 = vrot.slane %v815, 1
      %v818 = vor.u32 %v813, %v817
      %v820 = vshll.u32 %v726, 16
      %v822 = vrot.slane %v820, 1
      %v823 = vsel %vm751, %v818, %v822
      %v825 = vshrl.u32 %v727, 16
      %v827 = vshll.u32 %v727, 16
      %v829 = vrot.slane %v827, 1
      %v830 = vor.u32 %v825, %v829
      %v832 = vshll.u32 %v728, 16
      %v834 = vrot.slane %v832, 1
      %v835 = vsel %vm751, %v830, %v834
      %v837 = vshrl.u32 %v729, 16
      %v839 = vshll.u32 %v729, 16
      %v841 = vrot.slane %v839, 1
      %v842 = vor.u32 %v837, %v841
      %v844 = vshll.u32 %v730, 16
      %v846 = vrot.slane %v844, 1
      %v847 = vsel %vm751, %v842, %v846
      %s856 = scalar_lea.vmem %s3, 64
      %v857 = vld [vmem:[%s856] sm:$0xf]
      %v858 = vld [vmem:[%s856 + $0x4] sm:$0xf]
      %v859 = vld [vmem:[%s856 + $0x8] sm:$0xf]
      %v860 = vld [vmem:[%s856 + $0xc] sm:$0xf]
      %v861 = vld [vmem:[%s856 + $0x10] sm:$0xf]
      %v862 = vld [vmem:[%s856 + $0x14] sm:$0xf]
      %v863 = vld [vmem:[%s856 + $0x18] sm:$0xf]
      %v864 = vld [vmem:[%s856 + $0x1c] sm:$0xf]
      %v865 = vld [vmem:[%s856 + $0x20] sm:$0xf]
      %v866 = vld [vmem:[%s856 + $0x24] sm:$0xf]
      %v867 = vld [vmem:[%s856 + $0x28] sm:$0xf]
      %v868 = vld [vmem:[%s856 + $0x2c] sm:$0xf]
      %v869 = vld [vmem:[%s856 + $0x30] sm:$0xf]
      %v870 = vld [vmem:[%s856 + $0x34] sm:$0xf]
      %v871 = vld [vmem:[%s856 + $0x38] sm:$0xf]
      %v872 = vld [vmem:[%s856 + $0x3c] sm:$0xf]
      %v889 = vunpack.c.l.b16 %v857
      %v890 = vunpack.c.l.b16 %v858
      %v891 = vunpack.c.l.b16 %v859
      %v892 = vunpack.c.l.b16 %v860
      %v893 = vunpack.c.l.b16 %v861
      %v894 = vunpack.c.l.b16 %v862
      %v895 = vunpack.c.l.b16 %v863
      %v896 = vunpack.c.l.b16 %v864
      %v897 = vunpack.c.l.b16 %v865
      %v898 = vunpack.c.l.b16 %v866
      %v899 = vunpack.c.l.b16 %v867
      %v900 = vunpack.c.l.b16 %v868
      %v901 = vunpack.c.l.b16 %v869
      %v902 = vunpack.c.l.b16 %v870
      %v903 = vunpack.c.l.b16 %v871
      %v904 = vunpack.c.l.b16 %v872
      %v905 = vpack.c.b16 %v890, %v889
      %v906 = vpack.c.b16 %v892, %v891
      %v907 = vpack.c.b16 %v894, %v893
      %v908 = vpack.c.b16 %v896, %v895
      %v909 = vpack.c.b16 %v898, %v897
      %v910 = vpack.c.b16 %v900, %v899
      %v911 = vpack.c.b16 %v902, %v901
      %v912 = vpack.c.b16 %v904, %v903
      %921 = vmatprep.subr.bf16.mxu0 0
      %922 = vmatpush1.bf16.msra.mxu0 %v905
      %923 = vmatprep.subr.bf16.mxu0 0
      %924 = vmatpush1.bf16.msra.mxu0 %v906
      %925 = vmatprep.subr.bf16.mxu0 0
      %926 = vmatpush1.bf16.msra.mxu0 %v907
      %927 = vmatprep.subr.bf16.mxu0 0
      %928 = vmatpush1.bf16.msra.mxu0 %v908
      %929 = vmatprep.subr.bf16.mxu0 0
      %930 = vmatpush1.bf16.msra.mxu0 %v909
      %931 = vmatprep.subr.bf16.mxu0 0
      %932 = vmatpush1.bf16.msra.mxu0 %v910
      %933 = vmatprep.subr.bf16.mxu0 0
      %934 = vmatpush1.bf16.msra.mxu0 %v911
      %935 = vmatprep.subr.bf16.mxu0 0
      %936 = vmatpush1.bf16.msra.mxu0 %v912
      %937 = vmatprep.subr.bf16.mxu0 0
      %938 = vmatpush1.bf16.msra.mxu0 0
      %939 = vmatprep.subr.bf16.mxu0 0
      %940 = vmatpush1.bf16.msra.mxu0 0
      %941 = vmatprep.subr.bf16.mxu0 0
      %942 = vmatpush1.bf16.msra.mxu0 0
      %943 = vmatprep.subr.bf16.mxu0 0
      %944 = vmatpush1.bf16.msra.mxu0 0
      %945 = vmatprep.subr.bf16.mxu0 0
      %946 = vmatpush1.bf16.msra.mxu0 0
      %947 = vmatprep.subr.bf16.mxu0 0
      %948 = vmatpush1.bf16.msra.mxu0 0
      %949 = vmatprep.subr.bf16.mxu0 0
      %950 = vmatpush1.bf16.msra.mxu0 0
      %951 = vmatprep.subr.bf16.mxu0 0
      %952 = vmatpush1.bf16.msra.mxu0 0
      %953 = vmatprep.mubr.bf16.mxu0 0
      %954 = vmatmul.mubr.bf16.gmra.mrb[0].mxu0 %v763
      %v955 = vpop.f32.mrb[0].mxu0
      %v956 = vadd.f32 0.0, %v955
      %v957 = vpop.f32.mrb[0].mxu0
      %v958 = vpop.f32.mrb[0].mxu0
      %v959 = vadd.f32 0.0, %v958
      %v960 = vpop.f32.mrb[0].mxu0
      %961 = vmatprep.mubr.bf16.mxu0 0
      %962 = vmatmul.mubr.bf16.gmra.mrb[0].mxu0 %v775
      %v963 = vpop.f32.mrb[0].mxu0
      %v964 = vadd.f32 0.0, %v963
      %v965 = vpop.f32.mrb[0].mxu0
      %v966 = vpop.f32.mrb[0].mxu0
      %v967 = vadd.f32 0.0, %v966
      %v968 = vpop.f32.mrb[0].mxu0
      %969 = vmatprep.mubr.bf16.mxu0 0
      %970 = vmatmul.mubr.bf16.gmra.mrb[0].mxu0 %v787
      %v971 = vpop.f32.mrb[0].mxu0
      %v972 = vadd.f32 0.0, %v971
      %v973 = vpop.f32.mrb[0].mxu0
      %v974 = vpop.f32.mrb[0].mxu0
      %v975 = vadd.f32 0.0, %v974
      %v976 = vpop.f32.mrb[0].mxu0
      %977 = vmatprep.mubr.bf16.mxu0 0
      %978 = vmatmul.mubr.bf16.gmra.mrb[0].mxu0 %v799
      %v979 = vpop.f32.mrb[0].mxu0
      %v980 = vadd.f32 0.0, %v979
      %v981 = vpop.f32.mrb[0].mxu0
      %v982 = vpop.f32.mrb[0].mxu0
      %v983 = vadd.f32 0.0, %v982
      %v984 = vpop.f32.mrb[0].mxu0
      %985 = vmatprep.mubr.bf16.mxu0 0
      %986 = vmatmul.mubr.bf16.gmra.mrb[0].mxu0 %v811
      %v987 = vpop.f32.mrb[0].mxu0
      %v988 = vadd.f32 0.0, %v987
      %v989 = vpop.f32.mrb[0].mxu0
      %v990 = vpop.f32.mrb[0].mxu0
      %v991 = vadd.f32 0.0, %v990
      %v992 = vpop.f32.mrb[0].mxu0
      %993 = vmatprep.mubr.bf16.mxu0 0
      %994 = vmatmul.mubr.bf16.gmra.mrb[0].mxu0 %v823
      %v995 = vpop.f32.mrb[0].mxu0
      %v996 = vadd.f32 0.0, %v995
      %v997 = vpop.f32.mrb[0].mxu0
      %v998 = vpop.f32.mrb[0].mxu0
      %v999 = vadd.f32 0.0, %v998
      %v1000 = vpop.f32.mrb[0].mxu0
      %1001 = vmatprep.mubr.bf16.mxu0 0
      %1002 = vmatmul.mubr.bf16.gmra.mrb[0].mxu0 %v835
      %v1003 = vpop.f32.mrb[0].mxu0
      %v1004 = vadd.f32 0.0, %v1003
      %v1005 = vpop.f32.mrb[0].mxu0
      %v1006 = vpop.f32.mrb[0].mxu0
      %v1007 = vadd.f32 0.0, %v1006
      %v1008 = vpop.f32.mrb[0].mxu0
      %1009 = vmatprep.mubr.bf16.mxu0 0
      %1010 = vmatmul.mubr.bf16.gmra.mrb[0].mxu0 %v847
      %v1011 = vpop.f32.mrb[0].mxu0
      %v1012 = vadd.f32 0.0, %v1011
      %v1013 = vpop.f32.mrb[0].mxu0
      %v1014 = vpop.f32.mrb[0].mxu0
      %v1015 = vadd.f32 0.0, %v1014
      %v1016 = vpop.f32.mrb[0].mxu0
      %1017 = vdwg.mxu0
      %v1034 = vunpack.c.l.b16 %v735
      %v1035 = vunpack.c.l.b16 %v736
      %v1036 = vunpack.c.l.b16 %v737
      %v1037 = vunpack.c.l.b16 %v738
      %v1038 = vunpack.c.l.b16 %v739
      %v1039 = vunpack.c.l.b16 %v740
      %v1040 = vunpack.c.l.b16 %v741
      %v1041 = vunpack.c.l.b16 %v742
      %v1042 = vunpack.c.l.b16 %v743
      %v1043 = vunpack.c.l.b16 %v744
      %v1044 = vunpack.c.l.b16 %v745
      %v1045 = vunpack.c.l.b16 %v746
      %v1046 = vunpack.c.l.b16 %v747
      %v1047 = vunpack.c.l.b16 %v748
      %v1048 = vunpack.c.l.b16 %v749
      %v1049 = vunpack.c.l.b16 %v750
      %v1050 = vpack.c.b16 %v1035, %v1034
      %v1051 = vpack.c.b16 %v1037, %v1036
      %v1052 = vpack.c.b16 %v1039, %v1038
      %v1053 = vpack.c.b16 %v1041, %v1040
      %v1054 = vpack.c.b16 %v1043, %v1042
      %v1055 = vpack.c.b16 %v1045, %v1044
      %v1056 = vpack.c.b16 %v1047, %v1046
      %v1057 = vpack.c.b16 %v1049, %v1048
      %1066 = vmatprep.subr.bf16.mxu0 0
      %1067 = vmatpush1.bf16.msra.mxu0 %v1050
      %1068 = vmatprep.subr.bf16.mxu0 0
      %1069 = vmatpush1.bf16.msra.mxu0 %v1051
      %1070 = vmatprep.subr.bf16.mxu0 0
      %1071 = vmatpush1.bf16.msra.mxu0 %v1052
      %1072 = vmatprep.subr.bf16.mxu0 0
      %1073 = vmatpush1.bf16.msra.mxu0 %v1053
      %1074 = vmatprep.subr.bf16.mxu0 0
      %1075 = vmatpush1.bf16.msra.mxu0 %v1054
      %1076 = vmatprep.subr.bf16.mxu0 0
      %1077 = vmatpush1.bf16.msra.mxu0 %v1055
      %1078 = vmatprep.subr.bf16.mxu0 0
      %1079 = vmatpush1.bf16.msra.mxu0 %v1056
      %1080 = vmatprep.subr.bf16.mxu0 0
      %1081 = vmatpush1.bf16.msra.mxu0 %v1057
      %1082 = vmatprep.subr.bf16.mxu0 0
      %1083 = vmatpush1.bf16.msra.mxu0 0
      %1084 = vmatprep.subr.bf16.mxu0 0
      %1085 = vmatpush1.bf16.msra.mxu0 0
      %1086 = vmatprep.subr.bf16.mxu0 0
      %1087 = vmatpush1.bf16.msra.mxu0 0
      %1088 = vmatprep.subr.bf16.mxu0 0
      %1089 = vmatpush1.bf16.msra.mxu0 0
      %1090 = vmatprep.subr.bf16.mxu0 0
      %1091 = vmatpush1.bf16.msra.mxu0 0
      %1092 = vmatprep.subr.bf16.mxu0 0
      %1093 = vmatpush1.bf16.msra.mxu0 0
      %1094 = vmatprep.subr.bf16.mxu0 0
      %1095 = vmatpush1.bf16.msra.mxu0 0
      %1096 = vmatprep.subr.bf16.mxu0 0
      %1097 = vmatpush1.bf16.msra.mxu0 0
      %1098 = vmatprep.mubr.bf16.mxu0 0
      %1099 = vmatmul.mubr.bf16.gmra.mrb[0].mxu0 %v715
      %v1100 = vpop.f32.mrb[0].mxu0
      %v1101 = vadd.f32 %v956, %v1100
      %v1102 = vpop.f32.mrb[0].mxu0
      %v1103 = vpop.f32.mrb[0].mxu0
      %v1104 = vadd.f32 %v959, %v1103
      %v1105 = vpop.f32.mrb[0].mxu0
      %1106 = vmatprep.mubr.bf16.mxu0 0
      %1107 = vmatmul.mubr.bf16.gmra.mrb[0].mxu0 %v717
      %v1108 = vpop.f32.mrb[0].mxu0
      %v1109 = vadd.f32 %v964, %v1108
      %v1110 = vpop.f32.mrb[0].mxu0
      %v1111 = vpop.f32.mrb[0].mxu0
      %v1112 = vadd.f32 %v967, %v1111
      %v1113 = vpop.f32.mrb[0].mxu0
      %1114 = vmatprep.mubr.bf16.mxu0 0
      %1115 = vmatmul.mubr.bf16.gmra.mrb[0].mxu0 %v719
      %v1116 = vpop.f32.mrb[0].mxu0
      %v1117 = vadd.f32 %v972, %v1116
      %v1118 = vpop.f32.mrb[0].mxu0
      %v1119 = vpop.f32.mrb[0].mxu0
      %v1120 = vadd.f32 %v975, %v1119
      %v1121 = vpop.f32.mrb[0].mxu0
      %1122 = vmatprep.mubr.bf16.mxu0 0
      %1123 = vmatmul.mubr.bf16.gmra.mrb[0].mxu0 %v721
      %v1124 = vpop.f32.mrb[0].mxu0
      %v1125 = vadd.f32 %v980, %v1124
      %v1126 = vpop.f32.mrb[0].mxu0
      %v1127 = vpop.f32.mrb[0].mxu0
      %v1128 = vadd.f32 %v983, %v1127
      %v1129 = vpop.f32.mrb[0].mxu0
      %1130 = vmatprep.mubr.bf16.mxu0 0
      %1131 = vmatmul.mubr.bf16.gmra.mrb[0].mxu0 %v723
      %v1132 = vpop.f32.mrb[0].mxu0
      %v1133 = vadd.f32 %v988, %v1132
      %v1134 = vpop.f32.mrb[0].mxu0
      %v1135 = vpop.f32.mrb[0].mxu0
      %v1136 = vadd.f32 %v991, %v1135
      %v1137 = vpop.f32.mrb[0].mxu0
      %1138 = vmatprep.mubr.bf16.mxu0 0
      %1139 = vmatmul.mubr.bf16.gmra.mrb[0].mxu0 %v725
      %v1140 = vpop.f32.mrb[0].mxu0
      %v1141 = vadd.f32 %v996, %v1140
      %v1142 = vpop.f32.mrb[0].mxu0
      %v1143 = vpop.f32.mrb[0].mxu0
      %v1144 = vadd.f32 %v999, %v1143
      %v1145 = vpop.f32.mrb[0].mxu0
      %1146 = vmatprep.mubr.bf16.mxu0 0
      %1147 = vmatmul.mubr.bf16.gmra.mrb[0].mxu0 %v727
      %v1148 = vpop.f32.mrb[0].mxu0
      %v1149 = vadd.f32 %v1004, %v1148
      %v1150 = vpop.f32.mrb[0].mxu0
      %v1151 = vpop.f32.mrb[0].mxu0
      %v1152 = vadd.f32 %v1007, %v1151
      %v1153 = vpop.f32.mrb[0].mxu0
      %1154 = vmatprep.mubr.bf16.mxu0 0
      %1155 = vmatmul.mubr.bf16.gmra.mrb[0].mxu0 %v729
      %v1156 = vpop.f32.mrb[0].mxu0
      %v1157 = vadd.f32 %v1012, %v1156
      %v1158 = vpop.f32.mrb[0].mxu0
      %v1159 = vpop.f32.mrb[0].mxu0
      %v1160 = vadd.f32 %v1015, %v1159
      %v1161 = vpop.f32.mrb[0].mxu0
      %1162 = vdwg.mxu0
      %vm1179 = vcmask 1046528
      %v1180 = vrot.slane %v715, 1
      %v1181 = vrot.slane %v716, 1
      %v1182 = vsel %vm1179, %v1180, %v1181
      %v1183 = vrot.slane %v717, 1
      %v1184 = vrot.slane %v718, 1
      %v1185 = vsel %vm1179, %v1183, %v1184
      %v1186 = vrot.slane %v719, 1
      %v1187 = vrot.slane %v720, 1
      %v1188 = vsel %vm1179, %v1186, %v1187
      %v1189 = vrot.slane %v721, 1
      %v1190 = vrot.slane %v722, 1
      %v1191 = vsel %vm1179, %v1189, %v1190
      %v1192 = vrot.slane %v723, 1
      %v1193 = vrot.slane %v724, 1
      %v1194 = vsel %vm1179, %v1192, %v1193
      %v1195 = vrot.slane %v725, 1
      %v1196 = vrot.slane %v726, 1
      %v1197 = vsel %vm1179, %v1195, %v1196
      %v1198 = vrot.slane %v727, 1
      %v1199 = vrot.slane %v728, 1
      %v1200 = vsel %vm1179, %v1198, %v1199
      %v1201 = vrot.slane %v729, 1
      %v1202 = vrot.slane %v730, 1
      %v1203 = vsel %vm1179, %v1201, %v1202
      %s1212 = scalar_lea.vmem %s3, 128
      %v1213 = vld [vmem:[%s1212] sm:$0xf]
      %v1214 = vld [vmem:[%s1212 + $0x4] sm:$0xf]
      %v1215 = vld [vmem:[%s1212 + $0x8] sm:$0xf]
      %v1216 = vld [vmem:[%s1212 + $0xc] sm:$0xf]
      %v1217 = vld [vmem:[%s1212 + $0x10] sm:$0xf]
      %v1218 = vld [vmem:[%s1212 + $0x14] sm:$0xf]
      %v1219 = vld [vmem:[%s1212 + $0x18] sm:$0xf]
      %v1220 = vld [vmem:[%s1212 + $0x1c] sm:$0xf]
      %v1221 = vld [vmem:[%s1212 + $0x20] sm:$0xf]
      %v1222 = vld [vmem:[%s1212 + $0x24] sm:$0xf]
      %v1223 = vld [vmem:[%s1212 + $0x28] sm:$0xf]
      %v1224 = vld [vmem:[%s1212 + $0x2c] sm:$0xf]
      %v1225 = vld [vmem:[%s1212 + $0x30] sm:$0xf]
      %v1226 = vld [vmem:[%s1212 + $0x34] sm:$0xf]
      %v1227 = vld [vmem:[%s1212 + $0x38] sm:$0xf]
      %v1228 = vld [vmem:[%s1212 + $0x3c] sm:$0xf]
      %v1245 = vunpack.c.l.b16 %v1213
      %v1246 = vunpack.c.l.b16 %v1214
      %v1247 = vunpack.c.l.b16 %v1215
      %v1248 = vunpack.c.l.b16 %v1216
      %v1249 = vunpack.c.l.b16 %v1217
      %v1250 = vunpack.c.l.b16 %v1218
      %v1251 = vunpack.c.l.b16 %v1219
      %v1252 = vunpack.c.l.b16 %v1220
      %v1253 = vunpack.c.l.b16 %v1221
      %v1254 = vunpack.c.l.b16 %v1222
      %v1255 = vunpack.c.l.b16 %v1223
      %v1256 = vunpack.c.l.b16 %v1224
      %v1257 = vunpack.c.l.b16 %v1225
      %v1258 = vunpack.c.l.b16 %v1226
      %v1259 = vunpack.c.l.b16 %v1227
      %v1260 = vunpack.c.l.b16 %v1228
      %v1261 = vpack.c.b16 %v1246, %v1245
      %v1262 = vpack.c.b16 %v1248, %v1247
      %v1263 = vpack.c.b16 %v1250, %v1249
      %v1264 = vpack.c.b16 %v1252, %v1251
      %v1265 = vpack.c.b16 %v1254, %v1253
      %v1266 = vpack.c.b16 %v1256, %v1255
      %v1267 = vpack.c.b16 %v1258, %v1257
      %v1268 = vpack.c.b16 %v1260, %v1259
      %1277 = vmatprep.subr.bf16.mxu0 0
      %1278 = vmatpush1.bf16.msra.mxu0 %v1261
      %1279 = vmatprep.subr.bf16.mxu0 0
      %1280 = vmatpush1.bf16.msra.mxu0 %v1262
      %1281 = vmatprep.subr.bf16.mxu0 0
      %1282 = vmatpush1.bf16.msra.mxu0 %v1263
      %1283 = vmatprep.subr.bf16.mxu0 0
      %1284 = vmatpush1.bf16.msra.mxu0 %v1264
      %1285 = vmatprep.subr.bf16.mxu0 0
      %1286 = vmatpush1.bf16.msra.mxu0 %v1265
      %1287 = vmatprep.subr.bf16.mxu0 0
      %1288 = vmatpush1.bf16.msra.mxu0 %v1266
      %1289 = vmatprep.subr.bf16.mxu0 0
      %1290 = vmatpush1.bf16.msra.mxu0 %v1267
      %1291 = vmatprep.subr.bf16.mxu0 0
      %1292 = vmatpush1.bf16.msra.mxu0 %v1268
      %1293 = vmatprep.subr.bf16.mxu0 0
      %1294 = vmatpush1.bf16.msra.mxu0 0
      %1295 = vmatprep.subr.bf16.mxu0 0
      %1296 = vmatpush1.bf16.msra.mxu0 0
      %1297 = vmatprep.subr.bf16.mxu0 0
      %1298 = vmatpush1.bf16.msra.mxu0 0
      %1299 = vmatprep.subr.bf16.mxu0 0
      %1300 = vmatpush1.bf16.msra.mxu0 0
      %1301 = vmatprep.subr.bf16.mxu0 0
      %1302 = vmatpush1.bf16.msra.mxu0 0
      %1303 = vmatprep.subr.bf16.mxu0 0
      %1304 = vmatpush1.bf16.msra.mxu0 0
      %1305 = vmatprep.subr.bf16.mxu0 0
      %1306 = vmatpush1.bf16.msra.mxu0 0
      %1307 = vmatprep.subr.bf16.mxu0 0
      %1308 = vmatpush1.bf16.msra.mxu0 0
      %1309 = vmatprep.mubr.bf16.mxu0 0
      %1310 = vmatmul.mubr.bf16.gmra.mrb[0].mxu0 %v1182
      %v1311 = vpop.f32.mrb[0].mxu0
      %v1312 = vadd.f32 0.0, %v1311
      %v1313 = vpop.f32.mrb[0].mxu0
      %v1314 = vpop.f32.mrb[0].mxu0
      %v1315 = vadd.f32 0.0, %v1314
      %v1316 = vpop.f32.mrb[0].mxu0
      %1317 = vmatprep.mubr.bf16.mxu0 0
      %1318 = vmatmul.mubr.bf16.gmra.mrb[0].mxu0 %v1185
      %v1319 = vpop.f32.mrb[0].mxu0
      %v1320 = vadd.f32 0.0, %v1319
      %v1321 = vpop.f32.mrb[0].mxu0
      %v1322 = vpop.f32.mrb[0].mxu0
      %v1323 = vadd.f32 0.0, %v1322
      %v1324 = vpop.f32.mrb[0].mxu0
      %1325 = vmatprep.mubr.bf16.mxu0 0
      %1326 = vmatmul.mubr.bf16.gmra.mrb[0].mxu0 %v1188
      %v1327 = vpop.f32.mrb[0].mxu0
      %v1328 = vadd.f32 0.0, %v1327
      %v1329 = vpop.f32.mrb[0].mxu0
      %v1330 = vpop.f32.mrb[0].mxu0
      %v1331 = vadd.f32 0.0, %v1330
      %v1332 = vpop.f32.mrb[0].mxu0
      %1333 = vmatprep.mubr.bf16.mxu0 0
      %1334 = vmatmul.mubr.bf16.gmra.mrb[0].mxu0 %v1191
      %v1335 = vpop.f32.mrb[0].mxu0
      %v1336 = vadd.f32 0.0, %v1335
      %v1337 = vpop.f32.mrb[0].mxu0
      %v1338 = vpop.f32.mrb[0].mxu0
      %v1339 = vadd.f32 0.0, %v1338
      %v1340 = vpop.f32.mrb[0].mxu0
      %1341 = vmatprep.mubr.bf16.mxu0 0
      %1342 = vmatmul.mubr.bf16.gmra.mrb[0].mxu0 %v1194
      %v1343 = vpop.f32.mrb[0].mxu0
      %v1344 = vadd.f32 0.0, %v1343
      %v1345 = vpop.f32.mrb[0].mxu0
      %v1346 = vpop.f32.mrb[0].mxu0
      %v1347 = vadd.f32 0.0, %v1346
      %v1348 = vpop.f32.mrb[0].mxu0
      %1349 = vmatprep.mubr.bf16.mxu0 0
      %1350 = vmatmul.mubr.bf16.gmra.mrb[0].mxu0 %v1197
      %v1351 = vpop.f32.mrb[0].mxu0
      %v1352 = vadd.f32 0.0, %v1351
      %v1353 = vpop.f32.mrb[0].mxu0
      %v1354 = vpop.f32.mrb[0].mxu0
      %v1355 = vadd.f32 0.0, %v1354
      %v1356 = vpop.f32.mrb[0].mxu0
      %1357 = vmatprep.mubr.bf16.mxu0 0
      %1358 = vmatmul.mubr.bf16.gmra.mrb[0].mxu0 %v1200
      %v1359 = vpop.f32.mrb[0].mxu0
      %v1360 = vadd.f32 0.0, %v1359
      %v1361 = vpop.f32.mrb[0].mxu0
      %v1362 = vpop.f32.mrb[0].mxu0
      %v1363 = vadd.f32 0.0, %v1362
      %v1364 = vpop.f32.mrb[0].mxu0
      %1365 = vmatprep.mubr.bf16.mxu0 0
      %1366 = vmatmul.mubr.bf16.gmra.mrb[0].mxu0 %v1203
      %v1367 = vpop.f32.mrb[0].mxu0
      %v1368 = vadd.f32 0.0, %v1367
      %v1369 = vpop.f32.mrb[0].mxu0
      %v1370 = vpop.f32.mrb[0].mxu0
      %v1371 = vadd.f32 0.0, %v1370
      %v1372 = vpop.f32.mrb[0].mxu0
      %1373 = vdwg.mxu0
      %v1374 = vadd.f32 %v1101, %v1312
      %v1375 = vadd.f32 %v1104, %v1315
      %v1376 = vadd.f32 %v1109, %v1320
      %v1377 = vadd.f32 %v1112, %v1323
      %v1378 = vadd.f32 %v1117, %v1328
      %v1379 = vadd.f32 %v1120, %v1331
      %v1380 = vadd.f32 %v1125, %v1336
      %v1381 = vadd.f32 %v1128, %v1339
      %v1382 = vadd.f32 %v1133, %v1344
      %v1383 = vadd.f32 %v1136, %v1347
      %v1384 = vadd.f32 %v1141, %v1352
      %v1385 = vadd.f32 %v1144, %v1355
      %v1386 = vadd.f32 %v1149, %v1360
      %v1387 = vadd.f32 %v1152, %v1363
      %v1388 = vadd.f32 %v1157, %v1368
      %v1389 = vadd.f32 %v1160, %v1371
      %s1390 = scalar_lea.vmem %s3, 192
      %v1391 = vld [vmem:[%s1390] sm:$0xf]
      %v1392 = vld [vmem:[%s1390 + $0x4] sm:$0xf]
      %v1393 = vld [vmem:[%s1390 + $0x8] sm:$0xf]
      %v1394 = vld [vmem:[%s1390 + $0xc] sm:$0xf]
      %v1395 = vld [vmem:[%s1390 + $0x10] sm:$0xf]
      %v1396 = vld [vmem:[%s1390 + $0x14] sm:$0xf]
      %v1397 = vld [vmem:[%s1390 + $0x18] sm:$0xf]
      %v1398 = vld [vmem:[%s1390 + $0x1c] sm:$0xf]
      %v1399 = vld [vmem:[%s1390 + $0x20] sm:$0xf]
      %v1400 = vld [vmem:[%s1390 + $0x24] sm:$0xf]
      %v1401 = vld [vmem:[%s1390 + $0x28] sm:$0xf]
      %v1402 = vld [vmem:[%s1390 + $0x2c] sm:$0xf]
      %v1403 = vld [vmem:[%s1390 + $0x30] sm:$0xf]
      %v1404 = vld [vmem:[%s1390 + $0x34] sm:$0xf]
      %v1405 = vld [vmem:[%s1390 + $0x38] sm:$0xf]
      %v1406 = vld [vmem:[%s1390 + $0x3c] sm:$0xf]
      %v1423 = vunpack.c.l.b16 %v1391
      %v1424 = vunpack.c.l.b16 %v1392
      %v1425 = vunpack.c.l.b16 %v1393
      %v1426 = vunpack.c.l.b16 %v1394
      %v1427 = vunpack.c.l.b16 %v1395
      %v1428 = vunpack.c.l.b16 %v1396
      %v1429 = vunpack.c.l.b16 %v1397
      %v1430 = vunpack.c.l.b16 %v1398
      %v1431 = vunpack.c.l.b16 %v1399
      %v1432 = vunpack.c.l.b16 %v1400
      %v1433 = vunpack.c.l.b16 %v1401
      %v1434 = vunpack.c.l.b16 %v1402
      %v1435 = vunpack.c.l.b16 %v1403
      %v1436 = vunpack.c.l.b16 %v1404
      %v1437 = vunpack.c.l.b16 %v1405
      %v1438 = vunpack.c.l.b16 %v1406
      %v1439 = vpack.c.b16 %v1424, %v1423
      %v1440 = vpack.c.b16 %v1426, %v1425
      %v1441 = vpack.c.b16 %v1428, %v1427
      %v1442 = vpack.c.b16 %v1430, %v1429
      %v1443 = vpack.c.b16 %v1432, %v1431
      %v1444 = vpack.c.b16 %v1434, %v1433
      %v1445 = vpack.c.b16 %v1436, %v1435
      %v1446 = vpack.c.b16 %v1438, %v1437
      %1455 = vmatprep.subr.bf16.mxu0 0
      %1456 = vmatpush1.bf16.msra.mxu0 %v1439
      %1457 = vmatprep.subr.bf16.mxu0 0
      %1458 = vmatpush1.bf16.msra.mxu0 %v1440
      %1459 = vmatprep.subr.bf16.mxu0 0
      %1460 = vmatpush1.bf16.msra.mxu0 %v1441
      %1461 = vmatprep.subr.bf16.mxu0 0
      %1462 = vmatpush1.bf16.msra.mxu0 %v1442
      %1463 = vmatprep.subr.bf16.mxu0 0
      %1464 = vmatpush1.bf16.msra.mxu0 %v1443
      %1465 = vmatprep.subr.bf16.mxu0 0
      %1466 = vmatpush1.bf16.msra.mxu0 %v1444
      %1467 = vmatprep.subr.bf16.mxu0 0
      %1468 = vmatpush1.bf16.msra.mxu0 %v1445
      %1469 = vmatprep.subr.bf16.mxu0 0
      %1470 = vmatpush1.bf16.msra.mxu0 %v1446
      %1471 = vmatprep.subr.bf16.mxu0 0
      %1472 = vmatpush1.bf16.msra.mxu0 0
      %1473 = vmatprep.subr.bf16.mxu0 0
      %1474 = vmatpush1.bf16.msra.mxu0 0
      %1475 = vmatprep.subr.bf16.mxu0 0
      %1476 = vmatpush1.bf16.msra.mxu0 0
      %1477 = vmatprep.subr.bf16.mxu0 0
      %1478 = vmatpush1.bf16.msra.mxu0 0
      %1479 = vmatprep.subr.bf16.mxu0 0
      %1480 = vmatpush1.bf16.msra.mxu0 0
      %1481 = vmatprep.subr.bf16.mxu0 0
      %1482 = vmatpush1.bf16.msra.mxu0 0
      %1483 = vmatprep.subr.bf16.mxu0 0
      %1484 = vmatpush1.bf16.msra.mxu0 0
      %1485 = vmatprep.subr.bf16.mxu0 0
      %1486 = vmatpush1.bf16.msra.mxu0 0
      %1487 = vmatprep.mubr.bf16.mxu0 0
      %1488 = vmatmul.mubr.bf16.gmra.mrb[0].mxu0 %v717
      %v1489 = vpop.f32.mrb[0].mxu0
      %v1490 = vadd.f32 0.0, %v1489
      %v1491 = vpop.f32.mrb[0].mxu0
      %v1492 = vpop.f32.mrb[0].mxu0
      %v1493 = vadd.f32 0.0, %v1492
      %v1494 = vpop.f32.mrb[0].mxu0
      %1495 = vmatprep.mubr.bf16.mxu0 0
      %1496 = vmatmul.mubr.bf16.gmra.mrb[0].mxu0 %v719
      %v1497 = vpop.f32.mrb[0].mxu0
      %v1498 = vadd.f32 0.0, %v1497
      %v1499 = vpop.f32.mrb[0].mxu0
      %v1500 = vpop.f32.mrb[0].mxu0
      %v1501 = vadd.f32 0.0, %v1500
      %v1502 = vpop.f32.mrb[0].mxu0
      %1503 = vmatprep.mubr.bf16.mxu0 0
      %1504 = vmatmul.mubr.bf16.gmra.mrb[0].mxu0 %v721
      %v1505 = vpop.f32.mrb[0].mxu0
      %v1506 = vadd.f32 0.0, %v1505
      %v1507 = vpop.f32.mrb[0].mxu0
      %v1508 = vpop.f32.mrb[0].mxu0
      %v1509 = vadd.f32 0.0, %v1508
      %v1510 = vpop.f32.mrb[0].mxu0
      %1511 = vmatprep.mubr.bf16.mxu0 0
      %1512 = vmatmul.mubr.bf16.gmra.mrb[0].mxu0 %v723
      %v1513 = vpop.f32.mrb[0].mxu0
      %v1514 = vadd.f32 0.0, %v1513
      %v1515 = vpop.f32.mrb[0].mxu0
      %v1516 = vpop.f32.mrb[0].mxu0
      %v1517 = vadd.f32 0.0, %v1516
      %v1518 = vpop.f32.mrb[0].mxu0
      %1519 = vmatprep.mubr.bf16.mxu0 0
      %1520 = vmatmul.mubr.bf16.gmra.mrb[0].mxu0 %v725
      %v1521 = vpop.f32.mrb[0].mxu0
      %v1522 = vadd.f32 0.0, %v1521
      %v1523 = vpop.f32.mrb[0].mxu0
      %v1524 = vpop.f32.mrb[0].mxu0
      %v1525 = vadd.f32 0.0, %v1524
      %v1526 = vpop.f32.mrb[0].mxu0
      %1527 = vmatprep.mubr.bf16.mxu0 0
      %1528 = vmatmul.mubr.bf16.gmra.mrb[0].mxu0 %v727
      %v1529 = vpop.f32.mrb[0].mxu0
      %v1530 = vadd.f32 0.0, %v1529
      %v1531 = vpop.f32.mrb[0].mxu0
      %v1532 = vpop.f32.mrb[0].mxu0
      %v1533 = vadd.f32 0.0, %v1532
      %v1534 = vpop.f32.mrb[0].mxu0
      %1535 = vmatprep.mubr.bf16.mxu0 0
      %1536 = vmatmul.mubr.bf16.gmra.mrb[0].mxu0 %v729
      %v1537 = vpop.f32.mrb[0].mxu0
      %v1538 = vadd.f32 0.0, %v1537
      %v1539 = vpop.f32.mrb[0].mxu0
      %v1540 = vpop.f32.mrb[0].mxu0
      %v1541 = vadd.f32 0.0, %v1540
      %v1542 = vpop.f32.mrb[0].mxu0
      %1543 = vmatprep.mubr.bf16.mxu0 0
      %1544 = vmatmul.mubr.bf16.gmra.mrb[0].mxu0 %v731
      %v1545 = vpop.f32.mrb[0].mxu0
      %v1546 = vadd.f32 0.0, %v1545
      %v1547 = vpop.f32.mrb[0].mxu0
      %v1548 = vpop.f32.mrb[0].mxu0
      %v1549 = vadd.f32 0.0, %v1548
      %v1550 = vpop.f32.mrb[0].mxu0
      %1551 = vdwg.mxu0
      %v1552 = vadd.f32 %v1374, %v1490
      %v1553 = vadd.f32 %v1375, %v1493
      %v1554 = vadd.f32 %v1376, %v1498
      %v1555 = vadd.f32 %v1377, %v1501
      %v1556 = vadd.f32 %v1378, %v1506
      %v1557 = vadd.f32 %v1379, %v1509
      %v1558 = vadd.f32 %v1380, %v1514
      %v1559 = vadd.f32 %v1381, %v1517
      %v1560 = vadd.f32 %v1382, %v1522
      %v1561 = vadd.f32 %v1383, %v1525
      %v1562 = vadd.f32 %v1384, %v1530
      %v1563 = vadd.f32 %v1385, %v1533
      %v1564 = vadd.f32 %v1386, %v1538
      %v1565 = vadd.f32 %v1387, %v1541
      %v1566 = vadd.f32 %v1388, %v1546
      %v1567 = vadd.f32 %v1389, %v1549
      %v1569 = vshrl.u32 %v731, 16
      %v1571 = vshll.u32 %v731, 16
      %v1573 = vrot.slane %v1571, 1
      %v1574 = vor.u32 %v1569, %v1573
      %v1576 = vshll.u32 %v732, 16
      %v1578 = vrot.slane %v1576, 1
      %v1579 = vsel %vm751, %v1574, %v1578
      %s1581 = scalar_lea.vmem %s3, 256
      %v1582 = vld [vmem:[%s1581] sm:$0xf]
      %v1583 = vld [vmem:[%s1581 + $0x4] sm:$0xf]
      %v1584 = vld [vmem:[%s1581 + $0x8] sm:$0xf]
      %v1585 = vld [vmem:[%s1581 + $0xc] sm:$0xf]
      %v1586 = vld [vmem:[%s1581 + $0x10] sm:$0xf]
      %v1587 = vld [vmem:[%s1581 + $0x14] sm:$0xf]
      %v1588 = vld [vmem:[%s1581 + $0x18] sm:$0xf]
      %v1589 = vld [vmem:[%s1581 + $0x1c] sm:$0xf]
      %v1590 = vld [vmem:[%s1581 + $0x20] sm:$0xf]
      %v1591 = vld [vmem:[%s1581 + $0x24] sm:$0xf]
      %v1592 = vld [vmem:[%s1581 + $0x28] sm:$0xf]
      %v1593 = vld [vmem:[%s1581 + $0x2c] sm:$0xf]
      %v1594 = vld [vmem:[%s1581 + $0x30] sm:$0xf]
      %v1595 = vld [vmem:[%s1581 + $0x34] sm:$0xf]
      %v1596 = vld [vmem:[%s1581 + $0x38] sm:$0xf]
      %v1597 = vld [vmem:[%s1581 + $0x3c] sm:$0xf]
      %v1614 = vunpack.c.l.b16 %v1582
      %v1615 = vunpack.c.l.b16 %v1583
      %v1616 = vunpack.c.l.b16 %v1584
      %v1617 = vunpack.c.l.b16 %v1585
      %v1618 = vunpack.c.l.b16 %v1586
      %v1619 = vunpack.c.l.b16 %v1587
      %v1620 = vunpack.c.l.b16 %v1588
      %v1621 = vunpack.c.l.b16 %v1589
      %v1622 = vunpack.c.l.b16 %v1590
      %v1623 = vunpack.c.l.b16 %v1591
      %v1624 = vunpack.c.l.b16 %v1592
      %v1625 = vunpack.c.l.b16 %v1593
      %v1626 = vunpack.c.l.b16 %v1594
      %v1627 = vunpack.c.l.b16 %v1595
      %v1628 = vunpack.c.l.b16 %v1596
      %v1629 = vunpack.c.l.b16 %v1597
      %v1630 = vpack.c.b16 %v1615, %v1614
      %v1631 = vpack.c.b16 %v1617, %v1616
      %v1632 = vpack.c.b16 %v1619, %v1618
      %v1633 = vpack.c.b16 %v1621, %v1620
      %v1634 = vpack.c.b16 %v1623, %v1622
      %v1635 = vpack.c.b16 %v1625, %v1624
      %v1636 = vpack.c.b16 %v1627, %v1626
      %v1637 = vpack.c.b16 %v1629, %v1628
      %1646 = vmatprep.subr.bf16.mxu0 0
      %1647 = vmatpush1.bf16.msra.mxu0 %v1630
      %1648 = vmatprep.subr.bf16.mxu0 0
      %1649 = vmatpush1.bf16.msra.mxu0 %v1631
      %1650 = vmatprep.subr.bf16.mxu0 0
      %1651 = vmatpush1.bf16.msra.mxu0 %v1632
      %1652 = vmatprep.subr.bf16.mxu0 0
      %1653 = vmatpush1.bf16.msra.mxu0 %v1633
      %1654 = vmatprep.subr.bf16.mxu0 0
      %1655 = vmatpush1.bf16.msra.mxu0 %v1634
      %1656 = vmatprep.subr.bf16.mxu0 0
      %1657 = vmatpush1.bf16.msra.mxu0 %v1635
      %1658 = vmatprep.subr.bf16.mxu0 0
      %1659 = vmatpush1.bf16.msra.mxu0 %v1636
      %1660 = vmatprep.subr.bf16.mxu0 0
      %1661 = vmatpush1.bf16.msra.mxu0 %v1637
      %1662 = vmatprep.subr.bf16.mxu0 0
      %1663 = vmatpush1.bf16.msra.mxu0 0
      %1664 = vmatprep.subr.bf16.mxu0 0
      %1665 = vmatpush1.bf16.msra.mxu0 0
      %1666 = vmatprep.subr.bf16.mxu0 0
      %1667 = vmatpush1.bf16.msra.mxu0 0
      %1668 = vmatprep.subr.bf16.mxu0 0
      %1669 = vmatpush1.bf16.msra.mxu0 0
      %1670 = vmatprep.subr.bf16.mxu0 0
      %1671 = vmatpush1.bf16.msra.mxu0 0
      %1672 = vmatprep.subr.bf16.mxu0 0
      %1673 = vmatpush1.bf16.msra.mxu0 0
      %1674 = vmatprep.subr.bf16.mxu0 0
      %1675 = vmatpush1.bf16.msra.mxu0 0
      %1676 = vmatprep.subr.bf16.mxu0 0
      %1677 = vmatpush1.bf16.msra.mxu0 0
      %1678 = vmatprep.mubr.bf16.mxu0 0
      %1679 = vmatmul.mubr.bf16.gmra.mrb[0].mxu0 %v775
      %v1680 = vpop.f32.mrb[0].mxu0
      %v1681 = vadd.f32 0.0, %v1680
      %v1682 = vpop.f32.mrb[0].mxu0
      %v1683 = vpop.f32.mrb[0].mxu0
      %v1684 = vadd.f32 0.0, %v1683
      %v1685 = vpop.f32.mrb[0].mxu0
      %1686 = vmatprep.mubr.bf16.mxu0 0
      %1687 = vmatmul.mubr.bf16.gmra.mrb[0].mxu0 %v787
      %v1688 = vpop.f32.mrb[0].mxu0
      %v1689 = vadd.f32 0.0, %v1688
      %v1690 = vpop.f32.mrb[0].mxu0
      %v1691 = vpop.f32.mrb[0].mxu0
      %v1692 = vadd.f32 0.0, %v1691
      %v1693 = vpop.f32.mrb[0].mxu0
      %1694 = vmatprep.mubr.bf16.mxu0 0
      %1695 = vmatmul.mubr.bf16.gmra.mrb[0].mxu0 %v799
      %v1696 = vpop.f32.mrb[0].mxu0
      %v1697 = vadd.f32 0.0, %v1696
      %v1698 = vpop.f32.mrb[0].mxu0
      %v1699 = vpop.f32.mrb[0].mxu0
      %v1700 = vadd.f32 0.0, %v1699
      %v1701 = vpop.f32.mrb[0].mxu0
      %1702 = vmatprep.mubr.bf16.mxu0 0
      %1703 = vmatmul.mubr.bf16.gmra.mrb[0].mxu0 %v811
      %v1704 = vpop.f32.mrb[0].mxu0
      %v1705 = vadd.f32 0.0, %v1704
      %v1706 = vpop.f32.mrb[0].mxu0
      %v1707 = vpop.f32.mrb[0].mxu0
      %v1708 = vadd.f32 0.0, %v1707
      %v1709 = vpop.f32.mrb[0].mxu0
      %1710 = vmatprep.mubr.bf16.mxu0 0
      %1711 = vmatmul.mubr.bf16.gmra.mrb[0].mxu0 %v823
      %v1712 = vpop.f32.mrb[0].mxu0
      %v1713 = vadd.f32 0.0, %v1712
      %v1714 = vpop.f32.mrb[0].mxu0
      %v1715 = vpop.f32.mrb[0].mxu0
      %v1716 = vadd.f32 0.0, %v1715
      %v1717 = vpop.f32.mrb[0].mxu0
      %1718 = vmatprep.mubr.bf16.mxu0 0
      %1719 = vmatmul.mubr.bf16.gmra.mrb[0].mxu0 %v835
      %v1720 = vpop.f32.mrb[0].mxu0
      %v1721 = vadd.f32 0.0, %v1720
      %v1722 = vpop.f32.mrb[0].mxu0
      %v1723 = vpop.f32.mrb[0].mxu0
      %v1724 = vadd.f32 0.0, %v1723
      %v1725 = vpop.f32.mrb[0].mxu0
      %1726 = vmatprep.mubr.bf16.mxu0 0
      %1727 = vmatmul.mubr.bf16.gmra.mrb[0].mxu0 %v847
      %v1728 = vpop.f32.mrb[0].mxu0
      %v1729 = vadd.f32 0.0, %v1728
      %v1730 = vpop.f32.mrb[0].mxu0
      %v1731 = vpop.f32.mrb[0].mxu0
      %v1732 = vadd.f32 0.0, %v1731
      %v1733 = vpop.f32.mrb[0].mxu0
      %1734 = vmatprep.mubr.bf16.mxu0 0
      %1735 = vmatmul.mubr.bf16.gmra.mrb[0].mxu0 %v1579
      %v1736 = vpop.f32.mrb[0].mxu0
      %v1737 = vadd.f32 0.0, %v1736
      %v1738 = vpop.f32.mrb[0].mxu0
      %v1739 = vpop.f32.mrb[0].mxu0
      %v1740 = vadd.f32 0.0, %v1739
      %v1741 = vpop.f32.mrb[0].mxu0
      %1742 = vdwg.mxu0
      %v1743 = vadd.f32 %v1552, %v1681
      %v1744 = vadd.f32 %v1553, %v1684
      %v1745 = vadd.f32 %v1554, %v1689
      %v1746 = vadd.f32 %v1555, %v1692
      %v1747 = vadd.f32 %v1556, %v1697
      %v1748 = vadd.f32 %v1557, %v1700
      %v1749 = vadd.f32 %v1558, %v1705
      %v1750 = vadd.f32 %v1559, %v1708
      %v1751 = vadd.f32 %v1560, %v1713
      %v1752 = vadd.f32 %v1561, %v1716
      %v1753 = vadd.f32 %v1562, %v1721
      %v1754 = vadd.f32 %v1563, %v1724
      %v1755 = vadd.f32 %v1564, %v1729
      %v1756 = vadd.f32 %v1565, %v1732
      %v1757 = vadd.f32 %v1566, %v1737
      %v1758 = vadd.f32 %v1567, %v1740
      %v1761 = vrot.slane %v731, 1
      %v1762 = vrot.slane %v732, 1
      %v1763 = vsel %vm1179, %v1761, %v1762
      %s1765 = scalar_lea.vmem %s3, 320
      %v1766 = vld [vmem:[%s1765] sm:$0xf]
      %v1767 = vld [vmem:[%s1765 + $0x4] sm:$0xf]
      %v1768 = vld [vmem:[%s1765 + $0x8] sm:$0xf]
      %v1769 = vld [vmem:[%s1765 + $0xc] sm:$0xf]
      %v1770 = vld [vmem:[%s1765 + $0x10] sm:$0xf]
      %v1771 = vld [vmem:[%s1765 + $0x14] sm:$0xf]
      %v1772 = vld [vmem:[%s1765 + $0x18] sm:$0xf]
      %v1773 = vld [vmem:[%s1765 + $0x1c] sm:$0xf]
      %v1774 = vld [vmem:[%s1765 + $0x20] sm:$0xf]
      %v1775 = vld [vmem:[%s1765 + $0x24] sm:$0xf]
      %v1776 = vld [vmem:[%s1765 + $0x28] sm:$0xf]
      %v1777 = vld [vmem:[%s1765 + $0x2c] sm:$0xf]
      %v1778 = vld [vmem:[%s1765 + $0x30] sm:$0xf]
      %v1779 = vld [vmem:[%s1765 + $0x34] sm:$0xf]
      %v1780 = vld [vmem:[%s1765 + $0x38] sm:$0xf]
      %v1781 = vld [vmem:[%s1765 + $0x3c] sm:$0xf]
      %v1798 = vunpack.c.l.b16 %v1766
      %v1799 = vunpack.c.l.b16 %v1767
      %v1800 = vunpack.c.l.b16 %v1768
      %v1801 = vunpack.c.l.b16 %v1769
      %v1802 = vunpack.c.l.b16 %v1770
      %v1803 = vunpack.c.l.b16 %v1771
      %v1804 = vunpack.c.l.b16 %v1772
      %v1805 = vunpack.c.l.b16 %v1773
      %v1806 = vunpack.c.l.b16 %v1774
      %v1807 = vunpack.c.l.b16 %v1775
      %v1808 = vunpack.c.l.b16 %v1776
      %v1809 = vunpack.c.l.b16 %v1777
      %v1810 = vunpack.c.l.b16 %v1778
      %v1811 = vunpack.c.l.b16 %v1779
      %v1812 = vunpack.c.l.b16 %v1780
      %v1813 = vunpack.c.l.b16 %v1781
      %v1814 = vpack.c.b16 %v1799, %v1798
      %v1815 = vpack.c.b16 %v1801, %v1800
      %v1816 = vpack.c.b16 %v1803, %v1802
      %v1817 = vpack.c.b16 %v1805, %v1804
      %v1818 = vpack.c.b16 %v1807, %v1806
      %v1819 = vpack.c.b16 %v1809, %v1808
      %v1820 = vpack.c.b16 %v1811, %v1810
      %v1821 = vpack.c.b16 %v1813, %v1812
      %1830 = vmatprep.subr.bf16.mxu0 0
      %1831 = vmatpush1.bf16.msra.mxu0 %v1814
      %1832 = vmatprep.subr.bf16.mxu0 0
      %1833 = vmatpush1.bf16.msra.mxu0 %v1815
      %1834 = vmatprep.subr.bf16.mxu0 0
      %1835 = vmatpush1.bf16.msra.mxu0 %v1816
      %1836 = vmatprep.subr.bf16.mxu0 0
      %1837 = vmatpush1.bf16.msra.mxu0 %v1817
      %1838 = vmatprep.subr.bf16.mxu0 0
      %1839 = vmatpush1.bf16.msra.mxu0 %v1818
      %1840 = vmatprep.subr.bf16.mxu0 0
      %1841 = vmatpush1.bf16.msra.mxu0 %v1819
      %1842 = vmatprep.subr.bf16.mxu0 0
      %1843 = vmatpush1.bf16.msra.mxu0 %v1820
      %1844 = vmatprep.subr.bf16.mxu0 0
      %1845 = vmatpush1.bf16.msra.mxu0 %v1821
      %1846 = vmatprep.subr.bf16.mxu0 0
      %1847 = vmatpush1.bf16.msra.mxu0 0
      %1848 = vmatprep.subr.bf16.mxu0 0
      %1849 = vmatpush1.bf16.msra.mxu0 0
      %1850 = vmatprep.subr.bf16.mxu0 0
      %1851 = vmatpush1.bf16.msra.mxu0 0
      %1852 = vmatprep.subr.bf16.mxu0 0
      %1853 = vmatpush1.bf16.msra.mxu0 0
      %1854 = vmatprep.subr.bf16.mxu0 0
      %1855 = vmatpush1.bf16.msra.mxu0 0
      %1856 = vmatprep.subr.bf16.mxu0 0
      %1857 = vmatpush1.bf16.msra.mxu0 0
      %1858 = vmatprep.subr.bf16.mxu0 0
      %1859 = vmatpush1.bf16.msra.mxu0 0
      %1860 = vmatprep.subr.bf16.mxu0 0
      %1861 = vmatpush1.bf16.msra.mxu0 0
      %1862 = vmatprep.mubr.bf16.mxu0 0
      %1863 = vmatmul.mubr.bf16.gmra.mrb[0].mxu0 %v1185
      %v1864 = vpop.f32.mrb[0].mxu0
      %v1865 = vadd.f32 0.0, %v1864
      %v1866 = vpop.f32.mrb[0].mxu0
      %v1867 = vpop.f32.mrb[0].mxu0
      %v1868 = vadd.f32 0.0, %v1867
      %v1869 = vpop.f32.mrb[0].mxu0
      %1870 = vmatprep.mubr.bf16.mxu0 0
      %1871 = vmatmul.mubr.bf16.gmra.mrb[0].mxu0 %v1188
      %v1872 = vpop.f32.mrb[0].mxu0
      %v1873 = vadd.f32 0.0, %v1872
      %v1874 = vpop.f32.mrb[0].mxu0
      %v1875 = vpop.f32.mrb[0].mxu0
      %v1876 = vadd.f32 0.0, %v1875
      %v1877 = vpop.f32.mrb[0].mxu0
      %1878 = vmatprep.mubr.bf16.mxu0 0
      %1879 = vmatmul.mubr.bf16.gmra.mrb[0].mxu0 %v1191
      %v1880 = vpop.f32.mrb[0].mxu0
      %v1881 = vadd.f32 0.0, %v1880
      %v1882 = vpop.f32.mrb[0].mxu0
      %v1883 = vpop.f32.mrb[0].mxu0
      %v1884 = vadd.f32 0.0, %v1883
      %v1885 = vpop.f32.mrb[0].mxu0
      %1886 = vmatprep.mubr.bf16.mxu0 0
      %1887 = vmatmul.mubr.bf16.gmra.mrb[0].mxu0 %v1194
      %v1888 = vpop.f32.mrb[0].mxu0
      %v1889 = vadd.f32 0.0, %v1888
      %v1890 = vpop.f32.mrb[0].mxu0
      %v1891 = vpop.f32.mrb[0].mxu0
      %v1892 = vadd.f32 0.0, %v1891
      %v1893 = vpop.f32.mrb[0].mxu0
      %1894 = vmatprep.mubr.bf16.mxu0 0
      %1895 = vmatmul.mubr.bf16.gmra.mrb[0].mxu0 %v1197
      %v1896 = vpop.f32.mrb[0].mxu0
      %v1897 = vadd.f32 0.0, %v1896
      %v1898 = vpop.f32.mrb[0].mxu0
      %v1899 = vpop.f32.mrb[0].mxu0
      %v1900 = vadd.f32 0.0, %v1899
      %v1901 = vpop.f32.mrb[0].mxu0
      %1902 = vmatprep.mubr.bf16.mxu0 0
      %1903 = vmatmul.mubr.bf16.gmra.mrb[0].mxu0 %v1200
      %v1904 = vpop.f32.mrb[0].mxu0
      %v1905 = vadd.f32 0.0, %v1904
      %v1906 = vpop.f32.mrb[0].mxu0
      %v1907 = vpop.f32.mrb[0].mxu0
      %v1908 = vadd.f32 0.0, %v1907
      %v1909 = vpop.f32.mrb[0].mxu0
      %1910 = vmatprep.mubr.bf16.mxu0 0
      %1911 = vmatmul.mubr.bf16.gmra.mrb[0].mxu0 %v1203
      %v1912 = vpop.f32.mrb[0].mxu0
      %v1913 = vadd.f32 0.0, %v1912
      %v1914 = vpop.f32.mrb[0].mxu0
      %v1915 = vpop.f32.mrb[0].mxu0
      %v1916 = vadd.f32 0.0, %v1915
      %v1917 = vpop.f32.mrb[0].mxu0
      %1918 = vmatprep.mubr.bf16.mxu0 0
      %1919 = vmatmul.mubr.bf16.gmra.mrb[0].mxu0 %v1763
      %v1920 = vpop.f32.mrb[0].mxu0
      %v1921 = vadd.f32 0.0, %v1920
      %v1922 = vpop.f32.mrb[0].mxu0
      %v1923 = vpop.f32.mrb[0].mxu0
      %v1924 = vadd.f32 0.0, %v1923
      %v1925 = vpop.f32.mrb[0].mxu0
      %1926 = vdwg.mxu0
      %v1927 = vadd.f32 %v1743, %v1865
      %v1928 = vadd.f32 %v1744, %v1868
      %v1929 = vadd.f32 %v1745, %v1873
      %v1930 = vadd.f32 %v1746, %v1876
      %v1931 = vadd.f32 %v1747, %v1881
      %v1932 = vadd.f32 %v1748, %v1884
      %v1933 = vadd.f32 %v1749, %v1889
      %v1934 = vadd.f32 %v1750, %v1892
      %v1935 = vadd.f32 %v1751, %v1897
      %v1936 = vadd.f32 %v1752, %v1900
      %v1937 = vadd.f32 %v1753, %v1905
      %v1938 = vadd.f32 %v1754, %v1908
      %v1939 = vadd.f32 %v1755, %v1913
      %v1940 = vadd.f32 %v1756, %v1916
      %v1941 = vadd.f32 %v1757, %v1921
      %v1942 = vadd.f32 %v1758, %v1924
      %s1943 = scalar_lea.vmem %s3, 384
      %v1944 = vld [vmem:[%s1943] sm:$0xf]
      %v1945 = vld [vmem:[%s1943 + $0x4] sm:$0xf]
      %v1946 = vld [vmem:[%s1943 + $0x8] sm:$0xf]
      %v1947 = vld [vmem:[%s1943 + $0xc] sm:$0xf]
      %v1948 = vld [vmem:[%s1943 + $0x10] sm:$0xf]
      %v1949 = vld [vmem:[%s1943 + $0x14] sm:$0xf]
      %v1950 = vld [vmem:[%s1943 + $0x18] sm:$0xf]
      %v1951 = vld [vmem:[%s1943 + $0x1c] sm:$0xf]
      %v1952 = vld [vmem:[%s1943 + $0x20] sm:$0xf]
      %v1953 = vld [vmem:[%s1943 + $0x24] sm:$0xf]
      %v1954 = vld [vmem:[%s1943 + $0x28] sm:$0xf]
      %v1955 = vld [vmem:[%s1943 + $0x2c] sm:$0xf]
      %v1956 = vld [vmem:[%s1943 + $0x30] sm:$0xf]
      %v1957 = vld [vmem:[%s1943 + $0x34] sm:$0xf]
      %v1958 = vld [vmem:[%s1943 + $0x38] sm:$0xf]
      %v1959 = vld [vmem:[%s1943 + $0x3c] sm:$0xf]
      %v1976 = vunpack.c.l.b16 %v1944
      %v1977 = vunpack.c.l.b16 %v1945
      %v1978 = vunpack.c.l.b16 %v1946
      %v1979 = vunpack.c.l.b16 %v1947
      %v1980 = vunpack.c.l.b16 %v1948
      %v1981 = vunpack.c.l.b16 %v1949
      %v1982 = vunpack.c.l.b16 %v1950
      %v1983 = vunpack.c.l.b16 %v1951
      %v1984 = vunpack.c.l.b16 %v1952
      %v1985 = vunpack.c.l.b16 %v1953
      %v1986 = vunpack.c.l.b16 %v1954
      %v1987 = vunpack.c.l.b16 %v1955
      %v1988 = vunpack.c.l.b16 %v1956
      %v1989 = vunpack.c.l.b16 %v1957
      %v1990 = vunpack.c.l.b16 %v1958
      %v1991 = vunpack.c.l.b16 %v1959
      %v1992 = vpack.c.b16 %v1977, %v1976
      %v1993 = vpack.c.b16 %v1979, %v1978
      %v1994 = vpack.c.b16 %v1981, %v1980
      %v1995 = vpack.c.b16 %v1983, %v1982
      %v1996 = vpack.c.b16 %v1985, %v1984
      %v1997 = vpack.c.b16 %v1987, %v1986
      %v1998 = vpack.c.b16 %v1989, %v1988
      %v1999 = vpack.c.b16 %v1991, %v1990
      %2008 = vmatprep.subr.bf16.mxu0 0
      %2009 = vmatpush1.bf16.msra.mxu0 %v1992
      %2010 = vmatprep.subr.bf16.mxu0 0
      %2011 = vmatpush1.bf16.msra.mxu0 %v1993
      %2012 = vmatprep.subr.bf16.mxu0 0
      %2013 = vmatpush1.bf16.msra.mxu0 %v1994
      %2014 = vmatprep.subr.bf16.mxu0 0
      %2015 = vmatpush1.bf16.msra.mxu0 %v1995
      %2016 = vmatprep.subr.bf16.mxu0 0
      %2017 = vmatpush1.bf16.msra.mxu0 %v1996
      %2018 = vmatprep.subr.bf16.mxu0 0
      %2019 = vmatpush1.bf16.msra.mxu0 %v1997
      %2020 = vmatprep.subr.bf16.mxu0 0
      %2021 = vmatpush1.bf16.msra.mxu0 %v1998
      %2022 = vmatprep.subr.bf16.mxu0 0
      %2023 = vmatpush1.bf16.msra.mxu0 %v1999
      %2024 = vmatprep.subr.bf16.mxu0 0
      %2025 = vmatpush1.bf16.msra.mxu0 0
      %2026 = vmatprep.subr.bf16.mxu0 0
      %2027 = vmatpush1.bf16.msra.mxu0 0
      %2028 = vmatprep.subr.bf16.mxu0 0
      %2029 = vmatpush1.bf16.msra.mxu0 0
      %2030 = vmatprep.subr.bf16.mxu0 0
      %2031 = vmatpush1.bf16.msra.mxu0 0
      %2032 = vmatprep.subr.bf16.mxu0 0
      %2033 = vmatpush1.bf16.msra.mxu0 0
      %2034 = vmatprep.subr.bf16.mxu0 0
      %2035 = vmatpush1.bf16.msra.mxu0 0
      %2036 = vmatprep.subr.bf16.mxu0 0
      %2037 = vmatpush1.bf16.msra.mxu0 0
      %2038 = vmatprep.subr.bf16.mxu0 0
      %2039 = vmatpush1.bf16.msra.mxu0 0
      %2040 = vmatprep.mubr.bf16.mxu0 0
      %2041 = vmatmul.mubr.bf16.gmra.mrb[0].mxu0 %v719
      %v2042 = vpop.f32.mrb[0].mxu0
      %v2043 = vadd.f32 0.0, %v2042
      %v2044 = vpop.f32.mrb[0].mxu0
      %v2045 = vpop.f32.mrb[0].mxu0
      %v2046 = vadd.f32 0.0, %v2045
      %v2047 = vpop.f32.mrb[0].mxu0
      %2048 = vmatprep.mubr.bf16.mxu0 0
      %2049 = vmatmul.mubr.bf16.gmra.mrb[0].mxu0 %v721
      %v2050 = vpop.f32.mrb[0].mxu0
      %v2051 = vadd.f32 0.0, %v2050
      %v2052 = vpop.f32.mrb[0].mxu0
      %v2053 = vpop.f32.mrb[0].mxu0
      %v2054 = vadd.f32 0.0, %v2053
      %v2055 = vpop.f32.mrb[0].mxu0
      %2056 = vmatprep.mubr.bf16.mxu0 0
      %2057 = vmatmul.mubr.bf16.gmra.mrb[0].mxu0 %v723
      %v2058 = vpop.f32.mrb[0].mxu0
      %v2059 = vadd.f32 0.0, %v2058
      %v2060 = vpop.f32.mrb[0].mxu0
      %v2061 = vpop.f32.mrb[0].mxu0
      %v2062 = vadd.f32 0.0, %v2061
      %v2063 = vpop.f32.mrb[0].mxu0
      %2064 = vmatprep.mubr.bf16.mxu0 0
      %2065 = vmatmul.mubr.bf16.gmra.mrb[0].mxu0 %v725
      %v2066 = vpop.f32.mrb[0].mxu0
      %v2067 = vadd.f32 0.0, %v2066
      %v2068 = vpop.f32.mrb[0].mxu0
      %v2069 = vpop.f32.mrb[0].mxu0
      %v2070 = vadd.f32 0.0, %v2069
      %v2071 = vpop.f32.mrb[0].mxu0
      %2072 = vmatprep.mubr.bf16.mxu0 0
      %2073 = vmatmul.mubr.bf16.gmra.mrb[0].mxu0 %v727
      %v2074 = vpop.f32.mrb[0].mxu0
      %v2075 = vadd.f32 0.0, %v2074
      %v2076 = vpop.f32.mrb[0].mxu0
      %v2077 = vpop.f32.mrb[0].mxu0
      %v2078 = vadd.f32 0.0, %v2077
      %v2079 = vpop.f32.mrb[0].mxu0
      %2080 = vmatprep.mubr.bf16.mxu0 0
      %2081 = vmatmul.mubr.bf16.gmra.mrb[0].mxu0 %v729
      %v2082 = vpop.f32.mrb[0].mxu0
      %v2083 = vadd.f32 0.0, %v2082
      %v2084 = vpop.f32.mrb[0].mxu0
      %v2085 = vpop.f32.mrb[0].mxu0
      %v2086 = vadd.f32 0.0, %v2085
      %v2087 = vpop.f32.mrb[0].mxu0
      %2088 = vmatprep.mubr.bf16.mxu0 0
      %2089 = vmatmul.mubr.bf16.gmra.mrb[0].mxu0 %v731
      %v2090 = vpop.f32.mrb[0].mxu0
      %v2091 = vadd.f32 0.0, %v2090
      %v2092 = vpop.f32.mrb[0].mxu0
      %v2093 = vpop.f32.mrb[0].mxu0
      %v2094 = vadd.f32 0.0, %v2093
      %v2095 = vpop.f32.mrb[0].mxu0
      %2096 = vmatprep.mubr.bf16.mxu0 0
      %2097 = vmatmul.mubr.bf16.gmra.mrb[0].mxu0 %v733
      %v2098 = vpop.f32.mrb[0].mxu0
      %v2099 = vadd.f32 0.0, %v2098
      %v2100 = vpop.f32.mrb[0].mxu0
      %v2101 = vpop.f32.mrb[0].mxu0
      %v2102 = vadd.f32 0.0, %v2101
      %v2103 = vpop.f32.mrb[0].mxu0
      %2104 = vdwg.mxu0
      %v2105 = vadd.f32 %v1927, %v2043
      %v2106 = vadd.f32 %v1928, %v2046
      %v2107 = vadd.f32 %v1929, %v2051
      %v2108 = vadd.f32 %v1930, %v2054
      %v2109 = vadd.f32 %v1931, %v2059
      %v2110 = vadd.f32 %v1932, %v2062
      %v2111 = vadd.f32 %v1933, %v2067
      %v2112 = vadd.f32 %v1934, %v2070
      %v2113 = vadd.f32 %v1935, %v2075
      %v2114 = vadd.f32 %v1936, %v2078
      %v2115 = vadd.f32 %v1937, %v2083
      %v2116 = vadd.f32 %v1938, %v2086
      %v2117 = vadd.f32 %v1939, %v2091
      %v2118 = vadd.f32 %v1940, %v2094
      %v2119 = vadd.f32 %v1941, %v2099
      %v2120 = vadd.f32 %v1942, %v2102
      %v2122 = vshrl.u32 %v733, 16
      %v2124 = vshll.u32 %v733, 16
      %v2126 = vrot.slane %v2124, 1
      %v2127 = vor.u32 %v2122, %v2126
      %v2129 = vshll.u32 %v734, 16
      %v2131 = vrot.slane %v2129, 1
      %v2132 = vsel %vm751, %v2127, %v2131
      %s2134 = scalar_lea.vmem %s3, 448
      %v2135 = vld [vmem:[%s2134] sm:$0xf]
      %v2136 = vld [vmem:[%s2134 + $0x4] sm:$0xf]
      %v2137 = vld [vmem:[%s2134 + $0x8] sm:$0xf]
      %v2138 = vld [vmem:[%s2134 + $0xc] sm:$0xf]
      %v2139 = vld [vmem:[%s2134 + $0x10] sm:$0xf]
      %v2140 = vld [vmem:[%s2134 + $0x14] sm:$0xf]
      %v2141 = vld [vmem:[%s2134 + $0x18] sm:$0xf]
      %v2142 = vld [vmem:[%s2134 + $0x1c] sm:$0xf]
      %v2143 = vld [vmem:[%s2134 + $0x20] sm:$0xf]
      %v2144 = vld [vmem:[%s2134 + $0x24] sm:$0xf]
      %v2145 = vld [vmem:[%s2134 + $0x28] sm:$0xf]
      %v2146 = vld [vmem:[%s2134 + $0x2c] sm:$0xf]
      %v2147 = vld [vmem:[%s2134 + $0x30] sm:$0xf]
      %v2148 = vld [vmem:[%s2134 + $0x34] sm:$0xf]
      %v2149 = vld [vmem:[%s2134 + $0x38] sm:$0xf]
      %v2150 = vld [vmem:[%s2134 + $0x3c] sm:$0xf]
      %v2167 = vunpack.c.l.b16 %v2135
      %v2168 = vunpack.c.l.b16 %v2136
      %v2169 = vunpack.c.l.b16 %v2137
      %v2170 = vunpack.c.l.b16 %v2138
      %v2171 = vunpack.c.l.b16 %v2139
      %v2172 = vunpack.c.l.b16 %v2140
      %v2173 = vunpack.c.l.b16 %v2141
      %v2174 = vunpack.c.l.b16 %v2142
      %v2175 = vunpack.c.l.b16 %v2143
      %v2176 = vunpack.c.l.b16 %v2144
      %v2177 = vunpack.c.l.b16 %v2145
      %v2178 = vunpack.c.l.b16 %v2146
      %v2179 = vunpack.c.l.b16 %v2147
      %v2180 = vunpack.c.l.b16 %v2148
      %v2181 = vunpack.c.l.b16 %v2149
      %v2182 = vunpack.c.l.b16 %v2150
      %v2183 = vpack.c.b16 %v2168, %v2167
      %v2184 = vpack.c.b16 %v2170, %v2169
      %v2185 = vpack.c.b16 %v2172, %v2171
      %v2186 = vpack.c.b16 %v2174, %v2173
      %v2187 = vpack.c.b16 %v2176, %v2175
      %v2188 = vpack.c.b16 %v2178, %v2177
      %v2189 = vpack.c.b16 %v2180, %v2179
      %v2190 = vpack.c.b16 %v2182, %v2181
      %2199 = vmatprep.subr.bf16.mxu0 0
      %2200 = vmatpush1.bf16.msra.mxu0 %v2183
      %2201 = vmatprep.subr.bf16.mxu0 0
      %2202 = vmatpush1.bf16.msra.mxu0 %v2184
      %2203 = vmatprep.subr.bf16.mxu0 0
      %2204 = vmatpush1.bf16.msra.mxu0 %v2185
      %2205 = vmatprep.subr.bf16.mxu0 0
      %2206 = vmatpush1.bf16.msra.mxu0 %v2186
      %2207 = vmatprep.subr.bf16.mxu0 0
      %2208 = vmatpush1.bf16.msra.mxu0 %v2187
      %2209 = vmatprep.subr.bf16.mxu0 0
      %2210 = vmatpush1.bf16.msra.mxu0 %v2188
      %2211 = vmatprep.subr.bf16.mxu0 0
      %2212 = vmatpush1.bf16.msra.mxu0 %v2189
      %2213 = vmatprep.subr.bf16.mxu0 0
      %2214 = vmatpush1.bf16.msra.mxu0 %v2190
      %2215 = vmatprep.subr.bf16.mxu0 0
      %2216 = vmatpush1.bf16.msra.mxu0 0
      %2217 = vmatprep.subr.bf16.mxu0 0
      %2218 = vmatpush1.bf16.msra.mxu0 0
      %2219 = vmatprep.subr.bf16.mxu0 0
      %2220 = vmatpush1.bf16.msra.mxu0 0
      %2221 = vmatprep.subr.bf16.mxu0 0
      %2222 = vmatpush1.bf16.msra.mxu0 0
      %2223 = vmatprep.subr.bf16.mxu0 0
      %2224 = vmatpush1.bf16.msra.mxu0 0
      %2225 = vmatprep.subr.bf16.mxu0 0
      %2226 = vmatpush1.bf16.msra.mxu0 0
      %2227 = vmatprep.subr.bf16.mxu0 0
      %2228 = vmatpush1.bf16.msra.mxu0 0
      %2229 = vmatprep.subr.bf16.mxu0 0
      %2230 = vmatpush1.bf16.msra.mxu0 0
      %2231 = vmatprep.mubr.bf16.mxu0 0
      %2232 = vmatmul.mubr.bf16.gmra.mrb[0].mxu0 %v787
      %v2233 = vpop.f32.mrb[0].mxu0
      %v2234 = vadd.f32 0.0, %v2233
      %v2235 = vpop.f32.mrb[0].mxu0
      %v2236 = vpop.f32.mrb[0].mxu0
      %v2237 = vadd.f32 0.0, %v2236
      %v2238 = vpop.f32.mrb[0].mxu0
      %2239 = vmatprep.mubr.bf16.mxu0 0
      %2240 = vmatmul.mubr.bf16.gmra.mrb[0].mxu0 %v799
      %v2241 = vpop.f32.mrb[0].mxu0
      %v2242 = vadd.f32 0.0, %v2241
      %v2243 = vpop.f32.mrb[0].mxu0
      %v2244 = vpop.f32.mrb[0].mxu0
      %v2245 = vadd.f32 0.0, %v2244
      %v2246 = vpop.f32.mrb[0].mxu0
      %2247 = vmatprep.mubr.bf16.mxu0 0
      %2248 = vmatmul.mubr.bf16.gmra.mrb[0].mxu0 %v811
      %v2249 = vpop.f32.mrb[0].mxu0
      %v2250 = vadd.f32 0.0, %v2249
      %v2251 = vpop.f32.mrb[0].mxu0
      %v2252 = vpop.f32.mrb[0].mxu0
      %v2253 = vadd.f32 0.0, %v2252
      %v2254 = vpop.f32.mrb[0].mxu0
      %2255 = vmatprep.mubr.bf16.mxu0 0
      %2256 = vmatmul.mubr.bf16.gmra.mrb[0].mxu0 %v823
      %v2257 = vpop.f32.mrb[0].mxu0
      %v2258 = vadd.f32 0.0, %v2257
      %v2259 = vpop.f32.mrb[0].mxu0
      %v2260 = vpop.f32.mrb[0].mxu0
      %v2261 = vadd.f32 0.0, %v2260
      %v2262 = vpop.f32.mrb[0].mxu0
      %2263 = vmatprep.mubr.bf16.mxu0 0
      %2264 = vmatmul.mubr.bf16.gmra.mrb[0].mxu0 %v835
      %v2265 = vpop.f32.mrb[0].mxu0
      %v2266 = vadd.f32 0.0, %v2265
      %v2267 = vpop.f32.mrb[0].mxu0
      %v2268 = vpop.f32.mrb[0].mxu0
      %v2269 = vadd.f32 0.0, %v2268
      %v2270 = vpop.f32.mrb[0].mxu0
      %2271 = vmatprep.mubr.bf16.mxu0 0
      %2272 = vmatmul.mubr.bf16.gmra.mrb[0].mxu0 %v847
      %v2273 = vpop.f32.mrb[0].mxu0
      %v2274 = vadd.f32 0.0, %v2273
      %v2275 = vpop.f32.mrb[0].mxu0
      %v2276 = vpop.f32.mrb[0].mxu0
      %v2277 = vadd.f32 0.0, %v2276
      %v2278 = vpop.f32.mrb[0].mxu0
      %2279 = vmatprep.mubr.bf16.mxu0 0
      %2280 = vmatmul.mubr.bf16.gmra.mrb[0].mxu0 %v1579
      %v2281 = vpop.f32.mrb[0].mxu0
      %v2282 = vadd.f32 0.0, %v2281
      %v2283 = vpop.f32.mrb[0].mxu0
      %v2284 = vpop.f32.mrb[0].mxu0
      %v2285 = vadd.f32 0.0, %v2284
      %v2286 = vpop.f32.mrb[0].mxu0
      %2287 = vmatprep.mubr.bf16.mxu0 0
      %2288 = vmatmul.mubr.bf16.gmra.mrb[0].mxu0 %v2132
      %v2289 = vpop.f32.mrb[0].mxu0
      %v2290 = vadd.f32 0.0, %v2289
      %v2291 = vpop.f32.mrb[0].mxu0
      %v2292 = vpop.f32.mrb[0].mxu0
      %v2293 = vadd.f32 0.0, %v2292
      %v2294 = vpop.f32.mrb[0].mxu0
      %2295 = vdwg.mxu0
      %v2296 = vadd.f32 %v2105, %v2234
      %v2297 = vadd.f32 %v2106, %v2237
      %v2298 = vadd.f32 %v2107, %v2242
      %v2299 = vadd.f32 %v2108, %v2245
      %v2300 = vadd.f32 %v2109, %v2250
      %v2301 = vadd.f32 %v2110, %v2253
      %v2302 = vadd.f32 %v2111, %v2258
      %v2303 = vadd.f32 %v2112, %v2261
      %v2304 = vadd.f32 %v2113, %v2266
      %v2305 = vadd.f32 %v2114, %v2269
      %v2306 = vadd.f32 %v2115, %v2274
      %v2307 = vadd.f32 %v2116, %v2277
      %v2308 = vadd.f32 %v2117, %v2282
      %v2309 = vadd.f32 %v2118, %v2285
      %v2310 = vadd.f32 %v2119, %v2290
      %v2311 = vadd.f32 %v2120, %v2293
      %v2314 = vrot.slane %v733, 1
      %v2315 = vrot.slane %v734, 1
      %v2316 = vsel %vm1179, %v2314, %v2315
      %s2318 = scalar_lea.vmem %s3, 512
      %v2319 = vld [vmem:[%s2318] sm:$0xf]
      %v2320 = vld [vmem:[%s2318 + $0x4] sm:$0xf]
      %v2321 = vld [vmem:[%s2318 + $0x8] sm:$0xf]
      %v2322 = vld [vmem:[%s2318 + $0xc] sm:$0xf]
      %v2323 = vld [vmem:[%s2318 + $0x10] sm:$0xf]
      %v2324 = vld [vmem:[%s2318 + $0x14] sm:$0xf]
      %v2325 = vld [vmem:[%s2318 + $0x18] sm:$0xf]
      %v2326 = vld [vmem:[%s2318 + $0x1c] sm:$0xf]
      %v2327 = vld [vmem:[%s2318 + $0x20] sm:$0xf]
      %v2328 = vld [vmem:[%s2318 + $0x24] sm:$0xf]
      %v2329 = vld [vmem:[%s2318 + $0x28] sm:$0xf]
      %v2330 = vld [vmem:[%s2318 + $0x2c] sm:$0xf]
      %v2331 = vld [vmem:[%s2318 + $0x30] sm:$0xf]
      %v2332 = vld [vmem:[%s2318 + $0x34] sm:$0xf]
      %v2333 = vld [vmem:[%s2318 + $0x38] sm:$0xf]
      %v2334 = vld [vmem:[%s2318 + $0x3c] sm:$0xf]
      %v2351 = vunpack.c.l.b16 %v2319
      %v2352 = vunpack.c.l.b16 %v2320
      %v2353 = vunpack.c.l.b16 %v2321
      %v2354 = vunpack.c.l.b16 %v2322
      %v2355 = vunpack.c.l.b16 %v2323
      %v2356 = vunpack.c.l.b16 %v2324
      %v2357 = vunpack.c.l.b16 %v2325
      %v2358 = vunpack.c.l.b16 %v2326
      %v2359 = vunpack.c.l.b16 %v2327
      %v2360 = vunpack.c.l.b16 %v2328
      %v2361 = vunpack.c.l.b16 %v2329
      %v2362 = vunpack.c.l.b16 %v2330
      %v2363 = vunpack.c.l.b16 %v2331
      %v2364 = vunpack.c.l.b16 %v2332
      %v2365 = vunpack.c.l.b16 %v2333
      %v2366 = vunpack.c.l.b16 %v2334
      %v2367 = vpack.c.b16 %v2352, %v2351
      %v2368 = vpack.c.b16 %v2354, %v2353
      %v2369 = vpack.c.b16 %v2356, %v2355
      %v2370 = vpack.c.b16 %v2358, %v2357
      %v2371 = vpack.c.b16 %v2360, %v2359
      %v2372 = vpack.c.b16 %v2362, %v2361
      %v2373 = vpack.c.b16 %v2364, %v2363
      %v2374 = vpack.c.b16 %v2366, %v2365
      %2383 = vmatprep.subr.bf16.mxu0 0
      %2384 = vmatpush1.bf16.msra.mxu0 %v2367
      %2385 = vmatprep.subr.bf16.mxu0 0
      %2386 = vmatpush1.bf16.msra.mxu0 %v2368
      %2387 = vmatprep.subr.bf16.mxu0 0
      %2388 = vmatpush1.bf16.msra.mxu0 %v2369
      %2389 = vmatprep.subr.bf16.mxu0 0
      %2390 = vmatpush1.bf16.msra.mxu0 %v2370
      %2391 = vmatprep.subr.bf16.mxu0 0
      %2392 = vmatpush1.bf16.msra.mxu0 %v2371
      %2393 = vmatprep.subr.bf16.mxu0 0
      %2394 = vmatpush1.bf16.msra.mxu0 %v2372
      %2395 = vmatprep.subr.bf16.mxu0 0
      %2396 = vmatpush1.bf16.msra.mxu0 %v2373
      %2397 = vmatprep.subr.bf16.mxu0 0
      %2398 = vmatpush1.bf16.msra.mxu0 %v2374
      %2399 = vmatprep.subr.bf16.mxu0 0
      %2400 = vmatpush1.bf16.msra.mxu0 0
      %2401 = vmatprep.subr.bf16.mxu0 0
      %2402 = vmatpush1.bf16.msra.mxu0 0
      %2403 = vmatprep.subr.bf16.mxu0 0
      %2404 = vmatpush1.bf16.msra.mxu0 0
      %2405 = vmatprep.subr.bf16.mxu0 0
      %2406 = vmatpush1.bf16.msra.mxu0 0
      %2407 = vmatprep.subr.bf16.mxu0 0
      %2408 = vmatpush1.bf16.msra.mxu0 0
      %2409 = vmatprep.subr.bf16.mxu0 0
      %2410 = vmatpush1.bf16.msra.mxu0 0
      %2411 = vmatprep.subr.bf16.mxu0 0
      %2412 = vmatpush1.bf16.msra.mxu0 0
      %2413 = vmatprep.subr.bf16.mxu0 0
      %2414 = vmatpush1.bf16.msra.mxu0 0
      %2415 = vmatprep.mubr.bf16.mxu0 0
      %2416 = vmatmul.mubr.bf16.gmra.mrb[0].mxu0 %v1188
      %v2417 = vpop.f32.mrb[0].mxu0
      %v2418 = vadd.f32 0.0, %v2417
      %v2419 = vpop.f32.mrb[0].mxu0
      %v2420 = vpop.f32.mrb[0].mxu0
      %v2421 = vadd.f32 0.0, %v2420
      %v2422 = vpop.f32.mrb[0].mxu0
      %2423 = vmatprep.mubr.bf16.mxu0 0
      %2424 = vmatmul.mubr.bf16.gmra.mrb[0].mxu0 %v1191
      %v2425 = vpop.f32.mrb[0].mxu0
      %v2426 = vadd.f32 0.0, %v2425
      %v2427 = vpop.f32.mrb[0].mxu0
      %v2428 = vpop.f32.mrb[0].mxu0
      %v2429 = vadd.f32 0.0, %v2428
      %v2430 = vpop.f32.mrb[0].mxu0
      %2431 = vmatprep.mubr.bf16.mxu0 0
      %2432 = vmatmul.mubr.bf16.gmra.mrb[0].mxu0 %v1194
      %v2433 = vpop.f32.mrb[0].mxu0
      %v2434 = vadd.f32 0.0, %v2433
      %v2435 = vpop.f32.mrb[0].mxu0
      %v2436 = vpop.f32.mrb[0].mxu0
      %v2437 = vadd.f32 0.0, %v2436
      %v2438 = vpop.f32.mrb[0].mxu0
      %2439 = vmatprep.mubr.bf16.mxu0 0
      %2440 = vmatmul.mubr.bf16.gmra.mrb[0].mxu0 %v1197
      %v2441 = vpop.f32.mrb[0].mxu0
      %v2442 = vadd.f32 0.0, %v2441
      %v2443 = vpop.f32.mrb[0].mxu0
      %v2444 = vpop.f32.mrb[0].mxu0
      %v2445 = vadd.f32 0.0, %v2444
      %v2446 = vpop.f32.mrb[0].mxu0
      %2447 = vmatprep.mubr.bf16.mxu0 0
      %2448 = vmatmul.mubr.bf16.gmra.mrb[0].mxu0 %v1200
      %v2449 = vpop.f32.mrb[0].mxu0
      %v2450 = vadd.f32 0.0, %v2449
      %v2451 = vpop.f32.mrb[0].mxu0
      %v2452 = vpop.f32.mrb[0].mxu0
      %v2453 = vadd.f32 0.0, %v2452
      %v2454 = vpop.f32.mrb[0].mxu0
      %2455 = vmatprep.mubr.bf16.mxu0 0
      %2456 = vmatmul.mubr.bf16.gmra.mrb[0].mxu0 %v1203
      %v2457 = vpop.f32.mrb[0].mxu0
      %v2458 = vadd.f32 0.0, %v2457
      %v2459 = vpop.f32.mrb[0].mxu0
      %v2460 = vpop.f32.mrb[0].mxu0
      %v2461 = vadd.f32 0.0, %v2460
      %v2462 = vpop.f32.mrb[0].mxu0
      %2463 = vmatprep.mubr.bf16.mxu0 0
      %2464 = vmatmul.mubr.bf16.gmra.mrb[0].mxu0 %v1763
      %v2465 = vpop.f32.mrb[0].mxu0
      %v2466 = vadd.f32 0.0, %v2465
      %v2467 = vpop.f32.mrb[0].mxu0
      %v2468 = vpop.f32.mrb[0].mxu0
      %v2469 = vadd.f32 0.0, %v2468
      %v2470 = vpop.f32.mrb[0].mxu0
      %2471 = vmatprep.mubr.bf16.mxu0 0
      %2472 = vmatmul.mubr.bf16.gmra.mrb[0].mxu0 %v2316
      %v2473 = vpop.f32.mrb[0].mxu0
      %v2474 = vadd.f32 0.0, %v2473
      %v2475 = vpop.f32.mrb[0].mxu0
      %v2476 = vpop.f32.mrb[0].mxu0
      %v2477 = vadd.f32 0.0, %v2476
      %v2478 = vpop.f32.mrb[0].mxu0
      %2479 = vdwg.mxu0
      %v2480 = vadd.f32 %v2296, %v2418
      %v2481 = vadd.f32 %v2297, %v2421
      %v2482 = vadd.f32 %v2298, %v2426
      %v2483 = vadd.f32 %v2299, %v2429
      %v2484 = vadd.f32 %v2300, %v2434
      %v2485 = vadd.f32 %v2301, %v2437
      %v2486 = vadd.f32 %v2302, %v2442
      %v2487 = vadd.f32 %v2303, %v2445
      %v2488 = vadd.f32 %v2304, %v2450
      %v2489 = vadd.f32 %v2305, %v2453
      %v2490 = vadd.f32 %v2306, %v2458
      %v2491 = vadd.f32 %v2307, %v2461
      %v2492 = vadd.f32 %v2308, %v2466
      %v2493 = vadd.f32 %v2309, %v2469
      %v2494 = vadd.f32 %v2310, %v2474
      %v2495 = vadd.f32 %v2311, %v2477
      %v2496 = vadd.f32 %v2480, %v2481
      %v2497 = vadd.f32 %v2496, %v2482
      %v2498 = vadd.f32 %v2497, %v2483
      %v2499 = vadd.f32 %v2498, %v2484
      %v2500 = vadd.f32 %v2499, %v2485
      %v2501 = vadd.f32 %v2500, %v2486
      %v2502 = vadd.f32 %v2501, %v2487
      %v2503 = vadd.f32 %v2502, %v2488
      %v2504 = vadd.f32 %v2503, %v2489
      %v2505 = vadd.f32 %v2504, %v2490
      %v2506 = vadd.f32 %v2505, %v2491
      %v2507 = vadd.f32 %v2506, %v2492
      %v2508 = vadd.f32 %v2507, %v2493
      %v2509 = vadd.f32 %v2508, %v2494
      %v2510 = vadd.f32 %v2509, %v2495
      %v2511 = vrot.slane %v2510, 4
      %v2512 = vadd.f32 %v2510, %v2511
      %v2513 = vrot.slane %v2512, 2
      %v2514 = vadd.f32 %v2512, %v2513
      %v2515 = vrot.slane %v2514, 1
      %v2516 = vadd.f32 %v2514, %v2515
      %v2517 = vmul.f32 %v2480, %v2480
      %v2518 = vmul.f32 %v2481, %v2481
      %v2519 = vmul.f32 %v2482, %v2482
      %v2520 = vmul.f32 %v2483, %v2483
      %v2521 = vmul.f32 %v2484, %v2484
      %v2522 = vmul.f32 %v2485, %v2485
      %v2523 = vmul.f32 %v2486, %v2486
      %v2524 = vmul.f32 %v2487, %v2487
      %v2525 = vmul.f32 %v2488, %v2488
      %v2526 = vmul.f32 %v2489, %v2489
      %v2527 = vmul.f32 %v2490, %v2490
      %v2528 = vmul.f32 %v2491, %v2491
      %v2529 = vmul.f32 %v2492, %v2492
      %v2530 = vmul.f32 %v2493, %v2493
      %v2531 = vmul.f32 %v2494, %v2494
      %v2532 = vmul.f32 %v2495, %v2495
      %v2533 = vadd.f32 %v2517, %v2518
      %v2534 = vadd.f32 %v2533, %v2519
      %v2535 = vadd.f32 %v2534, %v2520
      %v2536 = vadd.f32 %v2535, %v2521
      %v2537 = vadd.f32 %v2536, %v2522
      %v2538 = vadd.f32 %v2537, %v2523
      %v2539 = vadd.f32 %v2538, %v2524
      %v2540 = vadd.f32 %v2539, %v2525
      %v2541 = vadd.f32 %v2540, %v2526
      %v2542 = vadd.f32 %v2541, %v2527
      %v2543 = vadd.f32 %v2542, %v2528
      %v2544 = vadd.f32 %v2543, %v2529
      %v2545 = vadd.f32 %v2544, %v2530
      %v2546 = vadd.f32 %v2545, %v2531
      %v2547 = vadd.f32 %v2546, %v2532
      %v2548 = vrot.slane %v2547, 4
      %v2549 = vadd.f32 %v2547, %v2548
      %v2550 = vrot.slane %v2549, 2
      %v2551 = vadd.f32 %v2549, %v2550
      %v2552 = vrot.slane %v2551, 1
      %v2553 = vadd.f32 %v2551, %v2552
      %v2554 = vld [vmem:[%s247] sm:$0xff]
      %vm2555 = vcmask 1040384
      %v2556 = vsel %vm2555, %v2516, %v2553
      %vm2557 = vcmask 1041408
      %v2558 = vsel %vm2557, %v2556, 0.0
      %v2559 = vadd.f32 %v2554, %v2558
      %2560 = vst [vmem:[%s247] sm:$0xff] %v2559
      %v2561 = vpack.c.bf16 %v2481, %v2480
      %v2562 = vpack.c.bf16 %v2483, %v2482
      %v2563 = vpack.c.bf16 %v2485, %v2484
      %v2564 = vpack.c.bf16 %v2487, %v2486
      %v2565 = vpack.c.bf16 %v2489, %v2488
      %v2566 = vpack.c.bf16 %v2491, %v2490
      %v2567 = vpack.c.bf16 %v2493, %v2492
      %v2568 = vpack.c.bf16 %v2495, %v2494
      %v2570 = vshrl.u32 %v2561, 16
      %v2572 = vrot.slane %v2570, 7
      %v2573 = vshll.u32 %v2561, 16
      %v2575 = vor.u32 %v2572, %v2573
      %v2577 = vshrl.u32 %v2562, 16
      %v2579 = vrot.slane %v2577, 7
      %v2580 = vshll.u32 %v2562, 16
      %v2582 = vor.u32 %v2579, %v2580
      %v2584 = vshrl.u32 %v2563, 16
      %v2586 = vrot.slane %v2584, 7
      %v2587 = vshll.u32 %v2563, 16
      %v2589 = vor.u32 %v2586, %v2587
      %v2591 = vshrl.u32 %v2564, 16
      %v2593 = vrot.slane %v2591, 7
      %v2594 = vshll.u32 %v2564, 16
      %v2596 = vor.u32 %v2593, %v2594
      %v2598 = vshrl.u32 %v2565, 16
      %v2600 = vrot.slane %v2598, 7
      %v2601 = vshll.u32 %v2565, 16
      %v2603 = vor.u32 %v2600, %v2601
      %v2605 = vshrl.u32 %v2566, 16
      %v2607 = vrot.slane %v2605, 7
      %v2608 = vshll.u32 %v2566, 16
      %v2610 = vor.u32 %v2607, %v2608
      %v2612 = vshrl.u32 %v2567, 16
      %v2614 = vrot.slane %v2612, 7
      %v2615 = vshll.u32 %v2567, 16
      %v2617 = vor.u32 %v2614, %v2615
      %v2619 = vshrl.u32 %v2568, 16
      %v2621 = vrot.slane %v2619, 7
      %v2622 = vshll.u32 %v2568, 16
      %v2624 = vor.u32 %v2621, %v2622
      %vm2641 = vcmask 1040384
      %vm2642 = vsmask.f32 256
      %vm2643 = vmand %vm2641, %vm2642
      %v2644 = vsel %vm2643, 0, %v2575
      %v2645 = vsel %vm2643, 0, %v2582
      %v2646 = vsel %vm2643, 0, %v2589
      %v2647 = vsel %vm2643, 0, %v2596
      %v2648 = vsel %vm2643, 0, %v2603
      %v2649 = vsel %vm2643, 0, %v2610
      %v2650 = vsel %vm2643, 0, %v2617
      %v2651 = vsel %vm2643, 0, %v2624
      %v2652 = vsel %vm2643, %v2572, 0
      %v2653 = vsel %vm2643, %v2579, 0
      %v2654 = vsel %vm2643, %v2586, 0
      %v2655 = vsel %vm2643, %v2593, 0
      %v2656 = vsel %vm2643, %v2600, 0
      %v2657 = vsel %vm2643, %v2607, 0
      %v2658 = vsel %vm2643, %v2614, 0
      %v2659 = vsel %vm2643, %v2621, 0
      %s2660 = sadd.s32 %s308, 1
      %v2677 = vunpack.c.l.b16 %v2644
      %v2678 = vunpack.c.h.b16 %v2644
      %v2679 = vunpack.c.l.b16 %v2652
      %v2680 = vunpack.c.l.b16 %v2645
      %v2681 = vunpack.c.h.b16 %v2645
      %v2682 = vunpack.c.l.b16 %v2653
      %v2683 = vunpack.c.l.b16 %v2646
      %v2684 = vunpack.c.h.b16 %v2646
      %v2685 = vunpack.c.l.b16 %v2654
      %v2686 = vunpack.c.l.b16 %v2647
      %v2687 = vunpack.c.h.b16 %v2647
      %v2688 = vunpack.c.l.b16 %v2655
      %v2689 = vunpack.c.l.b16 %v2648
      %v2690 = vunpack.c.h.b16 %v2648
      %v2691 = vunpack.c.l.b16 %v2656
      %v2692 = vunpack.c.l.b16 %v2649
      %v2693 = vunpack.c.h.b16 %v2649
      %v2694 = vunpack.c.l.b16 %v2657
      %v2695 = vunpack.c.l.b16 %v2650
      %v2696 = vunpack.c.h.b16 %v2650
      %v2697 = vunpack.c.l.b16 %v2658
      %v2698 = vunpack.c.l.b16 %v2651
      %v2699 = vunpack.c.h.b16 %v2651
      %v2700 = vunpack.c.l.b16 %v2659
      %v2701 = vpack.c.b16 %v2677, %v2677
      %v2702 = vpack.c.b16 %v2678, %v2678
      %v2703 = vpack.c.b16 %v2679, %v2679
      %v2704 = vpack.c.b16 %v2680, %v2680
      %v2705 = vpack.c.b16 %v2681, %v2681
      %v2706 = vpack.c.b16 %v2682, %v2682
      %v2707 = vpack.c.b16 %v2683, %v2683
      %v2708 = vpack.c.b16 %v2684, %v2684
      %v2709 = vpack.c.b16 %v2685, %v2685
      %v2710 = vpack.c.b16 %v2686, %v2686
      %v2711 = vpack.c.b16 %v2687, %v2687
      %v2712 = vpack.c.b16 %v2688, %v2688
      %v2713 = vpack.c.b16 %v2689, %v2689
      %v2714 = vpack.c.b16 %v2690, %v2690
      %v2715 = vpack.c.b16 %v2691, %v2691
      %v2716 = vpack.c.b16 %v2692, %v2692
      %v2717 = vpack.c.b16 %v2693, %v2693
      %v2718 = vpack.c.b16 %v2694, %v2694
      %v2719 = vpack.c.b16 %v2695, %v2695
      %v2720 = vpack.c.b16 %v2696, %v2696
      %v2721 = vpack.c.b16 %v2697, %v2697
      %v2722 = vpack.c.b16 %v2698, %v2698
      %v2723 = vpack.c.b16 %v2699, %v2699
      %v2724 = vpack.c.b16 %v2700, %v2700
      %s2749 = smul.u32 %s2660, 3
      %s2750 = smul.addr %s2749, 4
      %s2751 = scalar_lea.vmem %s243, %s2750
      %2752 = vst [vmem:[%s2751] sm:$0xf] %v2701
      %2753 = vst [vmem:[%s2751 + $0x4] sm:$0xf] %v2702
      %2754 = vst [vmem:[%s2751 + $0x8] sm:$0x1] %v2703
      %2755 = vst [vmem:[%s2751 + $0xc] sm:$0xf] %v2704
      %2756 = vst [vmem:[%s2751 + $0x10] sm:$0xf] %v2705
      %2757 = vst [vmem:[%s2751 + $0x14] sm:$0x1] %v2706
      %2758 = vst [vmem:[%s2751 + $0x18] sm:$0xf] %v2707
      %2759 = vst [vmem:[%s2751 + $0x1c] sm:$0xf] %v2708
      %2760 = vst [vmem:[%s2751 + $0x20] sm:$0x1] %v2709
      %2761 = vst [vmem:[%s2751 + $0x24] sm:$0xf] %v2710
      %2762 = vst [vmem:[%s2751 + $0x28] sm:$0xf] %v2711
      %2763 = vst [vmem:[%s2751 + $0x2c] sm:$0x1] %v2712
      %2764 = vst [vmem:[%s2751 + $0x30] sm:$0xf] %v2713
      %2765 = vst [vmem:[%s2751 + $0x34] sm:$0xf] %v2714
      %2766 = vst [vmem:[%s2751 + $0x38] sm:$0x1] %v2715
      %2767 = vst [vmem:[%s2751 + $0x3c] sm:$0xf] %v2716
      %2768 = vst [vmem:[%s2751 + $0x40] sm:$0xf] %v2717
      %2769 = vst [vmem:[%s2751 + $0x44] sm:$0x1] %v2718
      %2770 = vst [vmem:[%s2751 + $0x48] sm:$0xf] %v2719
      %2771 = vst [vmem:[%s2751 + $0x4c] sm:$0xf] %v2720
      %2772 = vst [vmem:[%s2751 + $0x50] sm:$0x1] %v2721
      %2773 = vst [vmem:[%s2751 + $0x54] sm:$0xf] %v2722
      %2774 = vst [vmem:[%s2751 + $0x58] sm:$0xf] %v2723
      %2775 = vst [vmem:[%s2751 + $0x5c] sm:$0x1] %v2724
      %p2776 = scmp.lt.s32.totalorder %s21, 1
      %s2777 = scalar_select %p2776, %s21, 1
      %s2778 = smul.addr %s2777, 54
      %s2779 = smul.addr %s2778, 4
      %s2780 = scalar_lea.vmem %s4, %s2779
      %p2781 = scmp.lt.s32.totalorder %s21, 1
      %s2782 = scalar_select %p2781, %s21, 1
      %s2783 = smul.addr %s2782, 8
      %s2784 = scalar_lea.vmem %s5, %s2783
      // Predicated region
      $region41: #{double_conv.4} parent=35 // pred_check
        %p2785 = pneg %p136
      $region42: #{double_conv.4} parent=35 // pred_check_branch
        %2787 = sbr.rel (%p2785) target = $region44
      $region43: #{double_conv.4} parent=35 // pred_region
        _
      $region44: #{double_conv.4} parent=35 // pred_fallthru
        _
      // Predicated region
      $region45: #{double_conv.4} parent=35 // pred_check
        %p2788 = pneg %p162
      $region46: #{double_conv.4} parent=35 // pred_check_branch
        %2790 = sbr.rel (%p2788) target = $region48
      $region47: #{double_conv.4} parent=35 // pred_region
        _
      $region48: #{double_conv.4} parent=35 // pred_fallthru
        _
    $region36: #{double_conv.4} parent=5 // pred_fallthru
      _
    %p2791 = scmp.le.s32.totalorder 2, %s12
    // Predicated region
    $region49: #{double_conv.4} parent=5 // pred_check
      %p2792 = pneg %p2791
    $region50: #{double_conv.4} parent=5 // pred_check_branch
      %2794 = sbr.rel (%p2792) target = $region52
    $region51: #{double_conv.4} parent=5 // pred_region
      %s2795 = ssub.s32 %s12, 2
      // Predicated region
      $region53: #{double_conv.4} parent=51 // pred_check
        %p2796 = pneg %p142
      $region54: #{double_conv.4} parent=51 // pred_check_branch
        %2798 = sbr.rel (%p2796) target = $region56
      $region55: #{double_conv.4} parent=51 // pred_region
        %p2799 = scmp.lt.s32.totalorder %s23, 1
        %s2800 = scalar_select %p2799, %s23, 1
        %s2801 = smul.addr %s2800, 54
        %s2802 = smul.addr %s2801, 4
        %s2803 = scalar_lea.vmem %s4, %s2802
      $region56: #{double_conv.4} parent=51 // pred_fallthru
        _
      // Predicated region
      $region57: #{double_conv.4} parent=51 // pred_check
        %p2804 = pneg %p168
      $region58: #{double_conv.4} parent=51 // pred_check_branch
        %2806 = sbr.rel (%p2804) target = $region60
      $region59: #{double_conv.4} parent=51 // pred_region
        %p2807 = scmp.lt.s32.totalorder %s23, 1
        %s2808 = scalar_select %p2807, %s23, 1
        %s2809 = smul.addr %s2808, 8
        %s2810 = scalar_lea.vmem %s5, %s2809
      $region60: #{double_conv.4} parent=51 // pred_fallthru
        _
    $region52: #{double_conv.4} parent=5 // pred_fallthru
      _
  $region6: #{double_conv.4} parent=0 // loop_footer
    %s16 = sadd.s32 1, %s12
  $region7: #{double_conv.4} parent=0 // loop_footer_branch
    %11 = sbr.rel target = $region3
  $region8: #{double_conv.4} parent=0 // loop_exit
    _

// kernel: double_conv.3
$region0: #{double_conv.3}
  #allocation0 [shape = 'u32[]', space=smem, size = 0x4, offset = 0x4, fixed_abs, tag = 'smem constant byte address 0x4 - core index']
  #allocation1 [shape = 'u32[144,128]{1,0:T(1,128)}', space=vmem, size = 0x12000, scoped, tag = 'internal scratch']
  %s0 = inlined_call_operand.vmem [shape: bf16[2,18,18,128], index: 0, kind: input, shape index: {}]
  %s1 = inlined_call_operand.vmem [shape: bf16[9,128,128], index: 1, kind: input, shape index: {}]
  %s2 = inlined_call_operand.vmem [shape: bf16[2,18,18,128], index: 2, kind: output, shape index: {0}]
  %s3 = inlined_call_operand.vmem [shape: f32[2,8,128], index: 3, kind: output, shape index: {1}]
  %4 = xla_tuple %s2, %s3
  %s5 = sld [smem:[#allocation0]]
  $region53: #{double_conv.3} parent=0
    _
  %s7 = ssub.s32 1, %s5
  %s8 = scalar_select 0, %s7, %s5
  loop: start=0, step=1, limit=6
  $region2: #{double_conv.3} parent=0 // loop_pre_header
    _
  $region3: #{double_conv.3} parent=0 // loop_header
    %s10 = sphi 0, %s14
    %p11 = scmp.ge.s32.totalorder %s10, 6
    %s17 = sphi 0, %s29
    %s18 = sphi 0, %s25
    %s19 = sphi 0, %s17
    %s20 = sphi 0, %s18
    %s21 = sphi 0, %s19
    %s22 = sphi 0, %s20
    %s32 = sphi 0, %s34
    %s35 = sphi 0, %s32
    %s36 = sphi 0, %s35
    %s52 = sphi 0, %s36
    %s56 = sphi 0, %s56
    %s58 = sphi 0, %s56
    %s59 = sphi 0, %s58
    %s73 = sphi 0, %s59
    %s79 = sphi 0, %s81
    %s82 = sphi 0, %s79
    %s83 = sphi 0, %s82
    %s99 = sphi 0, %s83
    %s105 = sphi 0, %s107
    %s108 = sphi 0, %s105
    %s109 = sphi 0, %s108
    %s125 = sphi 0, %s109
  $region4: #{double_conv.3} parent=0 // loop_header_branch
    %13 = sbr.rel (%p11) target = $region8
  $region5: #{double_conv.3} parent=0 // loop_body
    %s15 = ssub.s32 %s10, 1
    %s16 = ssub.s32 %s10, 2
    %s23 = sadd.s32 1, %s18
    %p24 = scmp.ge.s32.totalorder %s23, 2
    %s25 = scalar_select %p24, 0, %s23
    %s26 = sadd.s32 1, %s17
    %s27 = scalar_select %p24, %s26, %s17
    %p28 = scmp.ge.s32.totalorder %s27, 2
    %s29 = scalar_select %p28, 0, %s27
    %s30 = ssub.s32 %s17, %s29
    %p31 = scmp.eq.s32.totalorder %s30, 0
    %s33 = sadd.s32 %s32, 1
    %s34 = scalar_select %p31, %s32, %s33
    %p37 = pneg %p31
    %p38 = scmp.eq.s32.totalorder %s10, 3
    %p39 = por %p37, %p38
    %p40 = scmp.ne.s32.totalorder %s32, %s35
    %p41 = scmp.eq.s32.totalorder %s10, 0
    %p42 = por %p40, %p41
    %p43 = scmp.ne.s32.totalorder %s32, %s35
    %p44 = scmp.eq.s32.totalorder %s15, 3
    %p45 = por %p43, %p44
    %p46 = scmp.ne.s32.totalorder %s35, %s36
    %p47 = scmp.eq.s32.totalorder %s15, 0
    %p48 = por %p46, %p47
    %p49 = scmp.ne.s32.totalorder %s35, %s36
    %p50 = scmp.eq.s32.totalorder %s16, 3
    %p51 = por %p49, %p50
    %p53 = scmp.ne.s32.totalorder %s36, %s52
    %p54 = scmp.eq.s32.totalorder %s16, 0
    %p55 = por %p53, %p54
    %s57 = sadd.s32 %s56, 1
    %p60 = scmp.eq.s32.totalorder %s10, 3
    %p61 = scmp.ne.s32.totalorder %s56, %s58
    %p62 = scmp.eq.s32.totalorder %s10, 0
    %p63 = por %p61, %p62
    %p64 = scmp.ne.s32.totalorder %s56, %s58
    %p65 = scmp.eq.s32.totalorder %s15, 3
    %p66 = por %p64, %p65
    %p67 = scmp.ne.s32.totalorder %s58, %s59
    %p68 = scmp.eq.s32.totalorder %s15, 0
    %p69 = por %p67, %p68
    %p70 = scmp.ne.s32.totalorder %s58, %s59
    %p71 = scmp.eq.s32.totalorder %s16, 3
    %p72 = por %p70, %p71
    %p74 = scmp.ne.s32.totalorder %s59, %s73
    %p75 = scmp.eq.s32.totalorder %s16, 0
    %p76 = por %p74, %p75
    %s77 = ssub.s32 %s17, %s29
    %p78 = scmp.eq.s32.totalorder %s77, 0
    %s80 = sadd.s32 %s79, 1
    %s81 = scalar_select %p78, %s79, %s80
    %p84 = pneg %p78
    %p85 = scmp.eq.s32.totalorder %s10, 3
    %p86 = por %p84, %p85
    %p87 = scmp.ne.s32.totalorder %s79, %s82
    %p88 = scmp.eq.s32.totalorder %s10, 0
    %p89 = por %p87, %p88
    %p90 = scmp.ne.s32.totalorder %s79, %s82
    %p91 = scmp.eq.s32.totalorder %s15, 3
    %p92 = por %p90, %p91
    %p93 = scmp.ne.s32.totalorder %s82, %s83
    %p94 = scmp.eq.s32.totalorder %s15, 0
    %p95 = por %p93, %p94
    %p96 = scmp.ne.s32.totalorder %s82, %s83
    %p97 = scmp.eq.s32.totalorder %s16, 3
    %p98 = por %p96, %p97
    %p100 = scmp.ne.s32.totalorder %s83, %s99
    %p101 = scmp.eq.s32.totalorder %s16, 0
    %p102 = por %p100, %p101
    %s103 = ssub.s32 %s17, %s29
    %p104 = scmp.eq.s32.totalorder %s103, 0
    %s106 = sadd.s32 %s105, 1
    %s107 = scalar_select %p104, %s105, %s106
    %p110 = pneg %p104
    %p111 = scmp.eq.s32.totalorder %s10, 3
    %p112 = por %p110, %p111
    %p113 = scmp.ne.s32.totalorder %s105, %s108
    %p114 = scmp.eq.s32.totalorder %s10, 0
    %p115 = por %p113, %p114
    %p116 = scmp.ne.s32.totalorder %s105, %s108
    %p117 = scmp.eq.s32.totalorder %s15, 3
    %p118 = por %p116, %p117
    %p119 = scmp.ne.s32.totalorder %s108, %s109
    %p120 = scmp.eq.s32.totalorder %s15, 0
    %p121 = por %p119, %p120
    %p122 = scmp.ne.s32.totalorder %s108, %s109
    %p123 = scmp.eq.s32.totalorder %s16, 3
    %p124 = por %p122, %p123
    %p126 = scmp.ne.s32.totalorder %s109, %s125
    %p127 = scmp.eq.s32.totalorder %s16, 0
    %p128 = por %p126, %p127
    %p129 = scmp.le.s32.totalorder 1, %s10
    %p130 = scmp.lt.s32.totalorder %s10, 5
    %p131 = pnand %p129, %p130
    %p132 = pneg %p131
    // Predicated region
    $region9: #{double_conv.3} parent=5 // pred_check
      _
    $region10: #{double_conv.3} parent=5 // pred_check_branch
      %134 = sbr.rel (%p131) target = $region12
    $region11: #{double_conv.3} parent=5 // pred_region
      %s135 = ssub.s32 %s10, 1
      // Predicated region
      $region13: #{double_conv.3} parent=11 // pred_check
        %p136 = pneg %p69
      $region14: #{double_conv.3} parent=11 // pred_check_branch
        %138 = sbr.rel (%p136) target = $region16
      $region15: #{double_conv.3} parent=11 // pred_region
        _
      $region16: #{double_conv.3} parent=11 // pred_fallthru
        _
    $region12: #{double_conv.3} parent=5 // pred_fallthru
      _
    %p139 = scmp.lt.s32.totalorder %s10, 4
    // Predicated region
    $region17: #{double_conv.3} parent=5 // pred_check
      %p140 = pneg %p139
    $region18: #{double_conv.3} parent=5 // pred_check_branch
      %142 = sbr.rel (%p140) target = $region20
    $region19: #{double_conv.3} parent=5 // pred_region
      // Predicated region
      $region21: #{double_conv.3} parent=19 // pred_check
        %p143 = pneg %p42
      $region22: #{double_conv.3} parent=19 // pred_check_branch
        %145 = sbr.rel (%p143) target = $region24
      $region23: #{double_conv.3} parent=19 // pred_region
        %p146 = scmp.lt.s32.totalorder %s17, 1
        %s147 = scalar_select %p146, %s17, 1
        %s148 = smul.addr %s147, 54
        %s149 = smul.addr %s148, 4
        %s150 = scalar_lea.vmem %s0, %s149
      $region24: #{double_conv.3} parent=19 // pred_fallthru
        _
    $region20: #{double_conv.3} parent=5 // pred_fallthru
      _
    %p151 = scmp.le.s32.totalorder 1, %s10
    %p152 = scmp.lt.s32.totalorder %s10, 5
    %p153 = pnand %p151, %p152
    %p154 = pneg %p153
    // Predicated region
    $region25: #{double_conv.3} parent=5 // pred_check
      _
    $region26: #{double_conv.3} parent=5 // pred_check_branch
      %156 = sbr.rel (%p153) target = $region28
    $region27: #{double_conv.3} parent=5 // pred_region
      %s157 = ssub.s32 %s10, 1
      %p158 = scmp.lt.s32.totalorder %s19, 1
      %s159 = scalar_select %p158, %s19, 1
      %s160 = smul.addr %s159, 54
      %s161 = smul.addr %s160, 4
      %s162 = scalar_lea.vmem %s0, %s161
      %p163 = pneg %p48
      %p164 = pneg %p45
      %p165 = pneg %p69
      %p166 = pneg %p66
      %p167 = pneg %p95
      %p168 = pneg %p92
      %p169 = scmp.lt.s32.totalorder %s19, 1
      %s170 = scalar_select %p169, %s19, 1
      %s171 = smul.addr %s170, 54
      %s172 = smul.addr %s171, 4
      %s173 = scalar_lea.vmem %s2, %s172
      %p174 = pneg %p121
      %p175 = pneg %p118
      %p176 = scmp.lt.s32.totalorder %s19, 1
      %s177 = scalar_select %p176, %s19, 1
      %s178 = smul.addr %s177, 8
      %s179 = scalar_lea.vmem %s3, %s178
      %p180 = scmp.lt.s32.totalorder %s19, 1
      %s181 = scalar_select %p180, %s19, 1
      %s182 = smul.addr %s181, 54
      %s183 = smul.addr %s182, 4
      %s184 = scalar_lea.vmem %s0, %s183
      %p185 = scmp.lt.s32.totalorder %s19, 1
      %s186 = scalar_select %p185, %s19, 1
      %s187 = smul.addr %s186, 54
      %s188 = smul.addr %s187, 4
      %s189 = scalar_lea.vmem %s2, %s188
      %p190 = scmp.lt.s32.totalorder %s19, 1
      %s191 = scalar_select %p190, %s19, 1
      %s192 = smul.addr %s191, 8
      %s193 = scalar_lea.vmem %s3, %s192
      %p195 = scmp.eq.s32.totalorder %s20, 0
      // Predicated region
      $region29: #{double_conv.3} parent=27 // pred_check
        %p196 = pneg %p195
      $region30: #{double_conv.3} parent=27 // pred_check_branch
        %198 = sbr.rel (%p196) target = $region32
      $region31: #{double_conv.3} parent=27 // pred_region
        %199 = vst [vmem:[%s189] sm:$0xf] 0
        %200 = vst [vmem:[%s189 + $0x4] sm:$0xf] 0
        %201 = vst [vmem:[%s189 + $0x8] sm:$0x1] 0
        %202 = vst [vmem:[%s189 + $0xc] sm:$0xf] 0
        %203 = vst [vmem:[%s189 + $0x10] sm:$0xf] 0
        %204 = vst [vmem:[%s189 + $0x14] sm:$0x1] 0
        %205 = vst [vmem:[%s189 + $0x18] sm:$0xf] 0
        %206 = vst [vmem:[%s189 + $0x1c] sm:$0xf] 0
        %207 = vst [vmem:[%s189 + $0x20] sm:$0x1] 0
        %208 = vst [vmem:[%s189 + $0x24] sm:$0xf] 0
        %209 = vst [vmem:[%s189 + $0x28] sm:$0xf] 0
        %210 = vst [vmem:[%s189 + $0x2c] sm:$0x1] 0
        %211 = vst [vmem:[%s189 + $0x30] sm:$0xf] 0
        %212 = vst [vmem:[%s189 + $0x34] sm:$0xf] 0
        %213 = vst [vmem:[%s189 + $0x38] sm:$0x1] 0
        %214 = vst [vmem:[%s189 + $0x3c] sm:$0xf] 0
        %215 = vst [vmem:[%s189 + $0x40] sm:$0xf] 0
        %216 = vst [vmem:[%s189 + $0x44] sm:$0x1] 0
        %217 = vst [vmem:[%s189 + $0x48] sm:$0xf] 0
        %218 = vst [vmem:[%s189 + $0x4c] sm:$0xf] 0
        %219 = vst [vmem:[%s189 + $0x50] sm:$0x1] 0
        %220 = vst [vmem:[%s189 + $0x54] sm:$0xf] 0
        %221 = vst [vmem:[%s189 + $0x58] sm:$0xf] 0
        %222 = vst [vmem:[%s189 + $0x5c] sm:$0x1] 0
        %223 = vst [vmem:[%s189 + $0x60] sm:$0xf] 0
        %224 = vst [vmem:[%s189 + $0x64] sm:$0xf] 0
        %225 = vst [vmem:[%s189 + $0x68] sm:$0x1] 0
        %226 = vst [vmem:[%s189 + $0x6c] sm:$0xf] 0
        %227 = vst [vmem:[%s189 + $0x70] sm:$0xf] 0
        %228 = vst [vmem:[%s189 + $0x74] sm:$0x1] 0
        %229 = vst [vmem:[%s189 + $0x78] sm:$0xf] 0
        %230 = vst [vmem:[%s189 + $0x7c] sm:$0xf] 0
        %231 = vst [vmem:[%s189 + $0x80] sm:$0x1] 0
        %232 = vst [vmem:[%s189 + $0x84] sm:$0xf] 0
        %233 = vst [vmem:[%s189 + $0x88] sm:$0xf] 0
        %234 = vst [vmem:[%s189 + $0x8c] sm:$0x1] 0
        %235 = vst [vmem:[%s189 + $0x90] sm:$0xf] 0
        %236 = vst [vmem:[%s189 + $0x94] sm:$0xf] 0
        %237 = vst [vmem:[%s189 + $0x98] sm:$0x1] 0
        %238 = vst [vmem:[%s189 + $0x9c] sm:$0xf] 0
        %239 = vst [vmem:[%s189 + $0xa0] sm:$0xf] 0
        %240 = vst [vmem:[%s189 + $0xa4] sm:$0x1] 0
        %241 = vst [vmem:[%s189 + $0xa8] sm:$0xf] 0
        %242 = vst [vmem:[%s189 + $0xac] sm:$0xf] 0
        %243 = vst [vmem:[%s189 + $0xb0] sm:$0x1] 0
        %244 = vst [vmem:[%s189 + $0xb4] sm:$0xf] 0
        %245 = vst [vmem:[%s189 + $0xb8] sm:$0xf] 0
        %246 = vst [vmem:[%s189 + $0xbc] sm:$0x1] 0
        %247 = vst [vmem:[%s189 + $0xc0] sm:$0xf] 0
        %248 = vst [vmem:[%s189 + $0xc4] sm:$0xf] 0
        %249 = vst [vmem:[%s189 + $0xc8] sm:$0x1] 0
        %250 = vst [vmem:[%s189 + $0xcc] sm:$0xf] 0
        %251 = vst [vmem:[%s189 + $0xd0] sm:$0xf] 0
        %252 = vst [vmem:[%s189 + $0xd4] sm:$0x1] 0
        %253 = vst [vmem:[%s193] sm:$0xff] 0.0
      $region32: #{double_conv.3} parent=27 // pred_fallthru
        _
      %s254 = smul.u32 %s20, 8
      %s255 = smul.u32 %s254, 3
      %s256 = smul.addr %s255, 4
      %s257 = scalar_lea.vmem %s184, %s256
      %v258 = vld [vmem:[%s257] sm:$0xf]
      %v259 = vld [vmem:[%s257 + $0x4] sm:$0xf]
      %v260 = vld [vmem:[%s257 + $0x8] sm:$0x1]
      %v261 = vld [vmem:[%s257 + $0xc] sm:$0xf]
      %v262 = vld [vmem:[%s257 + $0x10] sm:$0xf]
      %v263 = vld [vmem:[%s257 + $0x14] sm:$0x1]
      %v264 = vld [vmem:[%s257 + $0x18] sm:$0xf]
      %v265 = vld [vmem:[%s257 + $0x1c] sm:$0xf]
      %v266 = vld [vmem:[%s257 + $0x20] sm:$0x1]
      %v267 = vld [vmem:[%s257 + $0x24] sm:$0xf]
      %v268 = vld [vmem:[%s257 + $0x28] sm:$0xf]
      %v269 = vld [vmem:[%s257 + $0x2c] sm:$0x1]
      %v270 = vld [vmem:[%s257 + $0x30] sm:$0xf]
      %v271 = vld [vmem:[%s257 + $0x34] sm:$0xf]
      %v272 = vld [vmem:[%s257 + $0x38] sm:$0x1]
      %v273 = vld [vmem:[%s257 + $0x3c] sm:$0xf]
      %v274 = vld [vmem:[%s257 + $0x40] sm:$0xf]
      %v275 = vld [vmem:[%s257 + $0x44] sm:$0x1]
      %v276 = vld [vmem:[%s257 + $0x48] sm:$0xf]
      %v277 = vld [vmem:[%s257 + $0x4c] sm:$0xf]
      %v278 = vld [vmem:[%s257 + $0x50] sm:$0x1]
      %v279 = vld [vmem:[%s257 + $0x54] sm:$0xf]
      %v280 = vld [vmem:[%s257 + $0x58] sm:$0xf]
      %v281 = vld [vmem:[%s257 + $0x5c] sm:$0x1]
      %v282 = vld [vmem:[%s257 + $0x60] sm:$0xf]
      %v283 = vld [vmem:[%s257 + $0x64] sm:$0xf]
      %v284 = vld [vmem:[%s257 + $0x68] sm:$0x1]
      %v285 = vld [vmem:[%s257 + $0x6c] sm:$0xf]
      %v286 = vld [vmem:[%s257 + $0x70] sm:$0xf]
      %v287 = vld [vmem:[%s257 + $0x74] sm:$0x1]
      %v288 = vld [vmem:[%s1] sm:$0xf]
      %v289 = vld [vmem:[%s1 + $0x4] sm:$0xf]
      %v290 = vld [vmem:[%s1 + $0x8] sm:$0xf]
      %v291 = vld [vmem:[%s1 + $0xc] sm:$0xf]
      %v292 = vld [vmem:[%s1 + $0x10] sm:$0xf]
      %v293 = vld [vmem:[%s1 + $0x14] sm:$0xf]
      %v294 = vld [vmem:[%s1 + $0x18] sm:$0xf]
      %v295 = vld [vmem:[%s1 + $0x1c] sm:$0xf]
      %v296 = vld [vmem:[%s1 + $0x20] sm:$0xf]
      %v297 = vld [vmem:[%s1 + $0x24] sm:$0xf]
      %v298 = vld [vmem:[%s1 + $0x28] sm:$0xf]
      %v299 = vld [vmem:[%s1 + $0x2c] sm:$0xf]
      %v300 = vld [vmem:[%s1 + $0x30] sm:$0xf]
      %v301 = vld [vmem:[%s1 + $0x34] sm:$0xf]
      %v302 = vld [vmem:[%s1 + $0x38] sm:$0xf]
      %v303 = vld [vmem:[%s1 + $0x3c] sm:$0xf]
      %vm304 = vsmask.f32 3328
      %vm305 = vsmask.f32 7440
      %vm306 = vmor %vm304, %vm305
      %v308 = vshrl.u32 %v258, 16
      %v310 = vrot.slane %v308, 4
      %v311 = vshll.u32 %v258, 16
      %v313 = vrot.slane %v311, 5
      %v314 = vor.u32 %v310, %v313
      %v315 = vrot.slane %v314, 4
      %v317 = vshll.u32 %v259, 16
      %v319 = vrot.slane %v317, 5
      %v320 = vsel %vm306, %v315, %v319
      %v321 = vshrl.u32 %v259, 16
      %v323 = vrot.slane %v321, 4
      %v324 = vor.u32 %v323, %v319
      %v325 = vrot.slane %v324, 4
      %v327 = vshll.u32 %v260, 16
      %v329 = vrot.slane %v327, 5
      %v330 = vsel %vm306, %v325, %v329
      %v332 = vshrl.u32 %v261, 16
      %v334 = vrot.slane %v332, 4
      %v335 = vshll.u32 %v261, 16
      %v337 = vrot.slane %v335, 5
      %v338 = vor.u32 %v334, %v337
      %v339 = vrot.slane %v338, 4
      %v341 = vshll.u32 %v262, 16
      %v343 = vrot.slane %v341, 5
      %v344 = vsel %vm306, %v339, %v343
      %v345 = vshrl.u32 %v262, 16
      %v347 = vrot.slane %v345, 4
      %v348 = vor.u32 %v347, %v343
      %v349 = vrot.slane %v348, 4
      %v351 = vshll.u32 %v263, 16
      %v353 = vrot.slane %v351, 5
      %v354 = vsel %vm306, %v349, %v353
      %v356 = vshrl.u32 %v264, 16
      %v358 = vrot.slane %v356, 4
      %v359 = vshll.u32 %v264, 16
      %v361 = vrot.slane %v359, 5
      %v362 = vor.u32 %v358, %v361
      %v363 = vrot.slane %v362, 4
      %v365 = vshll.u32 %v265, 16
      %v367 = vrot.slane %v365, 5
      %v368 = vsel %vm306, %v363, %v367
      %v369 = vshrl.u32 %v265, 16
      %v371 = vrot.slane %v369, 4
      %v372 = vor.u32 %v371, %v367
      %v373 = vrot.slane %v372, 4
      %v375 = vshll.u32 %v266, 16
      %v377 = vrot.slane %v375, 5
      %v378 = vsel %vm306, %v373, %v377
      %v380 = vshrl.u32 %v267, 16
      %v382 = vrot.slane %v380, 4
      %v383 = vshll.u32 %v267, 16
      %v385 = vrot.slane %v383, 5
      %v386 = vor.u32 %v382, %v385
      %v387 = vrot.slane %v386, 4
      %v389 = vshll.u32 %v268, 16
      %v391 = vrot.slane %v389, 5
      %v392 = vsel %vm306, %v387, %v391
      %v393 = vshrl.u32 %v268, 16
      %v395 = vrot.slane %v393, 4
      %v396 = vor.u32 %v395, %v391
      %v397 = vrot.slane %v396, 4
      %v399 = vshll.u32 %v269, 16
      %v401 = vrot.slane %v399, 5
      %v402 = vsel %vm306, %v397, %v401
      %v404 = vshrl.u32 %v270, 16
      %v406 = vrot.slane %v404, 4
      %v407 = vshll.u32 %v270, 16
      %v409 = vrot.slane %v407, 5
      %v410 = vor.u32 %v406, %v409
      %v411 = vrot.slane %v410, 4
      %v413 = vshll.u32 %v271, 16
      %v415 = vrot.slane %v413, 5
      %v416 = vsel %vm306, %v411, %v415
      %v417 = vshrl.u32 %v271, 16
      %v419 = vrot.slane %v417, 4
      %v420 = vor.u32 %v419, %v415
      %v421 = vrot.slane %v420, 4
      %v423 = vshll.u32 %v272, 16
      %v425 = vrot.slane %v423, 5
      %v426 = vsel %vm306, %v421, %v425
      %v428 = vshrl.u32 %v273, 16
      %v430 = vrot.slane %v428, 4
      %v431 = vshll.u32 %v273, 16
      %v433 = vrot.slane %v431, 5
      %v434 = vor.u32 %v430, %v433
      %v435 = vrot.slane %v434, 4
      %v437 = vshll.u32 %v274, 16
      %v439 = vrot.slane %v437, 5
      %v440 = vsel %vm306, %v435, %v439
      %v441 = vshrl.u32 %v274, 16
      %v443 = vrot.slane %v441, 4
      %v444 = vor.u32 %v443, %v439
      %v445 = vrot.slane %v444, 4
      %v447 = vshll.u32 %v275, 16
      %v449 = vrot.slane %v447, 5
      %v450 = vsel %vm306, %v445, %v449
      %v452 = vshrl.u32 %v276, 16
      %v454 = vrot.slane %v452, 4
      %v455 = vshll.u32 %v276, 16
      %v457 = vrot.slane %v455, 5
      %v458 = vor.u32 %v454, %v457
      %v459 = vrot.slane %v458, 4
      %v461 = vshll.u32 %v277, 16
      %v463 = vrot.slane %v461, 5
      %v464 = vsel %vm306, %v459, %v463
      %v465 = vshrl.u32 %v277, 16
      %v467 = vrot.slane %v465, 4
      %v468 = vor.u32 %v467, %v463
      %v469 = vrot.slane %v468, 4
      %v471 = vshll.u32 %v278, 16
      %v473 = vrot.slane %v471, 5
      %v474 = vsel %vm306, %v469, %v473
      %v476 = vshrl.u32 %v279, 16
      %v478 = vrot.slane %v476, 4
      %v479 = vshll.u32 %v279, 16
      %v481 = vrot.slane %v479, 5
      %v482 = vor.u32 %v478, %v481
      %v483 = vrot.slane %v482, 4
      %v485 = vshll.u32 %v280, 16
      %v487 = vrot.slane %v485, 5
      %v488 = vsel %vm306, %v483, %v487
      %v489 = vshrl.u32 %v280, 16
      %v491 = vrot.slane %v489, 4
      %v492 = vor.u32 %v491, %v487
      %v493 = vrot.slane %v492, 4
      %v495 = vshll.u32 %v281, 16
      %v497 = vrot.slane %v495, 5
      %v498 = vsel %vm306, %v493, %v497
      %s499 = scalar_lea.vmem %s1, 64
      %v500 = vld [vmem:[%s499] sm:$0xf]
      %v501 = vld [vmem:[%s499 + $0x4] sm:$0xf]
      %v502 = vld [vmem:[%s499 + $0x8] sm:$0xf]
      %v503 = vld [vmem:[%s499 + $0xc] sm:$0xf]
      %v504 = vld [vmem:[%s499 + $0x10] sm:$0xf]
      %v505 = vld [vmem:[%s499 + $0x14] sm:$0xf]
      %v506 = vld [vmem:[%s499 + $0x18] sm:$0xf]
      %v507 = vld [vmem:[%s499 + $0x1c] sm:$0xf]
      %v508 = vld [vmem:[%s499 + $0x20] sm:$0xf]
      %v509 = vld [vmem:[%s499 + $0x24] sm:$0xf]
      %v510 = vld [vmem:[%s499 + $0x28] sm:$0xf]
      %v511 = vld [vmem:[%s499 + $0x2c] sm:$0xf]
      %v512 = vld [vmem:[%s499 + $0x30] sm:$0xf]
      %v513 = vld [vmem:[%s499 + $0x34] sm:$0xf]
      %v514 = vld [vmem:[%s499 + $0x38] sm:$0xf]
      %v515 = vld [vmem:[%s499 + $0x3c] sm:$0xf]
      %v516 = vunpack.c.l.b16 %v320
      %v517 = vunpack.c.l.b16 %v330
      %v518 = vunpack.c.l.b16 %v344
      %v519 = vunpack.c.l.b16 %v354
      %v520 = vunpack.c.l.b16 %v368
      %v521 = vunpack.c.l.b16 %v378
      %v522 = vunpack.c.l.b16 %v392
      %v523 = vunpack.c.l.b16 %v402
      %v524 = vunpack.c.l.b16 %v416
      %v525 = vunpack.c.l.b16 %v426
      %v526 = vunpack.c.l.b16 %v440
      %v527 = vunpack.c.l.b16 %v450
      %v528 = vunpack.c.l.b16 %v464
      %v529 = vunpack.c.l.b16 %v474
      %v530 = vunpack.c.l.b16 %v488
      %v531 = vunpack.c.l.b16 %v498
      %v532 = vpack.c.b16 %v517, %v516
      %v533 = vpack.c.b16 %v519, %v518
      %v534 = vpack.c.b16 %v521, %v520
      %v535 = vpack.c.b16 %v523, %v522
      %v536 = vpack.c.b16 %v525, %v524
      %v537 = vpack.c.b16 %v527, %v526
      %v538 = vpack.c.b16 %v529, %v528
      %v539 = vpack.c.b16 %v531, %v530
      %v564 = vunpack.c.l.b16 %v500
      %v565 = vunpack.c.l.b16 %v501
      %v566 = vunpack.c.l.b16 %v502
      %v567 = vunpack.c.l.b16 %v503
      %v568 = vunpack.c.l.b16 %v504
      %v569 = vunpack.c.l.b16 %v505
      %v570 = vunpack.c.l.b16 %v506
      %v571 = vunpack.c.l.b16 %v507
      %v572 = vunpack.c.l.b16 %v508
      %v573 = vunpack.c.l.b16 %v509
      %v574 = vunpack.c.l.b16 %v510
      %v575 = vunpack.c.l.b16 %v511
      %v576 = vunpack.c.l.b16 %v512
      %v577 = vunpack.c.l.b16 %v513
      %v578 = vunpack.c.l.b16 %v514
      %v579 = vunpack.c.l.b16 %v515
      %v580 = vpack.c.b16 %v565, %v564
      %v581 = vpack.c.b16 %v567, %v566
      %v582 = vpack.c.b16 %v569, %v568
      %v583 = vpack.c.b16 %v571, %v570
      %v584 = vpack.c.b16 %v573, %v572
      %v585 = vpack.c.b16 %v575, %v574
      %v586 = vpack.c.b16 %v577, %v576
      %v587 = vpack.c.b16 %v579, %v578
      %596 = vmatprep.subr.bf16.mxu0 0
      %597 = vmatpush1.bf16.msra.mxu0 %v580
      %598 = vmatprep.subr.bf16.mxu0 0
      %599 = vmatpush1.bf16.msra.mxu0 %v581
      %600 = vmatprep.subr.bf16.mxu0 0
      %601 = vmatpush1.bf16.msra.mxu0 %v582
      %602 = vmatprep.subr.bf16.mxu0 0
      %603 = vmatpush1.bf16.msra.mxu0 %v583
      %604 = vmatprep.subr.bf16.mxu0 0
      %605 = vmatpush1.bf16.msra.mxu0 %v584
      %606 = vmatprep.subr.bf16.mxu0 0
      %607 = vmatpush1.bf16.msra.mxu0 %v585
      %608 = vmatprep.subr.bf16.mxu0 0
      %609 = vmatpush1.bf16.msra.mxu0 %v586
      %610 = vmatprep.subr.bf16.mxu0 0
      %611 = vmatpush1.bf16.msra.mxu0 %v587
      %612 = vmatprep.subr.bf16.mxu0 0
      %613 = vmatpush1.bf16.msra.mxu0 0
      %614 = vmatprep.subr.bf16.mxu0 0
      %615 = vmatpush1.bf16.msra.mxu0 0
      %616 = vmatprep.subr.bf16.mxu0 0
      %617 = vmatpush1.bf16.msra.mxu0 0
      %618 = vmatprep.subr.bf16.mxu0 0
      %619 = vmatpush1.bf16.msra.mxu0 0
      %620 = vmatprep.subr.bf16.mxu0 0
      %621 = vmatpush1.bf16.msra.mxu0 0
      %622 = vmatprep.subr.bf16.mxu0 0
      %623 = vmatpush1.bf16.msra.mxu0 0
      %624 = vmatprep.subr.bf16.mxu0 0
      %625 = vmatpush1.bf16.msra.mxu0 0
      %626 = vmatprep.subr.bf16.mxu0 0
      %627 = vmatpush1.bf16.msra.mxu0 0
      %628 = vmatprep.mubr.bf16.mxu0 0
      %629 = vmatmul.mubr.bf16.gmra.mrb[0].mxu0 %v532
      %v630 = vpop.f32.mrb[0].mxu0
      %v631 = vadd.f32 0.0, %v630
      %v632 = vpop.f32.mrb[0].mxu0
      %v633 = vpop.f32.mrb[0].mxu0
      %v634 = vadd.f32 0.0, %v633
      %v635 = vpop.f32.mrb[0].mxu0
      %636 = vmatprep.mubr.bf16.mxu0 0
      %637 = vmatmul.mubr.bf16.gmra.mrb[0].mxu0 %v533
      %v638 = vpop.f32.mrb[0].mxu0
      %v639 = vadd.f32 0.0, %v638
      %v640 = vpop.f32.mrb[0].mxu0
      %v641 = vpop.f32.mrb[0].mxu0
      %v642 = vadd.f32 0.0, %v641
      %v643 = vpop.f32.mrb[0].mxu0
      %644 = vmatprep.mubr.bf16.mxu0 0
      %645 = vmatmul.mubr.bf16.gmra.mrb[0].mxu0 %v534
      %v646 = vpop.f32.mrb[0].mxu0
      %v647 = vadd.f32 0.0, %v646
      %v648 = vpop.f32.mrb[0].mxu0
      %v649 = vpop.f32.mrb[0].mxu0
      %v650 = vadd.f32 0.0, %v649
      %v651 = vpop.f32.mrb[0].mxu0
      %652 = vmatprep.mubr.bf16.mxu0 0
      %653 = vmatmul.mubr.bf16.gmra.mrb[0].mxu0 %v535
      %v654 = vpop.f32.mrb[0].mxu0
      %v655 = vadd.f32 0.0, %v654
      %v656 = vpop.f32.mrb[0].mxu0
      %v657 = vpop.f32.mrb[0].mxu0
      %v658 = vadd.f32 0.0, %v657
      %v659 = vpop.f32.mrb[0].mxu0
      %660 = vmatprep.mubr.bf16.mxu0 0
      %661 = vmatmul.mubr.bf16.gmra.mrb[0].mxu0 %v536
      %v662 = vpop.f32.mrb[0].mxu0
      %v663 = vadd.f32 0.0, %v662
      %v664 = vpop.f32.mrb[0].mxu0
      %v665 = vpop.f32.mrb[0].mxu0
      %v666 = vadd.f32 0.0, %v665
      %v667 = vpop.f32.mrb[0].mxu0
      %668 = vmatprep.mubr.bf16.mxu0 0
      %669 = vmatmul.mubr.bf16.gmra.mrb[0].mxu0 %v537
      %v670 = vpop.f32.mrb[0].mxu0
      %v671 = vadd.f32 0.0, %v670
      %v672 = vpop.f32.mrb[0].mxu0
      %v673 = vpop.f32.mrb[0].mxu0
      %v674 = vadd.f32 0.0, %v673
      %v675 = vpop.f32.mrb[0].mxu0
      %676 = vmatprep.mubr.bf16.mxu0 0
      %677 = vmatmul.mubr.bf16.gmra.mrb[0].mxu0 %v538
      %v678 = vpop.f32.mrb[0].mxu0
      %v679 = vadd.f32 0.0, %v678
      %v680 = vpop.f32.mrb[0].mxu0
      %v681 = vpop.f32.mrb[0].mxu0
      %v682 = vadd.f32 0.0, %v681
      %v683 = vpop.f32.mrb[0].mxu0
      %684 = vmatprep.mubr.bf16.mxu0 0
      %685 = vmatmul.mubr.bf16.gmra.mrb[0].mxu0 %v539
      %v686 = vpop.f32.mrb[0].mxu0
      %v687 = vadd.f32 0.0, %v686
      %v688 = vpop.f32.mrb[0].mxu0
      %v689 = vpop.f32.mrb[0].mxu0
      %v690 = vadd.f32 0.0, %v689
      %v691 = vpop.f32.mrb[0].mxu0
      %692 = vdwg.mxu0
      %v709 = vunpack.c.l.b16 %v258
      %v710 = vunpack.c.l.b16 %v259
      %v711 = vunpack.c.l.b16 %v261
      %v712 = vunpack.c.l.b16 %v262
      %v713 = vunpack.c.l.b16 %v264
      %v714 = vunpack.c.l.b16 %v265
      %v715 = vunpack.c.l.b16 %v267
      %v716 = vunpack.c.l.b16 %v268
      %v717 = vunpack.c.l.b16 %v270
      %v718 = vunpack.c.l.b16 %v271
      %v719 = vunpack.c.l.b16 %v273
      %v720 = vunpack.c.l.b16 %v274
      %v721 = vunpack.c.l.b16 %v276
      %v722 = vunpack.c.l.b16 %v277
      %v723 = vunpack.c.l.b16 %v279
      %v724 = vunpack.c.l.b16 %v280
      %v725 = vpack.c.b16 %v710, %v709
      %v726 = vpack.c.b16 %v712, %v711
      %v727 = vpack.c.b16 %v714, %v713
      %v728 = vpack.c.b16 %v716, %v715
      %v729 = vpack.c.b16 %v718, %v717
      %v730 = vpack.c.b16 %v720, %v719
      %v731 = vpack.c.b16 %v722, %v721
      %v732 = vpack.c.b16 %v724, %v723
      %v757 = vunpack.c.l.b16 %v288
      %v758 = vunpack.c.l.b16 %v289
      %v759 = vunpack.c.l.b16 %v290
      %v760 = vunpack.c.l.b16 %v291
      %v761 = vunpack.c.l.b16 %v292
      %v762 = vunpack.c.l.b16 %v293
      %v763 = vunpack.c.l.b16 %v294
      %v764 = vunpack.c.l.b16 %v295
      %v765 = vunpack.c.l.b16 %v296
      %v766 = vunpack.c.l.b16 %v297
      %v767 = vunpack.c.l.b16 %v298
      %v768 = vunpack.c.l.b16 %v299
      %v769 = vunpack.c.l.b16 %v300
      %v770 = vunpack.c.l.b16 %v301
      %v771 = vunpack.c.l.b16 %v302
      %v772 = vunpack.c.l.b16 %v303
      %v773 = vpack.c.b16 %v758, %v757
      %v774 = vpack.c.b16 %v760, %v759
      %v775 = vpack.c.b16 %v762, %v761
      %v776 = vpack.c.b16 %v764, %v763
      %v777 = vpack.c.b16 %v766, %v765
      %v778 = vpack.c.b16 %v768, %v767
      %v779 = vpack.c.b16 %v770, %v769
      %v780 = vpack.c.b16 %v772, %v771
      %789 = vmatprep.subr.bf16.mxu0 0
      %790 = vmatpush1.bf16.msra.mxu0 %v773
      %791 = vmatprep.subr.bf16.mxu0 0
      %792 = vmatpush1.bf16.msra.mxu0 %v774
      %793 = vmatprep.subr.bf16.mxu0 0
      %794 = vmatpush1.bf16.msra.mxu0 %v775
      %795 = vmatprep.subr.bf16.mxu0 0
      %796 = vmatpush1.bf16.msra.mxu0 %v776
      %797 = vmatprep.subr.bf16.mxu0 0
      %798 = vmatpush1.bf16.msra.mxu0 %v777
      %799 = vmatprep.subr.bf16.mxu0 0
      %800 = vmatpush1.bf16.msra.mxu0 %v778
      %801 = vmatprep.subr.bf16.mxu0 0
      %802 = vmatpush1.bf16.msra.mxu0 %v779
      %803 = vmatprep.subr.bf16.mxu0 0
      %804 = vmatpush1.bf16.msra.mxu0 %v780
      %805 = vmatprep.subr.bf16.mxu0 0
      %806 = vmatpush1.bf16.msra.mxu0 0
      %807 = vmatprep.subr.bf16.mxu0 0
      %808 = vmatpush1.bf16.msra.mxu0 0
      %809 = vmatprep.subr.bf16.mxu0 0
      %810 = vmatpush1.bf16.msra.mxu0 0
      %811 = vmatprep.subr.bf16.mxu0 0
      %812 = vmatpush1.bf16.msra.mxu0 0
      %813 = vmatprep.subr.bf16.mxu0 0
      %814 = vmatpush1.bf16.msra.mxu0 0
      %815 = vmatprep.subr.bf16.mxu0 0
      %816 = vmatpush1.bf16.msra.mxu0 0
      %817 = vmatprep.subr.bf16.mxu0 0
      %818 = vmatpush1.bf16.msra.mxu0 0
      %819 = vmatprep.subr.bf16.mxu0 0
      %820 = vmatpush1.bf16.msra.mxu0 0
      %821 = vmatprep.mubr.bf16.mxu0 0
      %822 = vmatmul.mubr.bf16.gmra.mrb[0].mxu0 %v725
      %v823 = vpop.f32.mrb[0].mxu0
      %v824 = vadd.f32 %v631, %v823
      %v825 = vpop.f32.mrb[0].mxu0
      %v826 = vpop.f32.mrb[0].mxu0
      %v827 = vadd.f32 %v634, %v826
      %v828 = vpop.f32.mrb[0].mxu0
      %829 = vmatprep.mubr.bf16.mxu0 0
      %830 = vmatmul.mubr.bf16.gmra.mrb[0].mxu0 %v726
      %v831 = vpop.f32.mrb[0].mxu0
      %v832 = vadd.f32 %v639, %v831
      %v833 = vpop.f32.mrb[0].mxu0
      %v834 = vpop.f32.mrb[0].mxu0
      %v835 = vadd.f32 %v642, %v834
      %v836 = vpop.f32.mrb[0].mxu0
      %837 = vmatprep.mubr.bf16.mxu0 0
      %838 = vmatmul.mubr.bf16.gmra.mrb[0].mxu0 %v727
      %v839 = vpop.f32.mrb[0].mxu0
      %v840 = vadd.f32 %v647, %v839
      %v841 = vpop.f32.mrb[0].mxu0
      %v842 = vpop.f32.mrb[0].mxu0
      %v843 = vadd.f32 %v650, %v842
      %v844 = vpop.f32.mrb[0].mxu0
      %845 = vmatprep.mubr.bf16.mxu0 0
      %846 = vmatmul.mubr.bf16.gmra.mrb[0].mxu0 %v728
      %v847 = vpop.f32.mrb[0].mxu0
      %v848 = vadd.f32 %v655, %v847
      %v849 = vpop.f32.mrb[0].mxu0
      %v850 = vpop.f32.mrb[0].mxu0
      %v851 = vadd.f32 %v658, %v850
      %v852 = vpop.f32.mrb[0].mxu0
      %853 = vmatprep.mubr.bf16.mxu0 0
      %854 = vmatmul.mubr.bf16.gmra.mrb[0].mxu0 %v729
      %v855 = vpop.f32.mrb[0].mxu0
      %v856 = vadd.f32 %v663, %v855
      %v857 = vpop.f32.mrb[0].mxu0
      %v858 = vpop.f32.mrb[0].mxu0
      %v859 = vadd.f32 %v666, %v858
      %v860 = vpop.f32.mrb[0].mxu0
      %861 = vmatprep.mubr.bf16.mxu0 0
      %862 = vmatmul.mubr.bf16.gmra.mrb[0].mxu0 %v730
      %v863 = vpop.f32.mrb[0].mxu0
      %v864 = vadd.f32 %v671, %v863
      %v865 = vpop.f32.mrb[0].mxu0
      %v866 = vpop.f32.mrb[0].mxu0
      %v867 = vadd.f32 %v674, %v866
      %v868 = vpop.f32.mrb[0].mxu0
      %869 = vmatprep.mubr.bf16.mxu0 0
      %870 = vmatmul.mubr.bf16.gmra.mrb[0].mxu0 %v731
      %v871 = vpop.f32.mrb[0].mxu0
      %v872 = vadd.f32 %v679, %v871
      %v873 = vpop.f32.mrb[0].mxu0
      %v874 = vpop.f32.mrb[0].mxu0
      %v875 = vadd.f32 %v682, %v874
      %v876 = vpop.f32.mrb[0].mxu0
      %877 = vmatprep.mubr.bf16.mxu0 0
      %878 = vmatmul.mubr.bf16.gmra.mrb[0].mxu0 %v732
      %v879 = vpop.f32.mrb[0].mxu0
      %v880 = vadd.f32 %v687, %v879
      %v881 = vpop.f32.mrb[0].mxu0
      %v882 = vpop.f32.mrb[0].mxu0
      %v883 = vadd.f32 %v690, %v882
      %v884 = vpop.f32.mrb[0].mxu0
      %885 = vdwg.mxu0
      %vm894 = vcmask 1042432
      %vm895 = vcmask 1046532
      %vm896 = vmor %vm894, %vm895
      %v897 = vrot.slane %v258, 5
      %v898 = vrot.slane %v897, 4
      %v899 = vrot.slane %v259, 5
      %v900 = vsel %vm896, %v898, %v899
      %v901 = vrot.slane %v899, 4
      %v902 = vrot.slane %v260, 5
      %v903 = vsel %vm896, %v901, %v902
      %v904 = vrot.slane %v261, 5
      %v905 = vrot.slane %v904, 4
      %v906 = vrot.slane %v262, 5
      %v907 = vsel %vm896, %v905, %v906
      %v908 = vrot.slane %v906, 4
      %v909 = vrot.slane %v263, 5
      %v910 = vsel %vm896, %v908, %v909
      %v911 = vrot.slane %v264, 5
      %v912 = vrot.slane %v911, 4
      %v913 = vrot.slane %v265, 5
      %v914 = vsel %vm896, %v912, %v913
      %v915 = vrot.slane %v913, 4
      %v916 = vrot.slane %v266, 5
      %v917 = vsel %vm896, %v915, %v916
      %v918 = vrot.slane %v267, 5
      %v919 = vrot.slane %v918, 4
      %v920 = vrot.slane %v268, 5
      %v921 = vsel %vm896, %v919, %v920
      %v922 = vrot.slane %v920, 4
      %v923 = vrot.slane %v269, 5
      %v924 = vsel %vm896, %v922, %v923
      %v925 = vrot.slane %v270, 5
      %v926 = vrot.slane %v925, 4
      %v927 = vrot.slane %v271, 5
      %v928 = vsel %vm896, %v926, %v927
      %v929 = vrot.slane %v927, 4
      %v930 = vrot.slane %v272, 5
      %v931 = vsel %vm896, %v929, %v930
      %v932 = vrot.slane %v273, 5
      %v933 = vrot.slane %v932, 4
      %v934 = vrot.slane %v274, 5
      %v935 = vsel %vm896, %v933, %v934
      %v936 = vrot.slane %v934, 4
      %v937 = vrot.slane %v275, 5
      %v938 = vsel %vm896, %v936, %v937
      %v939 = vrot.slane %v276, 5
      %v940 = vrot.slane %v939, 4
      %v941 = vrot.slane %v277, 5
      %v942 = vsel %vm896, %v940, %v941
      %v943 = vrot.slane %v941, 4
      %v944 = vrot.slane %v278, 5
      %v945 = vsel %vm896, %v943, %v944
      %v946 = vrot.slane %v279, 5
      %v947 = vrot.slane %v946, 4
      %v948 = vrot.slane %v280, 5
      %v949 = vsel %vm896, %v947, %v948
      %v950 = vrot.slane %v948, 4
      %v951 = vrot.slane %v281, 5
      %v952 = vsel %vm896, %v950, %v951
      %s953 = scalar_lea.vmem %s1, 128
      %v954 = vld [vmem:[%s953] sm:$0xf]
      %v955 = vld [vmem:[%s953 + $0x4] sm:$0xf]
      %v956 = vld [vmem:[%s953 + $0x8] sm:$0xf]
      %v957 = vld [vmem:[%s953 + $0xc] sm:$0xf]
      %v958 = vld [vmem:[%s953 + $0x10] sm:$0xf]
      %v959 = vld [vmem:[%s953 + $0x14] sm:$0xf]
      %v960 = vld [vmem:[%s953 + $0x18] sm:$0xf]
      %v961 = vld [vmem:[%s953 + $0x1c] sm:$0xf]
      %v962 = vld [vmem:[%s953 + $0x20] sm:$0xf]
      %v963 = vld [vmem:[%s953 + $0x24] sm:$0xf]
      %v964 = vld [vmem:[%s953 + $0x28] sm:$0xf]
      %v965 = vld [vmem:[%s953 + $0x2c] sm:$0xf]
      %v966 = vld [vmem:[%s953 + $0x30] sm:$0xf]
      %v967 = vld [vmem:[%s953 + $0x34] sm:$0xf]
      %v968 = vld [vmem:[%s953 + $0x38] sm:$0xf]
      %v969 = vld [vmem:[%s953 + $0x3c] sm:$0xf]
      %v970 = vunpack.c.l.b16 %v900
      %v971 = vunpack.c.l.b16 %v903
      %v972 = vunpack.c.l.b16 %v907
      %v973 = vunpack.c.l.b16 %v910
      %v974 = vunpack.c.l.b16 %v914
      %v975 = vunpack.c.l.b16 %v917
      %v976 = vunpack.c.l.b16 %v921
      %v977 = vunpack.c.l.b16 %v924
      %v978 = vunpack.c.l.b16 %v928
      %v979 = vunpack.c.l.b16 %v931
      %v980 = vunpack.c.l.b16 %v935
      %v981 = vunpack.c.l.b16 %v938
      %v982 = vunpack.c.l.b16 %v942
      %v983 = vunpack.c.l.b16 %v945
      %v984 = vunpack.c.l.b16 %v949
      %v985 = vunpack.c.l.b16 %v952
      %v986 = vpack.c.b16 %v971, %v970
      %v987 = vpack.c.b16 %v973, %v972
      %v988 = vpack.c.b16 %v975, %v974
      %v989 = vpack.c.b16 %v977, %v976
      %v990 = vpack.c.b16 %v979, %v978
      %v991 = vpack.c.b16 %v981, %v980
      %v992 = vpack.c.b16 %v983, %v982
      %v993 = vpack.c.b16 %v985, %v984
      %v1018 = vunpack.c.l.b16 %v954
      %v1019 = vunpack.c.l.b16 %v955
      %v1020 = vunpack.c.l.b16 %v956
      %v1021 = vunpack.c.l.b16 %v957
      %v1022 = vunpack.c.l.b16 %v958
      %v1023 = vunpack.c.l.b16 %v959
      %v1024 = vunpack.c.l.b16 %v960
      %v1025 = vunpack.c.l.b16 %v961
      %v1026 = vunpack.c.l.b16 %v962
      %v1027 = vunpack.c.l.b16 %v963
      %v1028 = vunpack.c.l.b16 %v964
      %v1029 = vunpack.c.l.b16 %v965
      %v1030 = vunpack.c.l.b16 %v966
      %v1031 = vunpack.c.l.b16 %v967
      %v1032 = vunpack.c.l.b16 %v968
      %v1033 = vunpack.c.l.b16 %v969
      %v1034 = vpack.c.b16 %v1019, %v1018
      %v1035 = vpack.c.b16 %v1021, %v1020
      %v1036 = vpack.c.b16 %v1023, %v1022
      %v1037 = vpack.c.b16 %v1025, %v1024
      %v1038 = vpack.c.b16 %v1027, %v1026
      %v1039 = vpack.c.b16 %v1029, %v1028
      %v1040 = vpack.c.b16 %v1031, %v1030
      %v1041 = vpack.c.b16 %v1033, %v1032
      %1050 = vmatprep.subr.bf16.mxu0 0
      %1051 = vmatpush1.bf16.msra.mxu0 %v1034
      %1052 = vmatprep.subr.bf16.mxu0 0
      %1053 = vmatpush1.bf16.msra.mxu0 %v1035
      %1054 = vmatprep.subr.bf16.mxu0 0
      %1055 = vmatpush1.bf16.msra.mxu0 %v1036
      %1056 = vmatprep.subr.bf16.mxu0 0
      %1057 = vmatpush1.bf16.msra.mxu0 %v1037
      %1058 = vmatprep.subr.bf16.mxu0 0
      %1059 = vmatpush1.bf16.msra.mxu0 %v1038
      %1060 = vmatprep.subr.bf16.mxu0 0
      %1061 = vmatpush1.bf16.msra.mxu0 %v1039
      %1062 = vmatprep.subr.bf16.mxu0 0
      %1063 = vmatpush1.bf16.msra.mxu0 %v1040
      %1064 = vmatprep.subr.bf16.mxu0 0
      %1065 = vmatpush1.bf16.msra.mxu0 %v1041
      %1066 = vmatprep.subr.bf16.mxu0 0
      %1067 = vmatpush1.bf16.msra.mxu0 0
      %1068 = vmatprep.subr.bf16.mxu0 0
      %1069 = vmatpush1.bf16.msra.mxu0 0
      %1070 = vmatprep.subr.bf16.mxu0 0
      %1071 = vmatpush1.bf16.msra.mxu0 0
      %1072 = vmatprep.subr.bf16.mxu0 0
      %1073 = vmatpush1.bf16.msra.mxu0 0
      %1074 = vmatprep.subr.bf16.mxu0 0
      %1075 = vmatpush1.bf16.msra.mxu0 0
      %1076 = vmatprep.subr.bf16.mxu0 0
      %1077 = vmatpush1.bf16.msra.mxu0 0
      %1078 = vmatprep.subr.bf16.mxu0 0
      %1079 = vmatpush1.bf16.msra.mxu0 0
      %1080 = vmatprep.subr.bf16.mxu0 0
      %1081 = vmatpush1.bf16.msra.mxu0 0
      %1082 = vmatprep.mubr.bf16.mxu0 0
      %1083 = vmatmul.mubr.bf16.gmra.mrb[0].mxu0 %v986
      %v1084 = vpop.f32.mrb[0].mxu0
      %v1085 = vadd.f32 0.0, %v1084
      %v1086 = vpop.f32.mrb[0].mxu0
      %v1087 = vpop.f32.mrb[0].mxu0
      %v1088 = vadd.f32 0.0, %v1087
      %v1089 = vpop.f32.mrb[0].mxu0
      %1090 = vmatprep.mubr.bf16.mxu0 0
      %1091 = vmatmul.mubr.bf16.gmra.mrb[0].mxu0 %v987
      %v1092 = vpop.f32.mrb[0].mxu0
      %v1093 = vadd.f32 0.0, %v1092
      %v1094 = vpop.f32.mrb[0].mxu0
      %v1095 = vpop.f32.mrb[0].mxu0
      %v1096 = vadd.f32 0.0, %v1095
      %v1097 = vpop.f32.mrb[0].mxu0
      %1098 = vmatprep.mubr.bf16.mxu0 0
      %1099 = vmatmul.mubr.bf16.gmra.mrb[0].mxu0 %v988
      %v1100 = vpop.f32.mrb[0].mxu0
      %v1101 = vadd.f32 0.0, %v1100
      %v1102 = vpop.f32.mrb[0].mxu0
      %v1103 = vpop.f32.mrb[0].mxu0
      %v1104 = vadd.f32 0.0, %v1103
      %v1105 = vpop.f32.mrb[0].mxu0
      %1106 = vmatprep.mubr.bf16.mxu0 0
      %1107 = vmatmul.mubr.bf16.gmra.mrb[0].mxu0 %v989
      %v1108 = vpop.f32.mrb[0].mxu0
      %v1109 = vadd.f32 0.0, %v1108
      %v1110 = vpop.f32.mrb[0].mxu0
      %v1111 = vpop.f32.mrb[0].mxu0
      %v1112 = vadd.f32 0.0, %v1111
      %v1113 = vpop.f32.mrb[0].mxu0
      %1114 = vmatprep.mubr.bf16.mxu0 0
      %1115 = vmatmul.mubr.bf16.gmra.mrb[0].mxu0 %v990
      %v1116 = vpop.f32.mrb[0].mxu0
      %v1117 = vadd.f32 0.0, %v1116
      %v1118 = vpop.f32.mrb[0].mxu0
      %v1119 = vpop.f32.mrb[0].mxu0
      %v1120 = vadd.f32 0.0, %v1119
      %v1121 = vpop.f32.mrb[0].mxu0
      %1122 = vmatprep.mubr.bf16.mxu0 0
      %1123 = vmatmul.mubr.bf16.gmra.mrb[0].mxu0 %v991
      %v1124 = vpop.f32.mrb[0].mxu0
      %v1125 = vadd.f32 0.0, %v1124
      %v1126 = vpop.f32.mrb[0].mxu0
      %v1127 = vpop.f32.mrb[0].mxu0
      %v1128 = vadd.f32 0.0, %v1127
      %v1129 = vpop.f32.mrb[0].mxu0
      %1130 = vmatprep.mubr.bf16.mxu0 0
      %1131 = vmatmul.mubr.bf16.gmra.mrb[0].mxu0 %v992
      %v1132 = vpop.f32.mrb[0].mxu0
      %v1133 = vadd.f32 0.0, %v1132
      %v1134 = vpop.f32.mrb[0].mxu0
      %v1135 = vpop.f32.mrb[0].mxu0
      %v1136 = vadd.f32 0.0, %v1135
      %v1137 = vpop.f32.mrb[0].mxu0
      %1138 = vmatprep.mubr.bf16.mxu0 0
      %1139 = vmatmul.mubr.bf16.gmra.mrb[0].mxu0 %v993
      %v1140 = vpop.f32.mrb[0].mxu0
      %v1141 = vadd.f32 0.0, %v1140
      %v1142 = vpop.f32.mrb[0].mxu0
      %v1143 = vpop.f32.mrb[0].mxu0
      %v1144 = vadd.f32 0.0, %v1143
      %v1145 = vpop.f32.mrb[0].mxu0
      %1146 = vdwg.mxu0
      %v1147 = vadd.f32 %v824, %v1085
      %v1148 = vadd.f32 %v827, %v1088
      %v1149 = vadd.f32 %v832, %v1093
      %v1150 = vadd.f32 %v835, %v1096
      %v1151 = vadd.f32 %v840, %v1101
      %v1152 = vadd.f32 %v843, %v1104
      %v1153 = vadd.f32 %v848, %v1109
      %v1154 = vadd.f32 %v851, %v1112
      %v1155 = vadd.f32 %v856, %v1117
      %v1156 = vadd.f32 %v859, %v1120
      %v1157 = vadd.f32 %v864, %v1125
      %v1158 = vadd.f32 %v867, %v1128
      %v1159 = vadd.f32 %v872, %v1133
      %v1160 = vadd.f32 %v875, %v1136
      %v1161 = vadd.f32 %v880, %v1141
      %v1162 = vadd.f32 %v883, %v1144
      %s1163 = scalar_lea.vmem %s1, 192
      %v1164 = vld [vmem:[%s1163] sm:$0xf]
      %v1165 = vld [vmem:[%s1163 + $0x4] sm:$0xf]
      %v1166 = vld [vmem:[%s1163 + $0x8] sm:$0xf]
      %v1167 = vld [vmem:[%s1163 + $0xc] sm:$0xf]
      %v1168 = vld [vmem:[%s1163 + $0x10] sm:$0xf]
      %v1169 = vld [vmem:[%s1163 + $0x14] sm:$0xf]
      %v1170 = vld [vmem:[%s1163 + $0x18] sm:$0xf]
      %v1171 = vld [vmem:[%s1163 + $0x1c] sm:$0xf]
      %v1172 = vld [vmem:[%s1163 + $0x20] sm:$0xf]
      %v1173 = vld [vmem:[%s1163 + $0x24] sm:$0xf]
      %v1174 = vld [vmem:[%s1163 + $0x28] sm:$0xf]
      %v1175 = vld [vmem:[%s1163 + $0x2c] sm:$0xf]
      %v1176 = vld [vmem:[%s1163 + $0x30] sm:$0xf]
      %v1177 = vld [vmem:[%s1163 + $0x34] sm:$0xf]
      %v1178 = vld [vmem:[%s1163 + $0x38] sm:$0xf]
      %v1179 = vld [vmem:[%s1163 + $0x3c] sm:$0xf]
      %v1182 = vunpack.c.l.b16 %v282
      %v1183 = vunpack.c.l.b16 %v283
      %v1184 = vpack.c.b16 %v1183, %v1182
      %v1202 = vunpack.c.l.b16 %v1164
      %v1203 = vunpack.c.l.b16 %v1165
      %v1204 = vunpack.c.l.b16 %v1166
      %v1205 = vunpack.c.l.b16 %v1167
      %v1206 = vunpack.c.l.b16 %v1168
      %v1207 = vunpack.c.l.b16 %v1169
      %v1208 = vunpack.c.l.b16 %v1170
      %v1209 = vunpack.c.l.b16 %v1171
      %v1210 = vunpack.c.l.b16 %v1172
      %v1211 = vunpack.c.l.b16 %v1173
      %v1212 = vunpack.c.l.b16 %v1174
      %v1213 = vunpack.c.l.b16 %v1175
      %v1214 = vunpack.c.l.b16 %v1176
      %v1215 = vunpack.c.l.b16 %v1177
      %v1216 = vunpack.c.l.b16 %v1178
      %v1217 = vunpack.c.l.b16 %v1179
      %v1218 = vpack.c.b16 %v1203, %v1202
      %v1219 = vpack.c.b16 %v1205, %v1204
      %v1220 = vpack.c.b16 %v1207, %v1206
      %v1221 = vpack.c.b16 %v1209, %v1208
      %v1222 = vpack.c.b16 %v1211, %v1210
      %v1223 = vpack.c.b16 %v1213, %v1212
      %v1224 = vpack.c.b16 %v1215, %v1214
      %v1225 = vpack.c.b16 %v1217, %v1216
      %1234 = vmatprep.subr.bf16.mxu0 0
      %1235 = vmatpush1.bf16.msra.mxu0 %v1218
      %1236 = vmatprep.subr.bf16.mxu0 0
      %1237 = vmatpush1.bf16.msra.mxu0 %v1219
      %1238 = vmatprep.subr.bf16.mxu0 0
      %1239 = vmatpush1.bf16.msra.mxu0 %v1220
      %1240 = vmatprep.subr.bf16.mxu0 0
      %1241 = vmatpush1.bf16.msra.mxu0 %v1221
      %1242 = vmatprep.subr.bf16.mxu0 0
      %1243 = vmatpush1.bf16.msra.mxu0 %v1222
      %1244 = vmatprep.subr.bf16.mxu0 0
      %1245 = vmatpush1.bf16.msra.mxu0 %v1223
      %1246 = vmatprep.subr.bf16.mxu0 0
      %1247 = vmatpush1.bf16.msra.mxu0 %v1224
      %1248 = vmatprep.subr.bf16.mxu0 0
      %1249 = vmatpush1.bf16.msra.mxu0 %v1225
      %1250 = vmatprep.subr.bf16.mxu0 0
      %1251 = vmatpush1.bf16.msra.mxu0 0
      %1252 = vmatprep.subr.bf16.mxu0 0
      %1253 = vmatpush1.bf16.msra.mxu0 0
      %1254 = vmatprep.subr.bf16.mxu0 0
      %1255 = vmatpush1.bf16.msra.mxu0 0
      %1256 = vmatprep.subr.bf16.mxu0 0
      %1257 = vmatpush1.bf16.msra.mxu0 0
      %1258 = vmatprep.subr.bf16.mxu0 0
      %1259 = vmatpush1.bf16.msra.mxu0 0
      %1260 = vmatprep.subr.bf16.mxu0 0
      %1261 = vmatpush1.bf16.msra.mxu0 0
      %1262 = vmatprep.subr.bf16.mxu0 0
      %1263 = vmatpush1.bf16.msra.mxu0 0
      %1264 = vmatprep.subr.bf16.mxu0 0
      %1265 = vmatpush1.bf16.msra.mxu0 0
      %1266 = vmatprep.mubr.bf16.mxu0 0
      %1267 = vmatmul.mubr.bf16.gmra.mrb[0].mxu0 %v726
      %v1268 = vpop.f32.mrb[0].mxu0
      %v1269 = vadd.f32 0.0, %v1268
      %v1270 = vpop.f32.mrb[0].mxu0
      %v1271 = vpop.f32.mrb[0].mxu0
      %v1272 = vadd.f32 0.0, %v1271
      %v1273 = vpop.f32.mrb[0].mxu0
      %1274 = vmatprep.mubr.bf16.mxu0 0
      %1275 = vmatmul.mubr.bf16.gmra.mrb[0].mxu0 %v727
      %v1276 = vpop.f32.mrb[0].mxu0
      %v1277 = vadd.f32 0.0, %v1276
      %v1278 = vpop.f32.mrb[0].mxu0
      %v1279 = vpop.f32.mrb[0].mxu0
      %v1280 = vadd.f32 0.0, %v1279
      %v1281 = vpop.f32.mrb[0].mxu0
      %1282 = vmatprep.mubr.bf16.mxu0 0
      %1283 = vmatmul.mubr.bf16.gmra.mrb[0].mxu0 %v728
      %v1284 = vpop.f32.mrb[0].mxu0
      %v1285 = vadd.f32 0.0, %v1284
      %v1286 = vpop.f32.mrb[0].mxu0
      %v1287 = vpop.f32.mrb[0].mxu0
      %v1288 = vadd.f32 0.0, %v1287
      %v1289 = vpop.f32.mrb[0].mxu0
      %1290 = vmatprep.mubr.bf16.mxu0 0
      %1291 = vmatmul.mubr.bf16.gmra.mrb[0].mxu0 %v729
      %v1292 = vpop.f32.mrb[0].mxu0
      %v1293 = vadd.f32 0.0, %v1292
      %v1294 = vpop.f32.mrb[0].mxu0
      %v1295 = vpop.f32.mrb[0].mxu0
      %v1296 = vadd.f32 0.0, %v1295
      %v1297 = vpop.f32.mrb[0].mxu0
      %1298 = vmatprep.mubr.bf16.mxu0 0
      %1299 = vmatmul.mubr.bf16.gmra.mrb[0].mxu0 %v730
      %v1300 = vpop.f32.mrb[0].mxu0
      %v1301 = vadd.f32 0.0, %v1300
      %v1302 = vpop.f32.mrb[0].mxu0
      %v1303 = vpop.f32.mrb[0].mxu0
      %v1304 = vadd.f32 0.0, %v1303
      %v1305 = vpop.f32.mrb[0].mxu0
      %1306 = vmatprep.mubr.bf16.mxu0 0
      %1307 = vmatmul.mubr.bf16.gmra.mrb[0].mxu0 %v731
      %v1308 = vpop.f32.mrb[0].mxu0
      %v1309 = vadd.f32 0.0, %v1308
      %v1310 = vpop.f32.mrb[0].mxu0
      %v1311 = vpop.f32.mrb[0].mxu0
      %v1312 = vadd.f32 0.0, %v1311
      %v1313 = vpop.f32.mrb[0].mxu0
      %1314 = vmatprep.mubr.bf16.mxu0 0
      %1315 = vmatmul.mubr.bf16.gmra.mrb[0].mxu0 %v732
      %v1316 = vpop.f32.mrb[0].mxu0
      %v1317 = vadd.f32 0.0, %v1316
      %v1318 = vpop.f32.mrb[0].mxu0
      %v1319 = vpop.f32.mrb[0].mxu0
      %v1320 = vadd.f32 0.0, %v1319
      %v1321 = vpop.f32.mrb[0].mxu0
      %1322 = vmatprep.mubr.bf16.mxu0 0
      %1323 = vmatmul.mubr.bf16.gmra.mrb[0].mxu0 %v1184
      %v1324 = vpop.f32.mrb[0].mxu0
      %v1325 = vadd.f32 0.0, %v1324
      %v1326 = vpop.f32.mrb[0].mxu0
      %v1327 = vpop.f32.mrb[0].mxu0
      %v1328 = vadd.f32 0.0, %v1327
      %v1329 = vpop.f32.mrb[0].mxu0
      %1330 = vdwg.mxu0
      %v1331 = vadd.f32 %v1147, %v1269
      %v1332 = vadd.f32 %v1148, %v1272
      %v1333 = vadd.f32 %v1149, %v1277
      %v1334 = vadd.f32 %v1150, %v1280
      %v1335 = vadd.f32 %v1151, %v1285
      %v1336 = vadd.f32 %v1152, %v1288
      %v1337 = vadd.f32 %v1153, %v1293
      %v1338 = vadd.f32 %v1154, %v1296
      %v1339 = vadd.f32 %v1155, %v1301
      %v1340 = vadd.f32 %v1156, %v1304
      %v1341 = vadd.f32 %v1157, %v1309
      %v1342 = vadd.f32 %v1158, %v1312
      %v1343 = vadd.f32 %v1159, %v1317
      %v1344 = vadd.f32 %v1160, %v1320
      %v1345 = vadd.f32 %v1161, %v1325
      %v1346 = vadd.f32 %v1162, %v1328
      %v1348 = vshrl.u32 %v282, 16
      %v1350 = vrot.slane %v1348, 4
      %v1351 = vshll.u32 %v282, 16
      %v1353 = vrot.slane %v1351, 5
      %v1354 = vor.u32 %v1350, %v1353
      %v1355 = vrot.slane %v1354, 4
      %v1357 = vshll.u32 %v283, 16
      %v1359 = vrot.slane %v1357, 5
      %v1360 = vsel %vm306, %v1355, %v1359
      %v1361 = vshrl.u32 %v283, 16
      %v1363 = vrot.slane %v1361, 4
      %v1364 = vor.u32 %v1363, %v1359
      %v1365 = vrot.slane %v1364, 4
      %v1367 = vshll.u32 %v284, 16
      %v1369 = vrot.slane %v1367, 5
      %v1370 = vsel %vm306, %v1365, %v1369
      %s1371 = scalar_lea.vmem %s1, 256
      %v1372 = vld [vmem:[%s1371] sm:$0xf]
      %v1373 = vld [vmem:[%s1371 + $0x4] sm:$0xf]
      %v1374 = vld [vmem:[%s1371 + $0x8] sm:$0xf]
      %v1375 = vld [vmem:[%s1371 + $0xc] sm:$0xf]
      %v1376 = vld [vmem:[%s1371 + $0x10] sm:$0xf]
      %v1377 = vld [vmem:[%s1371 + $0x14] sm:$0xf]
      %v1378 = vld [vmem:[%s1371 + $0x18] sm:$0xf]
      %v1379 = vld [vmem:[%s1371 + $0x1c] sm:$0xf]
      %v1380 = vld [vmem:[%s1371 + $0x20] sm:$0xf]
      %v1381 = vld [vmem:[%s1371 + $0x24] sm:$0xf]
      %v1382 = vld [vmem:[%s1371 + $0x28] sm:$0xf]
      %v1383 = vld [vmem:[%s1371 + $0x2c] sm:$0xf]
      %v1384 = vld [vmem:[%s1371 + $0x30] sm:$0xf]
      %v1385 = vld [vmem:[%s1371 + $0x34] sm:$0xf]
      %v1386 = vld [vmem:[%s1371 + $0x38] sm:$0xf]
      %v1387 = vld [vmem:[%s1371 + $0x3c] sm:$0xf]
      %v1388 = vunpack.c.l.b16 %v1360
      %v1389 = vunpack.c.l.b16 %v1370
      %v1390 = vpack.c.b16 %v1389, %v1388
      %v1408 = vunpack.c.l.b16 %v1372
      %v1409 = vunpack.c.l.b16 %v1373
      %v1410 = vunpack.c.l.b16 %v1374
      %v1411 = vunpack.c.l.b16 %v1375
      %v1412 = vunpack.c.l.b16 %v1376
      %v1413 = vunpack.c.l.b16 %v1377
      %v1414 = vunpack.c.l.b16 %v1378
      %v1415 = vunpack.c.l.b16 %v1379
      %v1416 = vunpack.c.l.b16 %v1380
      %v1417 = vunpack.c.l.b16 %v1381
      %v1418 = vunpack.c.l.b16 %v1382
      %v1419 = vunpack.c.l.b16 %v1383
      %v1420 = vunpack.c.l.b16 %v1384
      %v1421 = vunpack.c.l.b16 %v1385
      %v1422 = vunpack.c.l.b16 %v1386
      %v1423 = vunpack.c.l.b16 %v1387
      %v1424 = vpack.c.b16 %v1409, %v1408
      %v1425 = vpack.c.b16 %v1411, %v1410
      %v1426 = vpack.c.b16 %v1413, %v1412
      %v1427 = vpack.c.b16 %v1415, %v1414
      %v1428 = vpack.c.b16 %v1417, %v1416
      %v1429 = vpack.c.b16 %v1419, %v1418
      %v1430 = vpack.c.b16 %v1421, %v1420
      %v1431 = vpack.c.b16 %v1423, %v1422
      %1440 = vmatprep.subr.bf16.mxu0 0
      %1441 = vmatpush1.bf16.msra.mxu0 %v1424
      %1442 = vmatprep.subr.bf16.mxu0 0
      %1443 = vmatpush1.bf16.msra.mxu0 %v1425
      %1444 = vmatprep.subr.bf16.mxu0 0
      %1445 = vmatpush1.bf16.msra.mxu0 %v1426
      %1446 = vmatprep.subr.bf16.mxu0 0
      %1447 = vmatpush1.bf16.msra.mxu0 %v1427
      %1448 = vmatprep.subr.bf16.mxu0 0
      %1449 = vmatpush1.bf16.msra.mxu0 %v1428
      %1450 = vmatprep.subr.bf16.mxu0 0
      %1451 = vmatpush1.bf16.msra.mxu0 %v1429
      %1452 = vmatprep.subr.bf16.mxu0 0
      %1453 = vmatpush1.bf16.msra.mxu0 %v1430
      %1454 = vmatprep.subr.bf16.mxu0 0
      %1455 = vmatpush1.bf16.msra.mxu0 %v1431
      %1456 = vmatprep.subr.bf16.mxu0 0
      %1457 = vmatpush1.bf16.msra.mxu0 0
      %1458 = vmatprep.subr.bf16.mxu0 0
      %1459 = vmatpush1.bf16.msra.mxu0 0
      %1460 = vmatprep.subr.bf16.mxu0 0
      %1461 = vmatpush1.bf16.msra.mxu0 0
      %1462 = vmatprep.subr.bf16.mxu0 0
      %1463 = vmatpush1.bf16.msra.mxu0 0
      %1464 = vmatprep.subr.bf16.mxu0 0
      %1465 = vmatpush1.bf16.msra.mxu0 0
      %1466 = vmatprep.subr.bf16.mxu0 0
      %1467 = vmatpush1.bf16.msra.mxu0 0
      %1468 = vmatprep.subr.bf16.mxu0 0
      %1469 = vmatpush1.bf16.msra.mxu0 0
      %1470 = vmatprep.subr.bf16.mxu0 0
      %1471 = vmatpush1.bf16.msra.mxu0 0
      %1472 = vmatprep.mubr.bf16.mxu0 0
      %1473 = vmatmul.mubr.bf16.gmra.mrb[0].mxu0 %v533
      %v1474 = vpop.f32.mrb[0].mxu0
      %v1475 = vadd.f32 0.0, %v1474
      %v1476 = vpop.f32.mrb[0].mxu0
      %v1477 = vpop.f32.mrb[0].mxu0
      %v1478 = vadd.f32 0.0, %v1477
      %v1479 = vpop.f32.mrb[0].mxu0
      %1480 = vmatprep.mubr.bf16.mxu0 0
      %1481 = vmatmul.mubr.bf16.gmra.mrb[0].mxu0 %v534
      %v1482 = vpop.f32.mrb[0].mxu0
      %v1483 = vadd.f32 0.0, %v1482
      %v1484 = vpop.f32.mrb[0].mxu0
      %v1485 = vpop.f32.mrb[0].mxu0
      %v1486 = vadd.f32 0.0, %v1485
      %v1487 = vpop.f32.mrb[0].mxu0
      %1488 = vmatprep.mubr.bf16.mxu0 0
      %1489 = vmatmul.mubr.bf16.gmra.mrb[0].mxu0 %v535
      %v1490 = vpop.f32.mrb[0].mxu0
      %v1491 = vadd.f32 0.0, %v1490
      %v1492 = vpop.f32.mrb[0].mxu0
      %v1493 = vpop.f32.mrb[0].mxu0
      %v1494 = vadd.f32 0.0, %v1493
      %v1495 = vpop.f32.mrb[0].mxu0
      %1496 = vmatprep.mubr.bf16.mxu0 0
      %1497 = vmatmul.mubr.bf16.gmra.mrb[0].mxu0 %v536
      %v1498 = vpop.f32.mrb[0].mxu0
      %v1499 = vadd.f32 0.0, %v1498
      %v1500 = vpop.f32.mrb[0].mxu0
      %v1501 = vpop.f32.mrb[0].mxu0
      %v1502 = vadd.f32 0.0, %v1501
      %v1503 = vpop.f32.mrb[0].mxu0
      %1504 = vmatprep.mubr.bf16.mxu0 0
      %1505 = vmatmul.mubr.bf16.gmra.mrb[0].mxu0 %v537
      %v1506 = vpop.f32.mrb[0].mxu0
      %v1507 = vadd.f32 0.0, %v1506
      %v1508 = vpop.f32.mrb[0].mxu0
      %v1509 = vpop.f32.mrb[0].mxu0
      %v1510 = vadd.f32 0.0, %v1509
      %v1511 = vpop.f32.mrb[0].mxu0
      %1512 = vmatprep.mubr.bf16.mxu0 0
      %1513 = vmatmul.mubr.bf16.gmra.mrb[0].mxu0 %v538
      %v1514 = vpop.f32.mrb[0].mxu0
      %v1515 = vadd.f32 0.0, %v1514
      %v1516 = vpop.f32.mrb[0].mxu0
      %v1517 = vpop.f32.mrb[0].mxu0
      %v1518 = vadd.f32 0.0, %v1517
      %v1519 = vpop.f32.mrb[0].mxu0
      %1520 = vmatprep.mubr.bf16.mxu0 0
      %1521 = vmatmul.mubr.bf16.gmra.mrb[0].mxu0 %v539
      %v1522 = vpop.f32.mrb[0].mxu0
      %v1523 = vadd.f32 0.0, %v1522
      %v1524 = vpop.f32.mrb[0].mxu0
      %v1525 = vpop.f32.mrb[0].mxu0
      %v1526 = vadd.f32 0.0, %v1525
      %v1527 = vpop.f32.mrb[0].mxu0
      %1528 = vmatprep.mubr.bf16.mxu0 0
      %1529 = vmatmul.mubr.bf16.gmra.mrb[0].mxu0 %v1390
      %v1530 = vpop.f32.mrb[0].mxu0
      %v1531 = vadd.f32 0.0, %v1530
      %v1532 = vpop.f32.mrb[0].mxu0
      %v1533 = vpop.f32.mrb[0].mxu0
      %v1534 = vadd.f32 0.0, %v1533
      %v1535 = vpop.f32.mrb[0].mxu0
      %1536 = vdwg.mxu0
      %v1537 = vadd.f32 %v1331, %v1475
      %v1538 = vadd.f32 %v1332, %v1478
      %v1539 = vadd.f32 %v1333, %v1483
      %v1540 = vadd.f32 %v1334, %v1486
      %v1541 = vadd.f32 %v1335, %v1491
      %v1542 = vadd.f32 %v1336, %v1494
      %v1543 = vadd.f32 %v1337, %v1499
      %v1544 = vadd.f32 %v1338, %v1502
      %v1545 = vadd.f32 %v1339, %v1507
      %v1546 = vadd.f32 %v1340, %v1510
      %v1547 = vadd.f32 %v1341, %v1515
      %v1548 = vadd.f32 %v1342, %v1518
      %v1549 = vadd.f32 %v1343, %v1523
      %v1550 = vadd.f32 %v1344, %v1526
      %v1551 = vadd.f32 %v1345, %v1531
      %v1552 = vadd.f32 %v1346, %v1534
      %v1554 = vrot.slane %v282, 5
      %v1555 = vrot.slane %v1554, 4
      %v1556 = vrot.slane %v283, 5
      %v1557 = vsel %vm896, %v1555, %v1556
      %v1558 = vrot.slane %v1556, 4
      %v1559 = vrot.slane %v284, 5
      %v1560 = vsel %vm896, %v1558, %v1559
      %s1561 = scalar_lea.vmem %s1, 320
      %v1562 = vld [vmem:[%s1561] sm:$0xf]
      %v1563 = vld [vmem:[%s1561 + $0x4] sm:$0xf]
      %v1564 = vld [vmem:[%s1561 + $0x8] sm:$0xf]
      %v1565 = vld [vmem:[%s1561 + $0xc] sm:$0xf]
      %v1566 = vld [vmem:[%s1561 + $0x10] sm:$0xf]
      %v1567 = vld [vmem:[%s1561 + $0x14] sm:$0xf]
      %v1568 = vld [vmem:[%s1561 + $0x18] sm:$0xf]
      %v1569 = vld [vmem:[%s1561 + $0x1c] sm:$0xf]
      %v1570 = vld [vmem:[%s1561 + $0x20] sm:$0xf]
      %v1571 = vld [vmem:[%s1561 + $0x24] sm:$0xf]
      %v1572 = vld [vmem:[%s1561 + $0x28] sm:$0xf]
      %v1573 = vld [vmem:[%s1561 + $0x2c] sm:$0xf]
      %v1574 = vld [vmem:[%s1561 + $0x30] sm:$0xf]
      %v1575 = vld [vmem:[%s1561 + $0x34] sm:$0xf]
      %v1576 = vld [vmem:[%s1561 + $0x38] sm:$0xf]
      %v1577 = vld [vmem:[%s1561 + $0x3c] sm:$0xf]
      %v1578 = vunpack.c.l.b16 %v1557
      %v1579 = vunpack.c.l.b16 %v1560
      %v1580 = vpack.c.b16 %v1579, %v1578
      %v1598 = vunpack.c.l.b16 %v1562
      %v1599 = vunpack.c.l.b16 %v1563
      %v1600 = vunpack.c.l.b16 %v1564
      %v1601 = vunpack.c.l.b16 %v1565
      %v1602 = vunpack.c.l.b16 %v1566
      %v1603 = vunpack.c.l.b16 %v1567
      %v1604 = vunpack.c.l.b16 %v1568
      %v1605 = vunpack.c.l.b16 %v1569
      %v1606 = vunpack.c.l.b16 %v1570
      %v1607 = vunpack.c.l.b16 %v1571
      %v1608 = vunpack.c.l.b16 %v1572
      %v1609 = vunpack.c.l.b16 %v1573
      %v1610 = vunpack.c.l.b16 %v1574
      %v1611 = vunpack.c.l.b16 %v1575
      %v1612 = vunpack.c.l.b16 %v1576
      %v1613 = vunpack.c.l.b16 %v1577
      %v1614 = vpack.c.b16 %v1599, %v1598
      %v1615 = vpack.c.b16 %v1601, %v1600
      %v1616 = vpack.c.b16 %v1603, %v1602
      %v1617 = vpack.c.b16 %v1605, %v1604
      %v1618 = vpack.c.b16 %v1607, %v1606
      %v1619 = vpack.c.b16 %v1609, %v1608
      %v1620 = vpack.c.b16 %v1611, %v1610
      %v1621 = vpack.c.b16 %v1613, %v1612
      %1630 = vmatprep.subr.bf16.mxu0 0
      %1631 = vmatpush1.bf16.msra.mxu0 %v1614
      %1632 = vmatprep.subr.bf16.mxu0 0
      %1633 = vmatpush1.bf16.msra.mxu0 %v1615
      %1634 = vmatprep.subr.bf16.mxu0 0
      %1635 = vmatpush1.bf16.msra.mxu0 %v1616
      %1636 = vmatprep.subr.bf16.mxu0 0
      %1637 = vmatpush1.bf16.msra.mxu0 %v1617
      %1638 = vmatprep.subr.bf16.mxu0 0
      %1639 = vmatpush1.bf16.msra.mxu0 %v1618
      %1640 = vmatprep.subr.bf16.mxu0 0
      %1641 = vmatpush1.bf16.msra.mxu0 %v1619
      %1642 = vmatprep.subr.bf16.mxu0 0
      %1643 = vmatpush1.bf16.msra.mxu0 %v1620
      %1644 = vmatprep.subr.bf16.mxu0 0
      %1645 = vmatpush1.bf16.msra.mxu0 %v1621
      %1646 = vmatprep.subr.bf16.mxu0 0
      %1647 = vmatpush1.bf16.msra.mxu0 0
      %1648 = vmatprep.subr.bf16.mxu0 0
      %1649 = vmatpush1.bf16.msra.mxu0 0
      %1650 = vmatprep.subr.bf16.mxu0 0
      %1651 = vmatpush1.bf16.msra.mxu0 0
      %1652 = vmatprep.subr.bf16.mxu0 0
      %1653 = vmatpush1.bf16.msra.mxu0 0
      %1654 = vmatprep.subr.bf16.mxu0 0
      %1655 = vmatpush1.bf16.msra.mxu0 0
      %1656 = vmatprep.subr.bf16.mxu0 0
      %1657 = vmatpush1.bf16.msra.mxu0 0
      %1658 = vmatprep.subr.bf16.mxu0 0
      %1659 = vmatpush1.bf16.msra.mxu0 0
      %1660 = vmatprep.subr.bf16.mxu0 0
      %1661 = vmatpush1.bf16.msra.mxu0 0
      %1662 = vmatprep.mubr.bf16.mxu0 0
      %1663 = vmatmul.mubr.bf16.gmra.mrb[0].mxu0 %v987
      %v1664 = vpop.f32.mrb[0].mxu0
      %v1665 = vadd.f32 0.0, %v1664
      %v1666 = vpop.f32.mrb[0].mxu0
      %v1667 = vpop.f32.mrb[0].mxu0
      %v1668 = vadd.f32 0.0, %v1667
      %v1669 = vpop.f32.mrb[0].mxu0
      %1670 = vmatprep.mubr.bf16.mxu0 0
      %1671 = vmatmul.mubr.bf16.gmra.mrb[0].mxu0 %v988
      %v1672 = vpop.f32.mrb[0].mxu0
      %v1673 = vadd.f32 0.0, %v1672
      %v1674 = vpop.f32.mrb[0].mxu0
      %v1675 = vpop.f32.mrb[0].mxu0
      %v1676 = vadd.f32 0.0, %v1675
      %v1677 = vpop.f32.mrb[0].mxu0
      %1678 = vmatprep.mubr.bf16.mxu0 0
      %1679 = vmatmul.mubr.bf16.gmra.mrb[0].mxu0 %v989
      %v1680 = vpop.f32.mrb[0].mxu0
      %v1681 = vadd.f32 0.0, %v1680
      %v1682 = vpop.f32.mrb[0].mxu0
      %v1683 = vpop.f32.mrb[0].mxu0
      %v1684 = vadd.f32 0.0, %v1683
      %v1685 = vpop.f32.mrb[0].mxu0
      %1686 = vmatprep.mubr.bf16.mxu0 0
      %1687 = vmatmul.mubr.bf16.gmra.mrb[0].mxu0 %v990
      %v1688 = vpop.f32.mrb[0].mxu0
      %v1689 = vadd.f32 0.0, %v1688
      %v1690 = vpop.f32.mrb[0].mxu0
      %v1691 = vpop.f32.mrb[0].mxu0
      %v1692 = vadd.f32 0.0, %v1691
      %v1693 = vpop.f32.mrb[0].mxu0
      %1694 = vmatprep.mubr.bf16.mxu0 0
      %1695 = vmatmul.mubr.bf16.gmra.mrb[0].mxu0 %v991
      %v1696 = vpop.f32.mrb[0].mxu0
      %v1697 = vadd.f32 0.0, %v1696
      %v1698 = vpop.f32.mrb[0].mxu0
      %v1699 = vpop.f32.mrb[0].mxu0
      %v1700 = vadd.f32 0.0, %v1699
      %v1701 = vpop.f32.mrb[0].mxu0
      %1702 = vmatprep.mubr.bf16.mxu0 0
      %1703 = vmatmul.mubr.bf16.gmra.mrb[0].mxu0 %v992
      %v1704 = vpop.f32.mrb[0].mxu0
      %v1705 = vadd.f32 0.0, %v1704
      %v1706 = vpop.f32.mrb[0].mxu0
      %v1707 = vpop.f32.mrb[0].mxu0
      %v1708 = vadd.f32 0.0, %v1707
      %v1709 = vpop.f32.mrb[0].mxu0
      %1710 = vmatprep.mubr.bf16.mxu0 0
      %1711 = vmatmul.mubr.bf16.gmra.mrb[0].mxu0 %v993
      %v1712 = vpop.f32.mrb[0].mxu0
      %v1713 = vadd.f32 0.0, %v1712
      %v1714 = vpop.f32.mrb[0].mxu0
      %v1715 = vpop.f32.mrb[0].mxu0
      %v1716 = vadd.f32 0.0, %v1715
      %v1717 = vpop.f32.mrb[0].mxu0
      %1718 = vmatprep.mubr.bf16.mxu0 0
      %1719 = vmatmul.mubr.bf16.gmra.mrb[0].mxu0 %v1580
      %v1720 = vpop.f32.mrb[0].mxu0
      %v1721 = vadd.f32 0.0, %v1720
      %v1722 = vpop.f32.mrb[0].mxu0
      %v1723 = vpop.f32.mrb[0].mxu0
      %v1724 = vadd.f32 0.0, %v1723
      %v1725 = vpop.f32.mrb[0].mxu0
      %1726 = vdwg.mxu0
      %v1727 = vadd.f32 %v1537, %v1665
      %v1728 = vadd.f32 %v1538, %v1668
      %v1729 = vadd.f32 %v1539, %v1673
      %v1730 = vadd.f32 %v1540, %v1676
      %v1731 = vadd.f32 %v1541, %v1681
      %v1732 = vadd.f32 %v1542, %v1684
      %v1733 = vadd.f32 %v1543, %v1689
      %v1734 = vadd.f32 %v1544, %v1692
      %v1735 = vadd.f32 %v1545, %v1697
      %v1736 = vadd.f32 %v1546, %v1700
      %v1737 = vadd.f32 %v1547, %v1705
      %v1738 = vadd.f32 %v1548, %v1708
      %v1739 = vadd.f32 %v1549, %v1713
      %v1740 = vadd.f32 %v1550, %v1716
      %v1741 = vadd.f32 %v1551, %v1721
      %v1742 = vadd.f32 %v1552, %v1724
      %s1743 = scalar_lea.vmem %s1, 384
      %v1744 = vld [vmem:[%s1743] sm:$0xf]
      %v1745 = vld [vmem:[%s1743 + $0x4] sm:$0xf]
      %v1746 = vld [vmem:[%s1743 + $0x8] sm:$0xf]
      %v1747 = vld [vmem:[%s1743 + $0xc] sm:$0xf]
      %v1748 = vld [vmem:[%s1743 + $0x10] sm:$0xf]
      %v1749 = vld [vmem:[%s1743 + $0x14] sm:$0xf]
      %v1750 = vld [vmem:[%s1743 + $0x18] sm:$0xf]
      %v1751 = vld [vmem:[%s1743 + $0x1c] sm:$0xf]
      %v1752 = vld [vmem:[%s1743 + $0x20] sm:$0xf]
      %v1753 = vld [vmem:[%s1743 + $0x24] sm:$0xf]
      %v1754 = vld [vmem:[%s1743 + $0x28] sm:$0xf]
      %v1755 = vld [vmem:[%s1743 + $0x2c] sm:$0xf]
      %v1756 = vld [vmem:[%s1743 + $0x30] sm:$0xf]
      %v1757 = vld [vmem:[%s1743 + $0x34] sm:$0xf]
      %v1758 = vld [vmem:[%s1743 + $0x38] sm:$0xf]
      %v1759 = vld [vmem:[%s1743 + $0x3c] sm:$0xf]
      %v1762 = vunpack.c.l.b16 %v285
      %v1763 = vunpack.c.l.b16 %v286
      %v1764 = vpack.c.b16 %v1763, %v1762
      %v1782 = vunpack.c.l.b16 %v1744
      %v1783 = vunpack.c.l.b16 %v1745
      %v1784 = vunpack.c.l.b16 %v1746
      %v1785 = vunpack.c.l.b16 %v1747
      %v1786 = vunpack.c.l.b16 %v1748
      %v1787 = vunpack.c.l.b16 %v1749
      %v1788 = vunpack.c.l.b16 %v1750
      %v1789 = vunpack.c.l.b16 %v1751
      %v1790 = vunpack.c.l.b16 %v1752
      %v1791 = vunpack.c.l.b16 %v1753
      %v1792 = vunpack.c.l.b16 %v1754
      %v1793 = vunpack.c.l.b16 %v1755
      %v1794 = vunpack.c.l.b16 %v1756
      %v1795 = vunpack.c.l.b16 %v1757
      %v1796 = vunpack.c.l.b16 %v1758
      %v1797 = vunpack.c.l.b16 %v1759
      %v1798 = vpack.c.b16 %v1783, %v1782
      %v1799 = vpack.c.b16 %v1785, %v1784
      %v1800 = vpack.c.b16 %v1787, %v1786
      %v1801 = vpack.c.b16 %v1789, %v1788
      %v1802 = vpack.c.b16 %v1791, %v1790
      %v1803 = vpack.c.b16 %v1793, %v1792
      %v1804 = vpack.c.b16 %v1795, %v1794
      %v1805 = vpack.c.b16 %v1797, %v1796
      %1814 = vmatprep.subr.bf16.mxu0 0
      %1815 = vmatpush1.bf16.msra.mxu0 %v1798
      %1816 = vmatprep.subr.bf16.mxu0 0
      %1817 = vmatpush1.bf16.msra.mxu0 %v1799
      %1818 = vmatprep.subr.bf16.mxu0 0
      %1819 = vmatpush1.bf16.msra.mxu0 %v1800
      %1820 = vmatprep.subr.bf16.mxu0 0
      %1821 = vmatpush1.bf16.msra.mxu0 %v1801
      %1822 = vmatprep.subr.bf16.mxu0 0
      %1823 = vmatpush1.bf16.msra.mxu0 %v1802
      %1824 = vmatprep.subr.bf16.mxu0 0
      %1825 = vmatpush1.bf16.msra.mxu0 %v1803
      %1826 = vmatprep.subr.bf16.mxu0 0
      %1827 = vmatpush1.bf16.msra.mxu0 %v1804
      %1828 = vmatprep.subr.bf16.mxu0 0
      %1829 = vmatpush1.bf16.msra.mxu0 %v1805
      %1830 = vmatprep.subr.bf16.mxu0 0
      %1831 = vmatpush1.bf16.msra.mxu0 0
      %1832 = vmatprep.subr.bf16.mxu0 0
      %1833 = vmatpush1.bf16.msra.mxu0 0
      %1834 = vmatprep.subr.bf16.mxu0 0
      %1835 = vmatpush1.bf16.msra.mxu0 0
      %1836 = vmatprep.subr.bf16.mxu0 0
      %1837 = vmatpush1.bf16.msra.mxu0 0
      %1838 = vmatprep.subr.bf16.mxu0 0
      %1839 = vmatpush1.bf16.msra.mxu0 0
      %1840 = vmatprep.subr.bf16.mxu0 0
      %1841 = vmatpush1.bf16.msra.mxu0 0
      %1842 = vmatprep.subr.bf16.mxu0 0
      %1843 = vmatpush1.bf16.msra.mxu0 0
      %1844 = vmatprep.subr.bf16.mxu0 0
      %1845 = vmatpush1.bf16.msra.mxu0 0
      %1846 = vmatprep.mubr.bf16.mxu0 0
      %1847 = vmatmul.mubr.bf16.gmra.mrb[0].mxu0 %v727
      %v1848 = vpop.f32.mrb[0].mxu0
      %v1849 = vadd.f32 0.0, %v1848
      %v1850 = vpop.f32.mrb[0].mxu0
      %v1851 = vpop.f32.mrb[0].mxu0
      %v1852 = vadd.f32 0.0, %v1851
      %v1853 = vpop.f32.mrb[0].mxu0
      %1854 = vmatprep.mubr.bf16.mxu0 0
      %1855 = vmatmul.mubr.bf16.gmra.mrb[0].mxu0 %v728
      %v1856 = vpop.f32.mrb[0].mxu0
      %v1857 = vadd.f32 0.0, %v1856
      %v1858 = vpop.f32.mrb[0].mxu0
      %v1859 = vpop.f32.mrb[0].mxu0
      %v1860 = vadd.f32 0.0, %v1859
      %v1861 = vpop.f32.mrb[0].mxu0
      %1862 = vmatprep.mubr.bf16.mxu0 0
      %1863 = vmatmul.mubr.bf16.gmra.mrb[0].mxu0 %v729
      %v1864 = vpop.f32.mrb[0].mxu0
      %v1865 = vadd.f32 0.0, %v1864
      %v1866 = vpop.f32.mrb[0].mxu0
      %v1867 = vpop.f32.mrb[0].mxu0
      %v1868 = vadd.f32 0.0, %v1867
      %v1869 = vpop.f32.mrb[0].mxu0
      %1870 = vmatprep.mubr.bf16.mxu0 0
      %1871 = vmatmul.mubr.bf16.gmra.mrb[0].mxu0 %v730
      %v1872 = vpop.f32.mrb[0].mxu0
      %v1873 = vadd.f32 0.0, %v1872
      %v1874 = vpop.f32.mrb[0].mxu0
      %v1875 = vpop.f32.mrb[0].mxu0
      %v1876 = vadd.f32 0.0, %v1875
      %v1877 = vpop.f32.mrb[0].mxu0
      %1878 = vmatprep.mubr.bf16.mxu0 0
      %1879 = vmatmul.mubr.bf16.gmra.mrb[0].mxu0 %v731
      %v1880 = vpop.f32.mrb[0].mxu0
      %v1881 = vadd.f32 0.0, %v1880
      %v1882 = vpop.f32.mrb[0].mxu0
      %v1883 = vpop.f32.mrb[0].mxu0
      %v1884 = vadd.f32 0.0, %v1883
      %v1885 = vpop.f32.mrb[0].mxu0
      %1886 = vmatprep.mubr.bf16.mxu0 0
      %1887 = vmatmul.mubr.bf16.gmra.mrb[0].mxu0 %v732
      %v1888 = vpop.f32.mrb[0].mxu0
      %v1889 = vadd.f32 0.0, %v1888
      %v1890 = vpop.f32.mrb[0].mxu0
      %v1891 = vpop.f32.mrb[0].mxu0
      %v1892 = vadd.f32 0.0, %v1891
      %v1893 = vpop.f32.mrb[0].mxu0
      %1894 = vmatprep.mubr.bf16.mxu0 0
      %1895 = vmatmul.mubr.bf16.gmra.mrb[0].mxu0 %v1184
      %v1896 = vpop.f32.mrb[0].mxu0
      %v1897 = vadd.f32 0.0, %v1896
      %v1898 = vpop.f32.mrb[0].mxu0
      %v1899 = vpop.f32.mrb[0].mxu0
      %v1900 = vadd.f32 0.0, %v1899
      %v1901 = vpop.f32.mrb[0].mxu0
      %1902 = vmatprep.mubr.bf16.mxu0 0
      %1903 = vmatmul.mubr.bf16.gmra.mrb[0].mxu0 %v1764
      %v1904 = vpop.f32.mrb[0].mxu0
      %v1905 = vadd.f32 0.0, %v1904
      %v1906 = vpop.f32.mrb[0].mxu0
      %v1907 = vpop.f32.mrb[0].mxu0
      %v1908 = vadd.f32 0.0, %v1907
      %v1909 = vpop.f32.mrb[0].mxu0
      %1910 = vdwg.mxu0
      %v1911 = vadd.f32 %v1727, %v1849
      %v1912 = vadd.f32 %v1728, %v1852
      %v1913 = vadd.f32 %v1729, %v1857
      %v1914 = vadd.f32 %v1730, %v1860
      %v1915 = vadd.f32 %v1731, %v1865
      %v1916 = vadd.f32 %v1732, %v1868
      %v1917 = vadd.f32 %v1733, %v1873
      %v1918 = vadd.f32 %v1734, %v1876
      %v1919 = vadd.f32 %v1735, %v1881
      %v1920 = vadd.f32 %v1736, %v1884
      %v1921 = vadd.f32 %v1737, %v1889
      %v1922 = vadd.f32 %v1738, %v1892
      %v1923 = vadd.f32 %v1739, %v1897
      %v1924 = vadd.f32 %v1740, %v1900
      %v1925 = vadd.f32 %v1741, %v1905
      %v1926 = vadd.f32 %v1742, %v1908
      %v1928 = vshrl.u32 %v285, 16
      %v1930 = vrot.slane %v1928, 4
      %v1931 = vshll.u32 %v285, 16
      %v1933 = vrot.slane %v1931, 5
      %v1934 = vor.u32 %v1930, %v1933
      %v1935 = vrot.slane %v1934, 4
      %v1937 = vshll.u32 %v286, 16
      %v1939 = vrot.slane %v1937, 5
      %v1940 = vsel %vm306, %v1935, %v1939
      %v1941 = vshrl.u32 %v286, 16
      %v1943 = vrot.slane %v1941, 4
      %v1944 = vor.u32 %v1943, %v1939
      %v1945 = vrot.slane %v1944, 4
      %v1947 = vshll.u32 %v287, 16
      %v1949 = vrot.slane %v1947, 5
      %v1950 = vsel %vm306, %v1945, %v1949
      %s1951 = scalar_lea.vmem %s1, 448
      %v1952 = vld [vmem:[%s1951] sm:$0xf]
      %v1953 = vld [vmem:[%s1951 + $0x4] sm:$0xf]
      %v1954 = vld [vmem:[%s1951 + $0x8] sm:$0xf]
      %v1955 = vld [vmem:[%s1951 + $0xc] sm:$0xf]
      %v1956 = vld [vmem:[%s1951 + $0x10] sm:$0xf]
      %v1957 = vld [vmem:[%s1951 + $0x14] sm:$0xf]
      %v1958 = vld [vmem:[%s1951 + $0x18] sm:$0xf]
      %v1959 = vld [vmem:[%s1951 + $0x1c] sm:$0xf]
      %v1960 = vld [vmem:[%s1951 + $0x20] sm:$0xf]
      %v1961 = vld [vmem:[%s1951 + $0x24] sm:$0xf]
      %v1962 = vld [vmem:[%s1951 + $0x28] sm:$0xf]
      %v1963 = vld [vmem:[%s1951 + $0x2c] sm:$0xf]
      %v1964 = vld [vmem:[%s1951 + $0x30] sm:$0xf]
      %v1965 = vld [vmem:[%s1951 + $0x34] sm:$0xf]
      %v1966 = vld [vmem:[%s1951 + $0x38] sm:$0xf]
      %v1967 = vld [vmem:[%s1951 + $0x3c] sm:$0xf]
      %v1968 = vunpack.c.l.b16 %v1940
      %v1969 = vunpack.c.l.b16 %v1950
      %v1970 = vpack.c.b16 %v1969, %v1968
      %v1988 = vunpack.c.l.b16 %v1952
      %v1989 = vunpack.c.l.b16 %v1953
      %v1990 = vunpack.c.l.b16 %v1954
      %v1991 = vunpack.c.l.b16 %v1955
      %v1992 = vunpack.c.l.b16 %v1956
      %v1993 = vunpack.c.l.b16 %v1957
      %v1994 = vunpack.c.l.b16 %v1958
      %v1995 = vunpack.c.l.b16 %v1959
      %v1996 = vunpack.c.l.b16 %v1960
      %v1997 = vunpack.c.l.b16 %v1961
      %v1998 = vunpack.c.l.b16 %v1962
      %v1999 = vunpack.c.l.b16 %v1963
      %v2000 = vunpack.c.l.b16 %v1964
      %v2001 = vunpack.c.l.b16 %v1965
      %v2002 = vunpack.c.l.b16 %v1966
      %v2003 = vunpack.c.l.b16 %v1967
      %v2004 = vpack.c.b16 %v1989, %v1988
      %v2005 = vpack.c.b16 %v1991, %v1990
      %v2006 = vpack.c.b16 %v1993, %v1992
      %v2007 = vpack.c.b16 %v1995, %v1994
      %v2008 = vpack.c.b16 %v1997, %v1996
      %v2009 = vpack.c.b16 %v1999, %v1998
      %v2010 = vpack.c.b16 %v2001, %v2000
      %v2011 = vpack.c.b16 %v2003, %v2002
      %2020 = vmatprep.subr.bf16.mxu0 0
      %2021 = vmatpush1.bf16.msra.mxu0 %v2004
      %2022 = vmatprep.subr.bf16.mxu0 0
      %2023 = vmatpush1.bf16.msra.mxu0 %v2005
      %2024 = vmatprep.subr.bf16.mxu0 0
      %2025 = vmatpush1.bf16.msra.mxu0 %v2006
      %2026 = vmatprep.subr.bf16.mxu0 0
      %2027 = vmatpush1.bf16.msra.mxu0 %v2007
      %2028 = vmatprep.subr.bf16.mxu0 0
      %2029 = vmatpush1.bf16.msra.mxu0 %v2008
      %2030 = vmatprep.subr.bf16.mxu0 0
      %2031 = vmatpush1.bf16.msra.mxu0 %v2009
      %2032 = vmatprep.subr.bf16.mxu0 0
      %2033 = vmatpush1.bf16.msra.mxu0 %v2010
      %2034 = vmatprep.subr.bf16.mxu0 0
      %2035 = vmatpush1.bf16.msra.mxu0 %v2011
      %2036 = vmatprep.subr.bf16.mxu0 0
      %2037 = vmatpush1.bf16.msra.mxu0 0
      %2038 = vmatprep.subr.bf16.mxu0 0
      %2039 = vmatpush1.bf16.msra.mxu0 0
      %2040 = vmatprep.subr.bf16.mxu0 0
      %2041 = vmatpush1.bf16.msra.mxu0 0
      %2042 = vmatprep.subr.bf16.mxu0 0
      %2043 = vmatpush1.bf16.msra.mxu0 0
      %2044 = vmatprep.subr.bf16.mxu0 0
      %2045 = vmatpush1.bf16.msra.mxu0 0
      %2046 = vmatprep.subr.bf16.mxu0 0
      %2047 = vmatpush1.bf16.msra.mxu0 0
      %2048 = vmatprep.subr.bf16.mxu0 0
      %2049 = vmatpush1.bf16.msra.mxu0 0
      %2050 = vmatprep.subr.bf16.mxu0 0
      %2051 = vmatpush1.bf16.msra.mxu0 0
      %2052 = vmatprep.mubr.bf16.mxu0 0
      %2053 = vmatmul.mubr.bf16.gmra.mrb[0].mxu0 %v534
      %v2054 = vpop.f32.mrb[0].mxu0
      %v2055 = vadd.f32 0.0, %v2054
      %v2056 = vpop.f32.mrb[0].mxu0
      %v2057 = vpop.f32.mrb[0].mxu0
      %v2058 = vadd.f32 0.0, %v2057
      %v2059 = vpop.f32.mrb[0].mxu0
      %2060 = vmatprep.mubr.bf16.mxu0 0
      %2061 = vmatmul.mubr.bf16.gmra.mrb[0].mxu0 %v535
      %v2062 = vpop.f32.mrb[0].mxu0
      %v2063 = vadd.f32 0.0, %v2062
      %v2064 = vpop.f32.mrb[0].mxu0
      %v2065 = vpop.f32.mrb[0].mxu0
      %v2066 = vadd.f32 0.0, %v2065
      %v2067 = vpop.f32.mrb[0].mxu0
      %2068 = vmatprep.mubr.bf16.mxu0 0
      %2069 = vmatmul.mubr.bf16.gmra.mrb[0].mxu0 %v536
      %v2070 = vpop.f32.mrb[0].mxu0
      %v2071 = vadd.f32 0.0, %v2070
      %v2072 = vpop.f32.mrb[0].mxu0
      %v2073 = vpop.f32.mrb[0].mxu0
      %v2074 = vadd.f32 0.0, %v2073
      %v2075 = vpop.f32.mrb[0].mxu0
      %2076 = vmatprep.mubr.bf16.mxu0 0
      %2077 = vmatmul.mubr.bf16.gmra.mrb[0].mxu0 %v537
      %v2078 = vpop.f32.mrb[0].mxu0
      %v2079 = vadd.f32 0.0, %v2078
      %v2080 = vpop.f32.mrb[0].mxu0
      %v2081 = vpop.f32.mrb[0].mxu0
      %v2082 = vadd.f32 0.0, %v2081
      %v2083 = vpop.f32.mrb[0].mxu0
      %2084 = vmatprep.mubr.bf16.mxu0 0
      %2085 = vmatmul.mubr.bf16.gmra.mrb[0].mxu0 %v538
      %v2086 = vpop.f32.mrb[0].mxu0
      %v2087 = vadd.f32 0.0, %v2086
      %v2088 = vpop.f32.mrb[0].mxu0
      %v2089 = vpop.f32.mrb[0].mxu0
      %v2090 = vadd.f32 0.0, %v2089
      %v2091 = vpop.f32.mrb[0].mxu0
      %2092 = vmatprep.mubr.bf16.mxu0 0
      %2093 = vmatmul.mubr.bf16.gmra.mrb[0].mxu0 %v539
      %v2094 = vpop.f32.mrb[0].mxu0
      %v2095 = vadd.f32 0.0, %v2094
      %v2096 = vpop.f32.mrb[0].mxu0
      %v2097 = vpop.f32.mrb[0].mxu0
      %v2098 = vadd.f32 0.0, %v2097
      %v2099 = vpop.f32.mrb[0].mxu0
      %2100 = vmatprep.mubr.bf16.mxu0 0
      %2101 = vmatmul.mubr.bf16.gmra.mrb[0].mxu0 %v1390
      %v2102 = vpop.f32.mrb[0].mxu0
      %v2103 = vadd.f32 0.0, %v2102
      %v2104 = vpop.f32.mrb[0].mxu0
      %v2105 = vpop.f32.mrb[0].mxu0
      %v2106 = vadd.f32 0.0, %v2105
      %v2107 = vpop.f32.mrb[0].mxu0
      %2108 = vmatprep.mubr.bf16.mxu0 0
      %2109 = vmatmul.mubr.bf16.gmra.mrb[0].mxu0 %v1970
      %v2110 = vpop.f32.mrb[0].mxu0
      %v2111 = vadd.f32 0.0, %v2110
      %v2112 = vpop.f32.mrb[0].mxu0
      %v2113 = vpop.f32.mrb[0].mxu0
      %v2114 = vadd.f32 0.0, %v2113
      %v2115 = vpop.f32.mrb[0].mxu0
      %2116 = vdwg.mxu0
      %v2117 = vadd.f32 %v1911, %v2055
      %v2118 = vadd.f32 %v1912, %v2058
      %v2119 = vadd.f32 %v1913, %v2063
      %v2120 = vadd.f32 %v1914, %v2066
      %v2121 = vadd.f32 %v1915, %v2071
      %v2122 = vadd.f32 %v1916, %v2074
      %v2123 = vadd.f32 %v1917, %v2079
      %v2124 = vadd.f32 %v1918, %v2082
      %v2125 = vadd.f32 %v1919, %v2087
      %v2126 = vadd.f32 %v1920, %v2090
      %v2127 = vadd.f32 %v1921, %v2095
      %v2128 = vadd.f32 %v1922, %v2098
      %v2129 = vadd.f32 %v1923, %v2103
      %v2130 = vadd.f32 %v1924, %v2106
      %v2131 = vadd.f32 %v1925, %v2111
      %v2132 = vadd.f32 %v1926, %v2114
      %v2134 = vrot.slane %v285, 5
      %v2135 = vrot.slane %v2134, 4
      %v2136 = vrot.slane %v286, 5
      %v2137 = vsel %vm896, %v2135, %v2136
      %v2138 = vrot.slane %v2136, 4
      %v2139 = vrot.slane %v287, 5
      %v2140 = vsel %vm896, %v2138, %v2139
      %s2141 = scalar_lea.vmem %s1, 512
      %v2142 = vld [vmem:[%s2141] sm:$0xf]
      %v2143 = vld [vmem:[%s2141 + $0x4] sm:$0xf]
      %v2144 = vld [vmem:[%s2141 + $0x8] sm:$0xf]
      %v2145 = vld [vmem:[%s2141 + $0xc] sm:$0xf]
      %v2146 = vld [vmem:[%s2141 + $0x10] sm:$0xf]
      %v2147 = vld [vmem:[%s2141 + $0x14] sm:$0xf]
      %v2148 = vld [vmem:[%s2141 + $0x18] sm:$0xf]
      %v2149 = vld [vmem:[%s2141 + $0x1c] sm:$0xf]
      %v2150 = vld [vmem:[%s2141 + $0x20] sm:$0xf]
      %v2151 = vld [vmem:[%s2141 + $0x24] sm:$0xf]
      %v2152 = vld [vmem:[%s2141 + $0x28] sm:$0xf]
      %v2153 = vld [vmem:[%s2141 + $0x2c] sm:$0xf]
      %v2154 = vld [vmem:[%s2141 + $0x30] sm:$0xf]
      %v2155 = vld [vmem:[%s2141 + $0x34] sm:$0xf]
      %v2156 = vld [vmem:[%s2141 + $0x38] sm:$0xf]
      %v2157 = vld [vmem:[%s2141 + $0x3c] sm:$0xf]
      %v2158 = vunpack.c.l.b16 %v2137
      %v2159 = vunpack.c.l.b16 %v2140
      %v2160 = vpack.c.b16 %v2159, %v2158
      %v2178 = vunpack.c.l.b16 %v2142
      %v2179 = vunpack.c.l.b16 %v2143
      %v2180 = vunpack.c.l.b16 %v2144
      %v2181 = vunpack.c.l.b16 %v2145
      %v2182 = vunpack.c.l.b16 %v2146
      %v2183 = vunpack.c.l.b16 %v2147
      %v2184 = vunpack.c.l.b16 %v2148
      %v2185 = vunpack.c.l.b16 %v2149
      %v2186 = vunpack.c.l.b16 %v2150
      %v2187 = vunpack.c.l.b16 %v2151
      %v2188 = vunpack.c.l.b16 %v2152
      %v2189 = vunpack.c.l.b16 %v2153
      %v2190 = vunpack.c.l.b16 %v2154
      %v2191 = vunpack.c.l.b16 %v2155
      %v2192 = vunpack.c.l.b16 %v2156
      %v2193 = vunpack.c.l.b16 %v2157
      %v2194 = vpack.c.b16 %v2179, %v2178
      %v2195 = vpack.c.b16 %v2181, %v2180
      %v2196 = vpack.c.b16 %v2183, %v2182
      %v2197 = vpack.c.b16 %v2185, %v2184
      %v2198 = vpack.c.b16 %v2187, %v2186
      %v2199 = vpack.c.b16 %v2189, %v2188
      %v2200 = vpack.c.b16 %v2191, %v2190
      %v2201 = vpack.c.b16 %v2193, %v2192
      %2210 = vmatprep.subr.bf16.mxu0 0
      %2211 = vmatpush1.bf16.msra.mxu0 %v2194
      %2212 = vmatprep.subr.bf16.mxu0 0
      %2213 = vmatpush1.bf16.msra.mxu0 %v2195
      %2214 = vmatprep.subr.bf16.mxu0 0
      %2215 = vmatpush1.bf16.msra.mxu0 %v2196
      %2216 = vmatprep.subr.bf16.mxu0 0
      %2217 = vmatpush1.bf16.msra.mxu0 %v2197
      %2218 = vmatprep.subr.bf16.mxu0 0
      %2219 = vmatpush1.bf16.msra.mxu0 %v2198
      %2220 = vmatprep.subr.bf16.mxu0 0
      %2221 = vmatpush1.bf16.msra.mxu0 %v2199
      %2222 = vmatprep.subr.bf16.mxu0 0
      %2223 = vmatpush1.bf16.msra.mxu0 %v2200
      %2224 = vmatprep.subr.bf16.mxu0 0
      %2225 = vmatpush1.bf16.msra.mxu0 %v2201
      %2226 = vmatprep.subr.bf16.mxu0 0
      %2227 = vmatpush1.bf16.msra.mxu0 0
      %2228 = vmatprep.subr.bf16.mxu0 0
      %2229 = vmatpush1.bf16.msra.mxu0 0
      %2230 = vmatprep.subr.bf16.mxu0 0
      %2231 = vmatpush1.bf16.msra.mxu0 0
      %2232 = vmatprep.subr.bf16.mxu0 0
      %2233 = vmatpush1.bf16.msra.mxu0 0
      %2234 = vmatprep.subr.bf16.mxu0 0
      %2235 = vmatpush1.bf16.msra.mxu0 0
      %2236 = vmatprep.subr.bf16.mxu0 0
      %2237 = vmatpush1.bf16.msra.mxu0 0
      %2238 = vmatprep.subr.bf16.mxu0 0
      %2239 = vmatpush1.bf16.msra.mxu0 0
      %2240 = vmatprep.subr.bf16.mxu0 0
      %2241 = vmatpush1.bf16.msra.mxu0 0
      %2242 = vmatprep.mubr.bf16.mxu0 0
      %2243 = vmatmul.mubr.bf16.gmra.mrb[0].mxu0 %v988
      %v2244 = vpop.f32.mrb[0].mxu0
      %v2245 = vadd.f32 0.0, %v2244
      %v2246 = vpop.f32.mrb[0].mxu0
      %v2247 = vpop.f32.mrb[0].mxu0
      %v2248 = vadd.f32 0.0, %v2247
      %v2249 = vpop.f32.mrb[0].mxu0
      %2250 = vmatprep.mubr.bf16.mxu0 0
      %2251 = vmatmul.mubr.bf16.gmra.mrb[0].mxu0 %v989
      %v2252 = vpop.f32.mrb[0].mxu0
      %v2253 = vadd.f32 0.0, %v2252
      %v2254 = vpop.f32.mrb[0].mxu0
      %v2255 = vpop.f32.mrb[0].mxu0
      %v2256 = vadd.f32 0.0, %v2255
      %v2257 = vpop.f32.mrb[0].mxu0
      %2258 = vmatprep.mubr.bf16.mxu0 0
      %2259 = vmatmul.mubr.bf16.gmra.mrb[0].mxu0 %v990
      %v2260 = vpop.f32.mrb[0].mxu0
      %v2261 = vadd.f32 0.0, %v2260
      %v2262 = vpop.f32.mrb[0].mxu0
      %v2263 = vpop.f32.mrb[0].mxu0
      %v2264 = vadd.f32 0.0, %v2263
      %v2265 = vpop.f32.mrb[0].mxu0
      %2266 = vmatprep.mubr.bf16.mxu0 0
      %2267 = vmatmul.mubr.bf16.gmra.mrb[0].mxu0 %v991
      %v2268 = vpop.f32.mrb[0].mxu0
      %v2269 = vadd.f32 0.0, %v2268
      %v2270 = vpop.f32.mrb[0].mxu0
      %v2271 = vpop.f32.mrb[0].mxu0
      %v2272 = vadd.f32 0.0, %v2271
      %v2273 = vpop.f32.mrb[0].mxu0
      %2274 = vmatprep.mubr.bf16.mxu0 0
      %2275 = vmatmul.mubr.bf16.gmra.mrb[0].mxu0 %v992
      %v2276 = vpop.f32.mrb[0].mxu0
      %v2277 = vadd.f32 0.0, %v2276
      %v2278 = vpop.f32.mrb[0].mxu0
      %v2279 = vpop.f32.mrb[0].mxu0
      %v2280 = vadd.f32 0.0, %v2279
      %v2281 = vpop.f32.mrb[0].mxu0
      %2282 = vmatprep.mubr.bf16.mxu0 0
      %2283 = vmatmul.mubr.bf16.gmra.mrb[0].mxu0 %v993
      %v2284 = vpop.f32.mrb[0].mxu0
      %v2285 = vadd.f32 0.0, %v2284
      %v2286 = vpop.f32.mrb[0].mxu0
      %v2287 = vpop.f32.mrb[0].mxu0
      %v2288 = vadd.f32 0.0, %v2287
      %v2289 = vpop.f32.mrb[0].mxu0
      %2290 = vmatprep.mubr.bf16.mxu0 0
      %2291 = vmatmul.mubr.bf16.gmra.mrb[0].mxu0 %v1580
      %v2292 = vpop.f32.mrb[0].mxu0
      %v2293 = vadd.f32 0.0, %v2292
      %v2294 = vpop.f32.mrb[0].mxu0
      %v2295 = vpop.f32.mrb[0].mxu0
      %v2296 = vadd.f32 0.0, %v2295
      %v2297 = vpop.f32.mrb[0].mxu0
      %2298 = vmatprep.mubr.bf16.mxu0 0
      %2299 = vmatmul.mubr.bf16.gmra.mrb[0].mxu0 %v2160
      %v2300 = vpop.f32.mrb[0].mxu0
      %v2301 = vadd.f32 0.0, %v2300
      %v2302 = vpop.f32.mrb[0].mxu0
      %v2303 = vpop.f32.mrb[0].mxu0
      %v2304 = vadd.f32 0.0, %v2303
      %v2305 = vpop.f32.mrb[0].mxu0
      %2306 = vdwg.mxu0
      %v2307 = vadd.f32 %v2117, %v2245
      %v2308 = vadd.f32 %v2118, %v2248
      %v2309 = vadd.f32 %v2119, %v2253
      %v2310 = vadd.f32 %v2120, %v2256
      %v2311 = vadd.f32 %v2121, %v2261
      %v2312 = vadd.f32 %v2122, %v2264
      %v2313 = vadd.f32 %v2123, %v2269
      %v2314 = vadd.f32 %v2124, %v2272
      %v2315 = vadd.f32 %v2125, %v2277
      %v2316 = vadd.f32 %v2126, %v2280
      %v2317 = vadd.f32 %v2127, %v2285
      %v2318 = vadd.f32 %v2128, %v2288
      %v2319 = vadd.f32 %v2129, %v2293
      %v2320 = vadd.f32 %v2130, %v2296
      %v2321 = vadd.f32 %v2131, %v2301
      %v2322 = vadd.f32 %v2132, %v2304
      %v2323 = vadd.f32 %v2307, %v2308
      %v2324 = vadd.f32 %v2323, %v2309
      %v2325 = vadd.f32 %v2324, %v2310
      %v2326 = vadd.f32 %v2325, %v2311
      %v2327 = vadd.f32 %v2326, %v2312
      %v2328 = vadd.f32 %v2327, %v2313
      %v2329 = vadd.f32 %v2328, %v2314
      %v2330 = vadd.f32 %v2329, %v2315
      %v2331 = vadd.f32 %v2330, %v2316
      %v2332 = vadd.f32 %v2331, %v2317
      %v2333 = vadd.f32 %v2332, %v2318
      %v2334 = vadd.f32 %v2333, %v2319
      %v2335 = vadd.f32 %v2334, %v2320
      %v2336 = vadd.f32 %v2335, %v2321
      %v2337 = vadd.f32 %v2336, %v2322
      %v2338 = vrot.slane %v2337, 4
      %v2339 = vadd.f32 %v2337, %v2338
      %v2340 = vrot.slane %v2339, 2
      %v2341 = vadd.f32 %v2339, %v2340
      %v2342 = vrot.slane %v2341, 1
      %v2343 = vadd.f32 %v2341, %v2342
      %v2344 = vmul.f32 %v2307, %v2307
      %v2345 = vmul.f32 %v2308, %v2308
      %v2346 = vmul.f32 %v2309, %v2309
      %v2347 = vmul.f32 %v2310, %v2310
      %v2348 = vmul.f32 %v2311, %v2311
      %v2349 = vmul.f32 %v2312, %v2312
      %v2350 = vmul.f32 %v2313, %v2313
      %v2351 = vmul.f32 %v2314, %v2314
      %v2352 = vmul.f32 %v2315, %v2315
      %v2353 = vmul.f32 %v2316, %v2316
      %v2354 = vmul.f32 %v2317, %v2317
      %v2355 = vmul.f32 %v2318, %v2318
      %v2356 = vmul.f32 %v2319, %v2319
      %v2357 = vmul.f32 %v2320, %v2320
      %v2358 = vmul.f32 %v2321, %v2321
      %v2359 = vmul.f32 %v2322, %v2322
      %v2360 = vadd.f32 %v2344, %v2345
      %v2361 = vadd.f32 %v2360, %v2346
      %v2362 = vadd.f32 %v2361, %v2347
      %v2363 = vadd.f32 %v2362, %v2348
      %v2364 = vadd.f32 %v2363, %v2349
      %v2365 = vadd.f32 %v2364, %v2350
      %v2366 = vadd.f32 %v2365, %v2351
      %v2367 = vadd.f32 %v2366, %v2352
      %v2368 = vadd.f32 %v2367, %v2353
      %v2369 = vadd.f32 %v2368, %v2354
      %v2370 = vadd.f32 %v2369, %v2355
      %v2371 = vadd.f32 %v2370, %v2356
      %v2372 = vadd.f32 %v2371, %v2357
      %v2373 = vadd.f32 %v2372, %v2358
      %v2374 = vadd.f32 %v2373, %v2359
      %v2375 = vrot.slane %v2374, 4
      %v2376 = vadd.f32 %v2374, %v2375
      %v2377 = vrot.slane %v2376, 2
      %v2378 = vadd.f32 %v2376, %v2377
      %v2379 = vrot.slane %v2378, 1
      %v2380 = vadd.f32 %v2378, %v2379
      %v2381 = vld [vmem:[%s193] sm:$0xff]
      %vm2382 = vcmask 1040384
      %v2383 = vsel %vm2382, %v2343, %v2380
      %vm2384 = vcmask 1041408
      %v2385 = vsel %vm2384, %v2383, 0.0
      %v2386 = vadd.f32 %v2381, %v2385
      %2387 = vst [vmem:[%s193] sm:$0xff] %v2386
      %v2388 = vpack.c.bf16 %v2308, %v2307
      %v2389 = vpack.c.bf16 %v2310, %v2309
      %v2390 = vpack.c.bf16 %v2312, %v2311
      %v2391 = vpack.c.bf16 %v2314, %v2313
      %v2392 = vpack.c.bf16 %v2316, %v2315
      %v2393 = vpack.c.bf16 %v2318, %v2317
      %v2394 = vpack.c.bf16 %v2320, %v2319
      %v2395 = vpack.c.bf16 %v2322, %v2321
      %v2397 = vshrl.u32 %v2388, 16
      %v2399 = vrot.slane %v2397, 7
      %v2400 = vshll.u32 %v2388, 16
      %v2402 = vor.u32 %v2399, %v2400
      %v2404 = vshrl.u32 %v2389, 16
      %v2406 = vrot.slane %v2404, 7
      %v2407 = vshll.u32 %v2389, 16
      %v2409 = vor.u32 %v2406, %v2407
      %v2411 = vshrl.u32 %v2390, 16
      %v2413 = vrot.slane %v2411, 7
      %v2414 = vshll.u32 %v2390, 16
      %v2416 = vor.u32 %v2413, %v2414
      %v2418 = vshrl.u32 %v2391, 16
      %v2420 = vrot.slane %v2418, 7
      %v2421 = vshll.u32 %v2391, 16
      %v2423 = vor.u32 %v2420, %v2421
      %v2425 = vshrl.u32 %v2392, 16
      %v2427 = vrot.slane %v2425, 7
      %v2428 = vshll.u32 %v2392, 16
      %v2430 = vor.u32 %v2427, %v2428
      %v2432 = vshrl.u32 %v2393, 16
      %v2434 = vrot.slane %v2432, 7
      %v2435 = vshll.u32 %v2393, 16
      %v2437 = vor.u32 %v2434, %v2435
      %v2439 = vshrl.u32 %v2394, 16
      %v2441 = vrot.slane %v2439, 7
      %v2442 = vshll.u32 %v2394, 16
      %v2444 = vor.u32 %v2441, %v2442
      %v2446 = vshrl.u32 %v2395, 16
      %v2448 = vrot.slane %v2446, 7
      %v2449 = vshll.u32 %v2395, 16
      %v2451 = vor.u32 %v2448, %v2449
      %vm2468 = vcmask 1040384
      %vm2469 = vsmask.f32 256
      %vm2470 = vmand %vm2468, %vm2469
      %v2471 = vsel %vm2470, 0, %v2402
      %v2472 = vsel %vm2470, 0, %v2409
      %v2473 = vsel %vm2470, 0, %v2416
      %v2474 = vsel %vm2470, 0, %v2423
      %v2475 = vsel %vm2470, 0, %v2430
      %v2476 = vsel %vm2470, 0, %v2437
      %v2477 = vsel %vm2470, 0, %v2444
      %v2478 = vsel %vm2470, 0, %v2451
      %v2479 = vsel %vm2470, %v2399, 0
      %v2480 = vsel %vm2470, %v2406, 0
      %v2481 = vsel %vm2470, %v2413, 0
      %v2482 = vsel %vm2470, %v2420, 0
      %v2483 = vsel %vm2470, %v2427, 0
      %v2484 = vsel %vm2470, %v2434, 0
      %v2485 = vsel %vm2470, %v2441, 0
      %v2486 = vsel %vm2470, %v2448, 0
      %s2487 = sadd.s32 %s254, 1
      %v2504 = vunpack.c.l.b16 %v2471
      %v2505 = vunpack.c.h.b16 %v2471
      %v2506 = vunpack.c.l.b16 %v2479
      %v2507 = vunpack.c.l.b16 %v2472
      %v2508 = vunpack.c.h.b16 %v2472
      %v2509 = vunpack.c.l.b16 %v2480
      %v2510 = vunpack.c.l.b16 %v2473
      %v2511 = vunpack.c.h.b16 %v2473
      %v2512 = vunpack.c.l.b16 %v2481
      %v2513 = vunpack.c.l.b16 %v2474
      %v2514 = vunpack.c.h.b16 %v2474
      %v2515 = vunpack.c.l.b16 %v2482
      %v2516 = vunpack.c.l.b16 %v2475
      %v2517 = vunpack.c.h.b16 %v2475
      %v2518 = vunpack.c.l.b16 %v2483
      %v2519 = vunpack.c.l.b16 %v2476
      %v2520 = vunpack.c.h.b16 %v2476
      %v2521 = vunpack.c.l.b16 %v2484
      %v2522 = vunpack.c.l.b16 %v2477
      %v2523 = vunpack.c.h.b16 %v2477
      %v2524 = vunpack.c.l.b16 %v2485
      %v2525 = vunpack.c.l.b16 %v2478
      %v2526 = vunpack.c.h.b16 %v2478
      %v2527 = vunpack.c.l.b16 %v2486
      %v2528 = vpack.c.b16 %v2504, %v2504
      %v2529 = vpack.c.b16 %v2505, %v2505
      %v2530 = vpack.c.b16 %v2506, %v2506
      %v2531 = vpack.c.b16 %v2507, %v2507
      %v2532 = vpack.c.b16 %v2508, %v2508
      %v2533 = vpack.c.b16 %v2509, %v2509
      %v2534 = vpack.c.b16 %v2510, %v2510
      %v2535 = vpack.c.b16 %v2511, %v2511
      %v2536 = vpack.c.b16 %v2512, %v2512
      %v2537 = vpack.c.b16 %v2513, %v2513
      %v2538 = vpack.c.b16 %v2514, %v2514
      %v2539 = vpack.c.b16 %v2515, %v2515
      %v2540 = vpack.c.b16 %v2516, %v2516
      %v2541 = vpack.c.b16 %v2517, %v2517
      %v2542 = vpack.c.b16 %v2518, %v2518
      %v2543 = vpack.c.b16 %v2519, %v2519
      %v2544 = vpack.c.b16 %v2520, %v2520
      %v2545 = vpack.c.b16 %v2521, %v2521
      %v2546 = vpack.c.b16 %v2522, %v2522
      %v2547 = vpack.c.b16 %v2523, %v2523
      %v2548 = vpack.c.b16 %v2524, %v2524
      %v2549 = vpack.c.b16 %v2525, %v2525
      %v2550 = vpack.c.b16 %v2526, %v2526
      %v2551 = vpack.c.b16 %v2527, %v2527
      %s2576 = smul.u32 %s2487, 3
      %s2577 = smul.addr %s2576, 4
      %s2578 = scalar_lea.vmem %s189, %s2577
      %2579 = vst [vmem:[%s2578] sm:$0xf] %v2528
      %2580 = vst [vmem:[%s2578 + $0x4] sm:$0xf] %v2529
      %2581 = vst [vmem:[%s2578 + $0x8] sm:$0x1] %v2530
      %2582 = vst [vmem:[%s2578 + $0xc] sm:$0xf] %v2531
      %2583 = vst [vmem:[%s2578 + $0x10] sm:$0xf] %v2532
      %2584 = vst [vmem:[%s2578 + $0x14] sm:$0x1] %v2533
      %2585 = vst [vmem:[%s2578 + $0x18] sm:$0xf] %v2534
      %2586 = vst [vmem:[%s2578 + $0x1c] sm:$0xf] %v2535
      %2587 = vst [vmem:[%s2578 + $0x20] sm:$0x1] %v2536
      %2588 = vst [vmem:[%s2578 + $0x24] sm:$0xf] %v2537
      %2589 = vst [vmem:[%s2578 + $0x28] sm:$0xf] %v2538
      %2590 = vst [vmem:[%s2578 + $0x2c] sm:$0x1] %v2539
      %2591 = vst [vmem:[%s2578 + $0x30] sm:$0xf] %v2540
      %2592 = vst [vmem:[%s2578 + $0x34] sm:$0xf] %v2541
      %2593 = vst [vmem:[%s2578 + $0x38] sm:$0x1] %v2542
      %2594 = vst [vmem:[%s2578 + $0x3c] sm:$0xf] %v2543
      %2595 = vst [vmem:[%s2578 + $0x40] sm:$0xf] %v2544
      %2596 = vst [vmem:[%s2578 + $0x44] sm:$0x1] %v2545
      %2597 = vst [vmem:[%s2578 + $0x48] sm:$0xf] %v2546
      %2598 = vst [vmem:[%s2578 + $0x4c] sm:$0xf] %v2547
      %2599 = vst [vmem:[%s2578 + $0x50] sm:$0x1] %v2548
      %2600 = vst [vmem:[%s2578 + $0x54] sm:$0xf] %v2549
      %2601 = vst [vmem:[%s2578 + $0x58] sm:$0xf] %v2550
      %2602 = vst [vmem:[%s2578 + $0x5c] sm:$0x1] %v2551
      %p2603 = scmp.lt.s32.totalorder %s19, 1
      %s2604 = scalar_select %p2603, %s19, 1
      %s2605 = smul.addr %s2604, 54
      %s2606 = smul.addr %s2605, 4
      %s2607 = scalar_lea.vmem %s2, %s2606
      %p2608 = scmp.lt.s32.totalorder %s19, 1
      %s2609 = scalar_select %p2608, %s19, 1
      %s2610 = smul.addr %s2609, 8
      %s2611 = scalar_lea.vmem %s3, %s2610
      // Predicated region
      $region33: #{double_conv.3} parent=27 // pred_check
        %p2612 = pneg %p92
      $region34: #{double_conv.3} parent=27 // pred_check_branch
        %2614 = sbr.rel (%p2612) target = $region36
      $region35: #{double_conv.3} parent=27 // pred_region
        _
      $region36: #{double_conv.3} parent=27 // pred_fallthru
        _
      // Predicated region
      $region37: #{double_conv.3} parent=27 // pred_check
        %p2615 = pneg %p118
      $region38: #{double_conv.3} parent=27 // pred_check_branch
        %2617 = sbr.rel (%p2615) target = $region40
      $region39: #{double_conv.3} parent=27 // pred_region
        _
      $region40: #{double_conv.3} parent=27 // pred_fallthru
        _
    $region28: #{double_conv.3} parent=5 // pred_fallthru
      _
    %p2618 = scmp.le.s32.totalorder 2, %s10
    // Predicated region
    $region41: #{double_conv.3} parent=5 // pred_check
      %p2619 = pneg %p2618
    $region42: #{double_conv.3} parent=5 // pred_check_branch
      %2621 = sbr.rel (%p2619) target = $region44
    $region43: #{double_conv.3} parent=5 // pred_region
      %s2622 = ssub.s32 %s10, 2
      // Predicated region
      $region45: #{double_conv.3} parent=43 // pred_check
        %p2623 = pneg %p98
      $region46: #{double_conv.3} parent=43 // pred_check_branch
        %2625 = sbr.rel (%p2623) target = $region48
      $region47: #{double_conv.3} parent=43 // pred_region
        %p2626 = scmp.lt.s32.totalorder %s21, 1
        %s2627 = scalar_select %p2626, %s21, 1
        %s2628 = smul.addr %s2627, 54
        %s2629 = smul.addr %s2628, 4
        %s2630 = scalar_lea.vmem %s2, %s2629
      $region48: #{double_conv.3} parent=43 // pred_fallthru
        _
      // Predicated region
      $region49: #{double_conv.3} parent=43 // pred_check
        %p2631 = pneg %p124
      $region50: #{double_conv.3} parent=43 // pred_check_branch
        %2633 = sbr.rel (%p2631) target = $region52
      $region51: #{double_conv.3} parent=43 // pred_region
        %p2634 = scmp.lt.s32.totalorder %s21, 1
        %s2635 = scalar_select %p2634, %s21, 1
        %s2636 = smul.addr %s2635, 8
        %s2637 = scalar_lea.vmem %s3, %s2636
      $region52: #{double_conv.3} parent=43 // pred_fallthru
        _
    $region44: #{double_conv.3} parent=5 // pred_fallthru
      _
  $region6: #{double_conv.3} parent=0 // loop_footer
    %s14 = sadd.s32 1, %s10
  $region7: #{double_conv.3} parent=0 // loop_footer_branch
    %9 = sbr.rel target = $region3
  $region8: #{double_conv.3} parent=0 // loop_exit
    _

</llo_original>
